<compile_context>
chip_gen: v6e
topology: v6e:2x2x1
jax: 0.10.0
libtpu: 0.0.40
codegen_flags: <defaults>
</compile_context>

<pallas_src>
import math

import jax
import jax.numpy as jnp
from jax.experimental import pallas as pl
from jax.experimental.pallas import tpu as pltpu

NEG = -1e30   # finite "-inf" sentinel: exp(NEG - NEG) == 1 transiently for all-invalid
              # lanes and is washed out once the always-valid (0,0) offset arrives;
              # a true -inf here would produce NaN (inf - inf).  Do not change.
EPS = 1e-5    # nn.LayerNorm default eps


def _round_up(x, m):
    return ((x + m - 1) // m) * m


def _largest_divisor_leq(n, k):
    g = min(n, k)
    while n % g:
        g -= 1
    return g


# ----------------------------------------------------------------------------- #
# Query 1x1 conv + fused per-head LayerNorm over (d_k, H*W); G (b,t) slabs / step
# ----------------------------------------------------------------------------- #
def _make_q_ln_kernel(n_head, d_k, G):
    def kernel(x_ref, w_ref, g_ref, b_ref, o_ref):
        g = g_ref[...]                                                  # (d_k, HW)
        bta = b_ref[...]
        for j in range(G):                                              # small static unroll
            y = jnp.dot(w_ref[...], x_ref[j],
                        preferred_element_type=jnp.float32)             # (n_head*d_k, HW)
            for h in range(n_head):
                yh = y[h * d_k:(h + 1) * d_k]                            # (d_k, HW)
                mean = jnp.mean(yh, axis=(0, 1), keepdims=True)
                var = jnp.mean((yh - mean) ** 2, axis=(0, 1), keepdims=True)
                # per-head slice written directly (no in-kernel concatenate)
                o_ref[j, h * d_k:(h + 1) * d_k, :] = (
                    (yh - mean) * jax.lax.rsqrt(var + EPS) * g + bta)
    return kernel


def _project_q_ln(first_f, wq, gamma_f, beta_f, n_head, d_k, G):
    BT, C, HW = first_f.shape
    OQ = wq.shape[0]
    return pl.pallas_call(
        _make_q_ln_kernel(n_head, d_k, G),
        out_shape=jax.ShapeDtypeStruct((BT, OQ, HW), jnp.float32),
        grid=(BT // G,),
        in_specs=[
            pl.BlockSpec((G, C, HW), lambda i: (i, 0, 0)),
            pl.BlockSpec((OQ, C), lambda i: (0, 0)),
            pl.BlockSpec((d_k, HW), lambda i: (0, 0)),
            pl.BlockSpec((d_k, HW), lambda i: (0, 0)),
        ],
        out_specs=pl.BlockSpec((G, OQ, HW), lambda i: (i, 0, 0)),
        compiler_params=pltpu.CompilerParams(dimension_semantics=("parallel",)),
    )(first_f, wq, gamma_f, beta_f)


# ----------------------------------------------------------------------------- #
# Key+value 1x1 conv (weights interleaved per head); G (b,t) slabs / step
# ----------------------------------------------------------------------------- #
def _make_kv_kernel(G):
    def kernel(x_ref, w_ref, o_ref):
        for j in range(G):
            o_ref[j] = jnp.dot(w_ref[...], x_ref[j],
                               preferred_element_type=jnp.float32)
    return kernel


def _project_kv(x_f, wkv, G):
    BT, C, HW = x_f.shape
    OKV = wkv.shape[0]
    return pl.pallas_call(
        _make_kv_kernel(G),
        out_shape=jax.ShapeDtypeStruct((BT, OKV, HW), jnp.float32),
        grid=(BT // G,),
        in_specs=[
            pl.BlockSpec((G, C, HW), lambda i: (i, 0, 0)),
            pl.BlockSpec((OKV, C), lambda i: (0, 0)),
        ],
        out_specs=pl.BlockSpec((G, OKV, HW), lambda i: (i, 0, 0)),
        compiler_params=pltpu.CompilerParams(dimension_semantics=("parallel",)),
    )(x_f, wkv)


# ----------------------------------------------------------------------------- #
# All-head relevance measuring + online softmax stats + spatio-temporal aggregation
# ----------------------------------------------------------------------------- #
def _offset_tables(radius, dilation, Lmax):
    n2 = Lmax * Lmax
    noff, dys, dxs = [], [], []
    for r, dil in zip(radius, dilation):
        L = 2 * r + 1
        dy = [dil * (oy - r) for oy in range(L) for _ in range(L)]
        dx = [dil * (ox - r) for _ in range(L) for ox in range(L)]
        noff.append(L * L)
        dy += [0] * (n2 - L * L)
        dx += [0] * (n2 - L * L)
        dys.append(dy)
        dxs.append(dx)
    return (jnp.asarray(noff, jnp.int32),
            jnp.asarray(dys, jnp.int32),
            jnp.asarray(dxs, jnp.int32))


def _make_attn_kernel(d_k, d_v, T, H, W, HW, p_left, HWP, scale):
    d_kv = d_k + d_v
    p_right = HWP - p_left - HW
    M_R = max(8, _round_up(T, 8))     # MXU row dim (pad tiny T up to a sublane tile)

    def kernel(noff_ref, dy_ref, dx_ref, q_ref, kv_ref, agg_ref, ms_ref,
               kvpad_ref, m_ref, z_ref):
        h = pl.program_id(0)

        # Refresh the padded key/value scratch.  Only the pad columns are zeroed
        # (the centre is fully overwritten each step).  Zeroing every step keeps
        # this megacore-safe (each TensorCore owns a separate scratch allocation).
        kvpad_ref[:, :, :p_left] = jnp.zeros((T, d_kv, p_left), jnp.float32)
        kvpad_ref[:, :, p_left + HW:] = jnp.zeros((T, d_kv, p_right), jnp.float32)
        kvpad_ref[:, :, p_left:p_left + HW] = kv_ref[0]

        # Online-softmax stats + aggregation accumulator (accumulated in the
        # VMEM-resident output block itself).
        m_ref[...] = jnp.full((T, HW), NEG, jnp.float32)
        z_ref[...] = jnp.zeros((T, HW), jnp.float32)
        agg_ref[0] = jnp.zeros((T, d_v, HW), jnp.float32)

        # Hoisted loop invariants: (h, w) coords of every flattened spatial lane,
        # and the block-diagonal reduce matrix that performs the sum over d_k on
        # the (otherwise idle) MXU instead of the XLU.
        s_idx = jax.lax.broadcasted_iota(jnp.int32, (T, HW), 1)
        row = s_idx // W
        col = s_idx - row * W
        r_ids = jax.lax.broadcasted_iota(jnp.int32, (M_R, T * d_k), 0)
        c_ids = jax.lax.broadcasted_iota(jnp.int32, (M_R, T * d_k), 1)
        red_mat = (c_ids // d_k == r_ids).astype(jnp.float32)            # (M_R, T*d_k)

        n_off = noff_ref[h]

        @pl.loop(0, n_off)
        def _(i):
            dy = dy_ref[h, i]
            dx = dx_ref[h, i]
            start = p_left + dy * W + dx
            kv_s = kvpad_ref[:, :, pl.ds(start, HW)]                     # (T, d_k+d_v, HW)
            k_s = kv_s[:, :d_k, :]
            v_s = kv_s[:, d_k:, :]
            q = q_ref[0]                                                 # (T, d_k, HW)

            # validity of the (dy, dx)-shifted position (pads / row-wraps are invalid)
            valid = ((row + dy >= 0) & (row + dy < H) &
                     (col + dx >= 0) & (col + dx < W))                   # (T, HW)

            # logits for every (tq, tk) at this offset:
            #   w[tk][tq, s] = scale * sum_c q[tq, c, s] * key[tk, c, s + off]
            ws = []
            for tk in range(T):
                prod = (q * k_s[tk]).reshape(T * d_k, HW)                # (T*d_k, HW)
                w8 = jnp.dot(red_mat, prod,
                             preferred_element_type=jnp.float32)         # (M_R, HW)
                ws.append(scale * w8[:T])                                # (T, HW)

            w_max = ws[0]
            for tk in range(1, T):
                w_max = jnp.maximum(w_max, ws[tk])
            w_max = jnp.where(valid, w_max, NEG)

            # Single online max/Z update per offset (tk vectorized).
            m_old = m_ref[...]
            m_new = jnp.maximum(m_old, w_max)
            z_new = z_ref[...] * jnp.exp(m_old - m_new)
            delta = None
            for tk in range(T):
                w_log = jnp.where(valid, ws[tk], NEG)
                z_new = z_new + jnp.exp(w_log - m_new)
                # aggregation uses the *raw scaled* logits (reference semantics:
                # spatial_temporal_aggregation consumes M_A_i before the softmax);
                # invalid window positions contribute exactly 0.
                w_agg = jnp.where(valid, ws[tk], 0.0)
                term = w_agg[:, None, :] * v_s[tk]                       # (T, d_v, HW)
                delta = term if delta is None else delta + term
            m_ref[...] = m_new
            z_ref[...] = z_new
            agg_ref[0] = agg_ref[0] + delta

        # max softmax probability over the whole (offset, tk) axis == exp(0)/Z == 1/Z
        # (exact reciprocal: it scales the whole block output).
        ms_ref[0, 0] = 1.0 / z_ref[...]

    return kernel


def _attention_all_heads(q_ln, kv, n_head, d_k, d_v, H, W, radius, dilation, scale):
    B, T, _, HW = q_ln.shape
    Lmax = max(2 * r + 1 for r in radius)
    pad_max = max(r * d for r, d in zip(radius, dilation)) * (W + 1)
    p_left = _round_up(pad_max, 128)                 # lane-aligned centre of the scratch
    p_right = _round_up(pad_max, 128)                # lane-aligned right edge too
    HWP = p_left + HW + p_right

    noff, dy_tab, dx_tab = _offset_tables(radius, dilation, Lmax)
    kernel = _make_attn_kernel(d_k, d_v, T, H, W, HW, p_left, HWP, scale)

    agg, ms = pl.pallas_call(
        kernel,
        out_shape=(jax.ShapeDtypeStruct((B, T, n_head * d_v, HW), jnp.float32),
                   jax.ShapeDtypeStruct((B, n_head, T, HW), jnp.float32)),
        grid_spec=pltpu.PrefetchScalarGridSpec(
            num_scalar_prefetch=3,
            grid=(n_head, B),
            in_specs=[
                # head channel slices are selected by the index_map: no host slicing.
                pl.BlockSpec((1, T, d_k, HW), lambda h, b, *_: (b, 0, h, 0)),
                pl.BlockSpec((1, T, d_k + d_v, HW), lambda h, b, *_: (b, 0, h, 0)),
            ],
            out_specs=(
                pl.BlockSpec((1, T, d_v, HW), lambda h, b, *_: (b, 0, h, 0)),
                pl.BlockSpec((1, 1, T, HW), lambda h, b, *_: (b, h, 0, 0)),
            ),
            scratch_shapes=[
                pltpu.VMEM((T, d_k + d_v, HWP), jnp.float32),   # padded K|V
                pltpu.VMEM((T, HW), jnp.float32),               # running max m
                pltpu.VMEM((T, HW), jnp.float32),               # running sum  z
            ],
        ),
        compiler_params=pltpu.CompilerParams(
            dimension_semantics=("parallel", "parallel"),
            vmem_limit_bytes=48 * 1024 * 1024,
        ),
    )(noff, dy_tab, dx_tab, q_ln, kv)
    return agg, ms


# ----------------------------------------------------------------------------- #
# Output 1x1 conv fused with M_S = max-over-heads and the final per-position scaling
# ----------------------------------------------------------------------------- #
def _make_out_kernel(G):
    def kernel(w_ref, mt_ref, ms_ref, o_ref):
        for j in range(G):
            y = jnp.dot(w_ref[...], mt_ref[j],
                        preferred_element_type=jnp.float32)              # (C_in, HW)
            s = jnp.max(ms_ref[j], axis=0, keepdims=True)                # (1, HW)
            o_ref[j] = y * s
    return kernel


def _project_out(wo, mt, ms, G):
    BT, NV, HW = mt.shape
    C_in = wo.shape[0]
    n_head = ms.shape[1]
    return pl.pallas_call(
        _make_out_kernel(G),
        out_shape=jax.ShapeDtypeStruct((BT, C_in, HW), jnp.float32),
        grid=(BT // G,),
        in_specs=[
            pl.BlockSpec((C_in, NV), lambda i: (0, 0)),
            pl.BlockSpec((G, NV, HW), lambda i: (i, 0, 0)),
            pl.BlockSpec((G, n_head, HW), lambda i: (i, 0, 0)),
        ],
        out_specs=pl.BlockSpec((G, C_in, HW), lambda i: (i, 0, 0)),
        compiler_params=pltpu.CompilerParams(dimension_semantics=("parallel",)),
    )(wo, mt, ms)


# ----------------------------------------------------------------------------- #
# NS_Block forward (Pallas path)
# ----------------------------------------------------------------------------- #
def ns_block_forward(first, x, params, n_head, radius, dilation):
    wq, wk, wv, wo = params["wq"], params["wk"], params["wv"], params["wo"]
    gamma, beta = params["gamma"], params["beta"]
    B, T, C_in, H, W = x.shape
    HW = H * W
    d_k = wq.shape[0] // n_head
    d_v = wv.shape[0] // n_head
    assert d_k == C_in // n_head, "LayerNorm shape implies d_k == channels_in / n_head"
    assert d_k % 8 == 0 and d_v % 8 == 0 and HW % 128 == 0, \
        "TPU-tile-friendly head dims / spatial size expected"

    # Pure reshapes only: H*W goes on the lane axis everywhere.
    first_f = first.reshape(B * T, C_in, HW)
    x_f = x.reshape(B * T, C_in, HW)
    gamma_f = gamma.reshape(d_k, HW).astype(jnp.float32)
    beta_f = beta.reshape(d_k, HW).astype(jnp.float32)
    # Interleave key/value weights per head -> one contiguous (d_k+d_v) channel slab
    # per head in the projected KV array (single input DMA in the attention kernel).
    wkv = jnp.concatenate(
        [wk.reshape(n_head, d_k, C_in), wv.reshape(n_head, d_v, C_in)],
        axis=1).reshape(n_head * (d_k + d_v), C_in)

    G = _largest_divisor_leq(B * T, 8)                                   # (b,t) slabs / step
    q_ln = _project_q_ln(first_f, wq, gamma_f, beta_f, n_head, d_k, G)   # (BT, nh*d_k, HW)
    kv = _project_kv(x_f, wkv, G)                                        # (BT, nh*(d_k+d_v), HW)

    q_ln = q_ln.reshape(B, T, n_head * d_k, HW)
    kv = kv.reshape(B, T, n_head * (d_k + d_v), HW)

    scale = 1.0 / math.sqrt(C_in / n_head)
    agg, ms = _attention_all_heads(q_ln, kv, n_head, d_k, d_v, H, W,
                                   radius, dilation, scale)
    # agg: (B, T, n_head*d_v, HW) ; ms: (B, n_head, T, HW) -> (BT, n_head, HW)
    mt = agg.reshape(B * T, n_head * d_v, HW)
    ms_f = ms.transpose(0, 2, 1, 3).reshape(B * T, n_head, HW)

    out = _project_out(wo, mt, ms_f, G)                                  # (BT, C_in, HW)
    return out.reshape(B, T, C_in, H, W)


# ----------------------------------------------------------------------------- #
# Pure-JAX reference (same math, XLA ops) used as a self-check.
# ----------------------------------------------------------------------------- #
def ns_block_reference(first, x, params, n_head, radius, dilation):
    wq, wk, wv, wo = params["wq"], params["wk"], params["wv"], params["wo"]
    gamma, beta = params["gamma"], params["beta"]
    B, T, C_in, H, W = x.shape

    def conv(xx, w):
        return jnp.einsum('btchw,oc->btohw', xx, w, precision='highest')

    q, k, v = conv(first, wq), conv(x, wk), conv(x, wv)
    d_k = wq.shape[0] // n_head
    d_v = wv.shape[0] // n_head
    qh = q.reshape(B, T, n_head, d_k, H, W)
    mean = qh.mean(axis=(3, 4, 5), keepdims=True)
    var = ((qh - mean) ** 2).mean(axis=(3, 4, 5), keepdims=True)
    qh = (qh - mean) / jnp.sqrt(var + 1e-5) * gamma + beta
    kh = k.reshape(B, T, n_head, d_k, H, W)
    vh = v.reshape(B, T, n_head, d_v, H, W)

    scale = 1.0 / math.sqrt(C_in / n_head)
    row = jnp.arange(H)[:, None]
    col = jnp.arange(W)[None, :]
    aggs, pmax = [], []
    for i in range(n_head):
        r, dil = radius[i], dilation[i]
        L = 2 * r + 1
        pad = r * dil
        qi, ki, vi = qh[:, :, i], kh[:, :, i], vh[:, :, i]
        kp = jnp.pad(ki, ((0, 0), (0, 0), (0, 0), (pad, pad), (pad, pad)))
        vp = jnp.pad(vi, ((0, 0), (0, 0), (0, 0), (pad, pad), (pad, pad)))
        agg = jnp.zeros_like(vi)
        entries = []
        for oy in range(L):
            dy = dil * (oy - r)
            for ox in range(L):
                dx = dil * (ox - r)
                ks = kp[:, :, :, oy * dil:oy * dil + H, ox * dil:ox * dil + W]
                vs = vp[:, :, :, oy * dil:oy * dil + H, ox * dil:ox * dil + W]
                w_raw = scale * jnp.einsum('bqchw,bkchw->bqkhw', qi, ks, precision='highest')
                valid = (row + dy >= 0) & (row + dy < H) & (col + dx >= 0) & (col + dx < W)
                entries.append(jnp.where(valid, w_raw, -jnp.inf))
                agg = agg + jnp.einsum('bqkhw,bkchw->bqchw',
                                       jnp.where(valid, w_raw, 0.0), vs, precision='highest')
        w_all = jnp.stack(entries, axis=2).reshape(B, T, L * L * T, H, W)
        probs = jax.nn.softmax(w_all, axis=2)
        pmax.append(probs.max(axis=2))
        aggs.append(agg)
    M_T = jnp.concatenate(aggs, axis=2)
    M_S = jnp.stack(pmax, axis=0).max(axis=0)
    return jnp.einsum('btchw,oc->btohw', M_T, wo, precision='highest') * M_S[:, :, None]


if __name__ == "__main__":
    # Module-default configuration at small shapes:
    #   NS_Block(bn_out=(16,16), channels_in=32, n_head=4, d_k=8, d_v=8,
    #            radius=[3,3,3,3], dilation=[1,3,5,7])
    B, T, C_in, H, W = 2, 4, 32, 16, 16
    n_head, d_k, d_v = 4, 8, 8
    radius = [3, 3, 3, 3]
    dilation = [1, 3, 5, 7]

    key = jax.random.PRNGKey(0)
    ks = jax.random.split(key, 8)
    first = jax.random.normal(ks[0], (B, T, C_in, H, W), jnp.float32)
    x = jax.random.normal(ks[1], (B, T, C_in, H, W), jnp.float32)
    params = dict(
        wq=jax.random.normal(ks[2], (n_head * d_k, C_in), jnp.float32) / math.sqrt(C_in),
        wk=jax.random.normal(ks[3], (n_head * d_k, C_in), jnp.float32) / math.sqrt(C_in),
        wv=jax.random.normal(ks[4], (n_head * d_v, C_in), jnp.float32) / math.sqrt(C_in),
        wo=jax.random.normal(ks[5], (C_in, n_head * d_v), jnp.float32) / math.sqrt(n_head * d_v),
        gamma=1.0 + 0.1 * jax.random.normal(ks[6], (C_in // n_head, H, W), jnp.float32),
        beta=0.1 * jax.random.normal(ks[7], (C_in // n_head, H, W), jnp.float32),
    )

    out = jax.block_until_ready(ns_block_forward(first, x, params, n_head, radius, dilation))
    assert out.shape == (B, T, C_in, H, W)

    ref = jax.block_until_ready(ns_block_reference(first, x, params, n_head, radius, dilation))
    rel_err = float(jnp.max(jnp.abs(out - ref)) / (jnp.max(jnp.abs(ref)) + 1e-6))
    # Tolerance covers the default-precision (bf16-pass) MXU lowering of the f32
    # matmuls used in the Pallas path (the reference uses precision='highest').
    if not (rel_err < 2e-2):
        raise SystemExit(f"mismatch vs reference: rel_err={rel_err}")
    print("KERNEL_OK")
</pallas_src>

<mosaic_0001>
module attributes {stable_mosaic.version = 11 : i64} {
  func.func @kernel(%arg0: i32, %arg1: memref<8x32x256xf32, #tpu.memory_space<vmem>>, %arg2: memref<32x32xf32, #tpu.memory_space<vmem>>, %arg3: memref<8x256xf32, #tpu.memory_space<vmem>>, %arg4: memref<8x256xf32, #tpu.memory_space<vmem>>, %arg5: memref<8x32x256xf32, #tpu.memory_space<vmem>>) attributes {dimension_semantics = [#tpu.dimension_semantics<parallel>], iteration_bounds = array<i64: 1>, scalar_prefetch = 0 : i64, scratch_operands = 0 : i64, tpu.core_type = #tpu.core_type<tc>, window_params = [{transform_indices = @transform_0, window_bounds = array<i64: 8, 32, 256>}, {pipeline_mode = #tpu.pipeline_mode<synchronous>, transform_indices = @transform_1, window_bounds = array<i64: 32, 32>}, {pipeline_mode = #tpu.pipeline_mode<synchronous>, transform_indices = @transform_2, window_bounds = array<i64: 8, 256>}, {pipeline_mode = #tpu.pipeline_mode<synchronous>, transform_indices = @transform_3, window_bounds = array<i64: 8, 256>}, {transform_indices = @transform_4, window_bounds = array<i64: 8, 32, 256>}]} {
    %c0 = arith.constant 0 : index
    %c0_0 = arith.constant 0 : index
    %0 = vector.load %arg3[%c0, %c0_0] : memref<8x256xf32, #tpu.memory_space<vmem>>, vector<8x256xf32>
    %c0_1 = arith.constant 0 : index
    %c0_2 = arith.constant 0 : index
    %1 = vector.load %arg4[%c0_1, %c0_2] : memref<8x256xf32, #tpu.memory_space<vmem>>, vector<8x256xf32>
    %c0_3 = arith.constant 0 : index
    %c0_4 = arith.constant 0 : index
    %2 = vector.load %arg2[%c0_3, %c0_4] : memref<32x32xf32, #tpu.memory_space<vmem>>, vector<32x32xf32>
    %c0_5 = arith.constant 0 : index
    %c0_6 = arith.constant 0 : index
    %c0_7 = arith.constant 0 : index
    %3 = vector.load %arg1[%c0_5, %c0_6, %c0_7] : memref<8x32x256xf32, #tpu.memory_space<vmem>>, vector<1x32x256xf32>
    %4 = vector.shape_cast %3 : vector<1x32x256xf32> to vector<32x256xf32>
    %cst = arith.constant dense<0.000000e+00> : vector<32x256xf32>
    %5 = tpu.matmul %2, %4, %cst {dimension_numbers = #tpu.dot_dimension_numbers<[1], [0], [0], [1], [0, 0, 1, 1], [], []>} : vector<32x32xf32>, vector<32x256xf32>, vector<32x256xf32> -> vector<32x256xf32>
    %6 = vector.extract_strided_slice %5 {offsets = [0, 0], sizes = [8, 256], strides = [1, 1]} : vector<32x256xf32> to vector<8x256xf32>
    %7 = vector.shape_cast %6 : vector<8x256xf32> to vector<1x8x256xf32>
    %cst_8 = arith.constant dense<0.000000e+00> : vector<1xf32>
    %8 = vector.multi_reduction <add>, %7, %cst_8 [1, 2] : vector<1x8x256xf32> to vector<1xf32>
    %9 = vector.shape_cast %8 : vector<1xf32> to vector<1x1x1xf32>
    %10 = vector.extract %9[0, 0, 0] : f32 from vector<1x1x1xf32>
    %11 = vector.broadcast %10 : f32 to vector<1x1xf32>
    %cst_9 = arith.constant 2.048000e+03 : f32
    %12 = vector.broadcast %cst_9 : f32 to vector<1x1xf32>
    %13 = arith.divf %11, %12 : vector<1x1xf32>
    %14 = vector.broadcast %13 : vector<1x1xf32> to vector<8x256xf32>
    %15 = arith.subf %6, %14 : vector<8x256xf32>
    %16 = arith.mulf %15, %15 : vector<8x256xf32>
    %17 = vector.shape_cast %16 : vector<8x256xf32> to vector<1x8x256xf32>
    %cst_10 = arith.constant dense<0.000000e+00> : vector<1xf32>
    %18 = vector.multi_reduction <add>, %17, %cst_10 [1, 2] : vector<1x8x256xf32> to vector<1xf32>
    %19 = vector.shape_cast %18 : vector<1xf32> to vector<1x1x1xf32>
    %20 = vector.extract %19[0, 0, 0] : f32 from vector<1x1x1xf32>
    %21 = vector.broadcast %20 : f32 to vector<1x1xf32>
    %cst_11 = arith.constant 2.048000e+03 : f32
    %22 = vector.broadcast %cst_11 : f32 to vector<1x1xf32>
    %23 = arith.divf %21, %22 : vector<1x1xf32>
    %24 = vector.broadcast %13 : vector<1x1xf32> to vector<8x256xf32>
    %25 = arith.subf %6, %24 : vector<8x256xf32>
    %cst_12 = arith.constant 9.99999974E-6 : f32
    %26 = vector.broadcast %cst_12 : f32 to vector<1x1xf32>
    %27 = arith.addf %23, %26 : vector<1x1xf32>
    %28 = math.rsqrt %27 : vector<1x1xf32>
    %29 = vector.broadcast %28 : vector<1x1xf32> to vector<8x256xf32>
    %30 = arith.mulf %25, %29 : vector<8x256xf32>
    %31 = arith.mulf %30, %0 : vector<8x256xf32>
    %32 = arith.addf %31, %1 : vector<8x256xf32>
    %c0_13 = arith.constant 0 : index
    %c0_14 = arith.constant 0 : index
    %c0_15 = arith.constant 0 : index
    %33 = vector.load %arg5[%c0_13, %c0_14, %c0_15] : memref<8x32x256xf32, #tpu.memory_space<vmem>>, vector<1x8x256xf32>
    %34 = vector.shape_cast %33 : vector<1x8x256xf32> to vector<8x256xf32>
    %35 = vector.shape_cast %32 : vector<8x256xf32> to vector<1x8x256xf32>
    tpu.vector_store %arg5[%c0_13, %c0_14, %c0_15], %35 {strides = array<i32>} : memref<8x32x256xf32, #tpu.memory_space<vmem>>, vector<1x8x256xf32>,
    %36 = vector.extract_strided_slice %5 {offsets = [8, 0], sizes = [8, 256], strides = [1, 1]} : vector<32x256xf32> to vector<8x256xf32>
    %37 = vector.shape_cast %36 : vector<8x256xf32> to vector<1x8x256xf32>
    %cst_16 = arith.constant dense<0.000000e+00> : vector<1xf32>
    %38 = vector.multi_reduction <add>, %37, %cst_16 [1, 2] : vector<1x8x256xf32> to vector<1xf32>
    %39 = vector.shape_cast %38 : vector<1xf32> to vector<1x1x1xf32>
    %40 = vector.extract %39[0, 0, 0] : f32 from vector<1x1x1xf32>
    %41 = vector.broadcast %40 : f32 to vector<1x1xf32>
    %cst_17 = arith.constant 2.048000e+03 : f32
    %42 = vector.broadcast %cst_17 : f32 to vector<1x1xf32>
    %43 = arith.divf %41, %42 : vector<1x1xf32>
    %44 = vector.broadcast %43 : vector<1x1xf32> to vector<8x256xf32>
    %45 = arith.subf %36, %44 : vector<8x256xf32>
    %46 = arith.mulf %45, %45 : vector<8x256xf32>
    %47 = vector.shape_cast %46 : vector<8x256xf32> to vector<1x8x256xf32>
    %cst_18 = arith.constant dense<0.000000e+00> : vector<1xf32>
    %48 = vector.multi_reduction <add>, %47, %cst_18 [1, 2] : vector<1x8x256xf32> to vector<1xf32>
    %49 = vector.shape_cast %48 : vector<1xf32> to vector<1x1x1xf32>
    %50 = vector.extract %49[0, 0, 0] : f32 from vector<1x1x1xf32>
    %51 = vector.broadcast %50 : f32 to vector<1x1xf32>
    %cst_19 = arith.constant 2.048000e+03 : f32
    %52 = vector.broadcast %cst_19 : f32 to vector<1x1xf32>
    %53 = arith.divf %51, %52 : vector<1x1xf32>
    %54 = vector.broadcast %43 : vector<1x1xf32> to vector<8x256xf32>
    %55 = arith.subf %36, %54 : vector<8x256xf32>
    %cst_20 = arith.constant 9.99999974E-6 : f32
    %56 = vector.broadcast %cst_20 : f32 to vector<1x1xf32>
    %57 = arith.addf %53, %56 : vector<1x1xf32>
    %58 = math.rsqrt %57 : vector<1x1xf32>
    %59 = vector.broadcast %58 : vector<1x1xf32> to vector<8x256xf32>
    %60 = arith.mulf %55, %59 : vector<8x256xf32>
    %61 = arith.mulf %60, %0 : vector<8x256xf32>
    %62 = arith.addf %61, %1 : vector<8x256xf32>
    %c0_21 = arith.constant 0 : index
    %c8 = arith.constant 8 : index
    %c0_22 = arith.constant 0 : index
    %63 = vector.load %arg5[%c0_21, %c8, %c0_22] : memref<8x32x256xf32, #tpu.memory_space<vmem>>, vector<1x8x256xf32>
    %64 = vector.shape_cast %63 : vector<1x8x256xf32> to vector<8x256xf32>
    %65 = vector.shape_cast %62 : vector<8x256xf32> to vector<1x8x256xf32>
    tpu.vector_store %arg5[%c0_21, %c8, %c0_22], %65 {strides = array<i32>} : memref<8x32x256xf32, #tpu.memory_space<vmem>>, vector<1x8x256xf32>,
    %66 = vector.extract_strided_slice %5 {offsets = [16, 0], sizes = [8, 256], strides = [1, 1]} : vector<32x256xf32> to vector<8x256xf32>
    %67 = vector.shape_cast %66 : vector<8x256xf32> to vector<1x8x256xf32>
    %cst_23 = arith.constant dense<0.000000e+00> : vector<1xf32>
    %68 = vector.multi_reduction <add>, %67, %cst_23 [1, 2] : vector<1x8x256xf32> to vector<1xf32>
    %69 = vector.shape_cast %68 : vector<1xf32> to vector<1x1x1xf32>
    %70 = vector.extract %69[0, 0, 0] : f32 from vector<1x1x1xf32>
    %71 = vector.broadcast %70 : f32 to vector<1x1xf32>
    %cst_24 = arith.constant 2.048000e+03 : f32
    %72 = vector.broadcast %cst_24 : f32 to vector<1x1xf32>
    %73 = arith.divf %71, %72 : vector<1x1xf32>
    %74 = vector.broadcast %73 : vector<1x1xf32> to vector<8x256xf32>
    %75 = arith.subf %66, %74 : vector<8x256xf32>
    %76 = arith.mulf %75, %75 : vector<8x256xf32>
    %77 = vector.shape_cast %76 : vector<8x256xf32> to vector<1x8x256xf32>
    %cst_25 = arith.constant dense<0.000000e+00> : vector<1xf32>
    %78 = vector.multi_reduction <add>, %77, %cst_25 [1, 2] : vector<1x8x256xf32> to vector<1xf32>
    %79 = vector.shape_cast %78 : vector<1xf32> to vector<1x1x1xf32>
    %80 = vector.extract %79[0, 0, 0] : f32 from vector<1x1x1xf32>
    %81 = vector.broadcast %80 : f32 to vector<1x1xf32>
    %cst_26 = arith.constant 2.048000e+03 : f32
    %82 = vector.broadcast %cst_26 : f32 to vector<1x1xf32>
    %83 = arith.divf %81, %82 : vector<1x1xf32>
    %84 = vector.broadcast %73 : vector<1x1xf32> to vector<8x256xf32>
    %85 = arith.subf %66, %84 : vector<8x256xf32>
    %cst_27 = arith.constant 9.99999974E-6 : f32
    %86 = vector.broadcast %cst_27 : f32 to vector<1x1xf32>
    %87 = arith.addf %83, %86 : vector<1x1xf32>
    %88 = math.rsqrt %87 : vector<1x1xf32>
    %89 = vector.broadcast %88 : vector<1x1xf32> to vector<8x256xf32>
    %90 = arith.mulf %85, %89 : vector<8x256xf32>
    %91 = arith.mulf %90, %0 : vector<8x256xf32>
    %92 = arith.addf %91, %1 : vector<8x256xf32>
    %c0_28 = arith.constant 0 : index
    %c16 = arith.constant 16 : index
    %c0_29 = arith.constant 0 : index
    %93 = vector.load %arg5[%c0_28, %c16, %c0_29] : memref<8x32x256xf32, #tpu.memory_space<vmem>>, vector<1x8x256xf32>
    %94 = vector.shape_cast %93 : vector<1x8x256xf32> to vector<8x256xf32>
    %95 = vector.shape_cast %92 : vector<8x256xf32> to vector<1x8x256xf32>
    tpu.vector_store %arg5[%c0_28, %c16, %c0_29], %95 {strides = array<i32>} : memref<8x32x256xf32, #tpu.memory_space<vmem>>, vector<1x8x256xf32>,
    %96 = vector.extract_strided_slice %5 {offsets = [24, 0], sizes = [8, 256], strides = [1, 1]} : vector<32x256xf32> to vector<8x256xf32>
    %97 = vector.shape_cast %96 : vector<8x256xf32> to vector<1x8x256xf32>
    %cst_30 = arith.constant dense<0.000000e+00> : vector<1xf32>
    %98 = vector.multi_reduction <add>, %97, %cst_30 [1, 2] : vector<1x8x256xf32> to vector<1xf32>
    %99 = vector.shape_cast %98 : vector<1xf32> to vector<1x1x1xf32>
    %100 = vector.extract %99[0, 0, 0] : f32 from vector<1x1x1xf32>
    %101 = vector.broadcast %100 : f32 to vector<1x1xf32>
    %cst_31 = arith.constant 2.048000e+03 : f32
    %102 = vector.broadcast %cst_31 : f32 to vector<1x1xf32>
    %103 = arith.divf %101, %102 : vector<1x1xf32>
    %104 = vector.broadcast %103 : vector<1x1xf32> to vector<8x256xf32>
    %105 = arith.subf %96, %104 : vector<8x256xf32>
    %106 = arith.mulf %105, %105 : vector<8x256xf32>
    %107 = vector.shape_cast %106 : vector<8x256xf32> to vector<1x8x256xf32>
    %cst_32 = arith.constant dense<0.000000e+00> : vector<1xf32>
    %108 = vector.multi_reduction <add>, %107, %cst_32 [1, 2] : vector<1x8x256xf32> to vector<1xf32>
    %109 = vector.shape_cast %108 : vector<1xf32> to vector<1x1x1xf32>
    %110 = vector.extract %109[0, 0, 0] : f32 from vector<1x1x1xf32>
    %111 = vector.broadcast %110 : f32 to vector<1x1xf32>
    %cst_33 = arith.constant 2.048000e+03 : f32
    %112 = vector.broadcast %cst_33 : f32 to vector<1x1xf32>
    %113 = arith.divf %111, %112 : vector<1x1xf32>
    %114 = vector.broadcast %103 : vector<1x1xf32> to vector<8x256xf32>
    %115 = arith.subf %96, %114 : vector<8x256xf32>
    %cst_34 = arith.constant 9.99999974E-6 : f32
    %116 = vector.broadcast %cst_34 : f32 to vector<1x1xf32>
    %117 = arith.addf %113, %116 : vector<1x1xf32>
    %118 = math.rsqrt %117 : vector<1x1xf32>
    %119 = vector.broadcast %118 : vector<1x1xf32> to vector<8x256xf32>
    %120 = arith.mulf %115, %119 : vector<8x256xf32>
    %121 = arith.mulf %120, %0 : vector<8x256xf32>
    %122 = arith.addf %121, %1 : vector<8x256xf32>
    %c0_35 = arith.constant 0 : index
    %c24 = arith.constant 24 : index
    %c0_36 = arith.constant 0 : index
    %123 = vector.load %arg5[%c0_35, %c24, %c0_36] : memref<8x32x256xf32, #tpu.memory_space<vmem>>, vector<1x8x256xf32>
    %124 = vector.shape_cast %123 : vector<1x8x256xf32> to vector<8x256xf32>
    %125 = vector.shape_cast %122 : vector<8x256xf32> to vector<1x8x256xf32>
    tpu.vector_store %arg5[%c0_35, %c24, %c0_36], %125 {strides = array<i32>} : memref<8x32x256xf32, #tpu.memory_space<vmem>>, vector<1x8x256xf32>,
    %c0_37 = arith.constant 0 : index
    %c0_38 = arith.constant 0 : index
    %126 = vector.load %arg2[%c0_37, %c0_38] : memref<32x32xf32, #tpu.memory_space<vmem>>, vector<32x32xf32>
    %c1 = arith.constant 1 : index
    %c0_39 = arith.constant 0 : index
    %c0_40 = arith.constant 0 : index
    %127 = vector.load %arg1[%c1, %c0_39, %c0_40] : memref<8x32x256xf32, #tpu.memory_space<vmem>>, vector<1x32x256xf32>
    %128 = vector.shape_cast %127 : vector<1x32x256xf32> to vector<32x256xf32>
    %cst_41 = arith.constant dense<0.000000e+00> : vector<32x256xf32>
    %129 = tpu.matmul %126, %128, %cst_41 {dimension_numbers = #tpu.dot_dimension_numbers<[1], [0], [0], [1], [0, 0, 1, 1], [], []>} : vector<32x32xf32>, vector<32x256xf32>, vector<32x256xf32> -> vector<32x256xf32>
    %130 = vector.extract_strided_slice %129 {offsets = [0, 0], sizes = [8, 256], strides = [1, 1]} : vector<32x256xf32> to vector<8x256xf32>
    %131 = vector.shape_cast %130 : vector<8x256xf32> to vector<1x8x256xf32>
    %cst_42 = arith.constant dense<0.000000e+00> : vector<1xf32>
    %132 = vector.multi_reduction <add>, %131, %cst_42 [1, 2] : vector<1x8x256xf32> to vector<1xf32>
    %133 = vector.shape_cast %132 : vector<1xf32> to vector<1x1x1xf32>
    %134 = vector.extract %133[0, 0, 0] : f32 from vector<1x1x1xf32>
    %135 = vector.broadcast %134 : f32 to vector<1x1xf32>
    %cst_43 = arith.constant 2.048000e+03 : f32
    %136 = vector.broadcast %cst_43 : f32 to vector<1x1xf32>
    %137 = arith.divf %135, %136 : vector<1x1xf32>
    %138 = vector.broadcast %137 : vector<1x1xf32> to vector<8x256xf32>
    %139 = arith.subf %130, %138 : vector<8x256xf32>
    %140 = arith.mulf %139, %139 : vector<8x256xf32>
    %141 = vector.shape_cast %140 : vector<8x256xf32> to vector<1x8x256xf32>
    %cst_44 = arith.constant dense<0.000000e+00> : vector<1xf32>
    %142 = vector.multi_reduction <add>, %141, %cst_44 [1, 2] : vector<1x8x256xf32> to vector<1xf32>
    %143 = vector.shape_cast %142 : vector<1xf32> to vector<1x1x1xf32>
    %144 = vector.extract %143[0, 0, 0] : f32 from vector<1x1x1xf32>
    %145 = vector.broadcast %144 : f32 to vector<1x1xf32>
    %cst_45 = arith.constant 2.048000e+03 : f32
    %146 = vector.broadcast %cst_45 : f32 to vector<1x1xf32>
    %147 = arith.divf %145, %146 : vector<1x1xf32>
    %148 = vector.broadcast %137 : vector<1x1xf32> to vector<8x256xf32>
    %149 = arith.subf %130, %148 : vector<8x256xf32>
    %cst_46 = arith.constant 9.99999974E-6 : f32
    %150 = vector.broadcast %cst_46 : f32 to vector<1x1xf32>
    %151 = arith.addf %147, %150 : vector<1x1xf32>
    %152 = math.rsqrt %151 : vector<1x1xf32>
    %153 = vector.broadcast %152 : vector<1x1xf32> to vector<8x256xf32>
    %154 = arith.mulf %149, %153 : vector<8x256xf32>
    %155 = arith.mulf %154, %0 : vector<8x256xf32>
    %156 = arith.addf %155, %1 : vector<8x256xf32>
    %c1_47 = arith.constant 1 : index
    %c0_48 = arith.constant 0 : index
    %c0_49 = arith.constant 0 : index
    %157 = vector.load %arg5[%c1_47, %c0_48, %c0_49] : memref<8x32x256xf32, #tpu.memory_space<vmem>>, vector<1x8x256xf32>
    %158 = vector.shape_cast %157 : vector<1x8x256xf32> to vector<8x256xf32>
    %159 = vector.shape_cast %156 : vector<8x256xf32> to vector<1x8x256xf32>
    tpu.vector_store %arg5[%c1_47, %c0_48, %c0_49], %159 {strides = array<i32>} : memref<8x32x256xf32, #tpu.memory_space<vmem>>, vector<1x8x256xf32>,
    %160 = vector.extract_strided_slice %129 {offsets = [8, 0], sizes = [8, 256], strides = [1, 1]} : vector<32x256xf32> to vector<8x256xf32>
    %161 = vector.shape_cast %160 : vector<8x256xf32> to vector<1x8x256xf32>
    %cst_50 = arith.constant dense<0.000000e+00> : vector<1xf32>
    %162 = vector.multi_reduction <add>, %161, %cst_50 [1, 2] : vector<1x8x256xf32> to vector<1xf32>
    %163 = vector.shape_cast %162 : vector<1xf32> to vector<1x1x1xf32>
    %164 = vector.extract %163[0, 0, 0] : f32 from vector<1x1x1xf32>
    %165 = vector.broadcast %164 : f32 to vector<1x1xf32>
    %cst_51 = arith.constant 2.048000e+03 : f32
    %166 = vector.broadcast %cst_51 : f32 to vector<1x1xf32>
    %167 = arith.divf %165, %166 : vector<1x1xf32>
    %168 = vector.broadcast %167 : vector<1x1xf32> to vector<8x256xf32>
    %169 = arith.subf %160, %168 : vector<8x256xf32>
    %170 = arith.mulf %169, %169 : vector<8x256xf32>
    %171 = vector.shape_cast %170 : vector<8x256xf32> to vector<1x8x256xf32>
    %cst_52 = arith.constant dense<0.000000e+00> : vector<1xf32>
    %172 = vector.multi_reduction <add>, %171, %cst_52 [1, 2] : vector<1x8x256xf32> to vector<1xf32>
    %173 = vector.shape_cast %172 : vector<1xf32> to vector<1x1x1xf32>
    %174 = vector.extract %173[0, 0, 0] : f32 from vector<1x1x1xf32>
    %175 = vector.broadcast %174 : f32 to vector<1x1xf32>
    %cst_53 = arith.constant 2.048000e+03 : f32
    %176 = vector.broadcast %cst_53 : f32 to vector<1x1xf32>
    %177 = arith.divf %175, %176 : vector<1x1xf32>
    %178 = vector.broadcast %167 : vector<1x1xf32> to vector<8x256xf32>
    %179 = arith.subf %160, %178 : vector<8x256xf32>
    %cst_54 = arith.constant 9.99999974E-6 : f32
    %180 = vector.broadcast %cst_54 : f32 to vector<1x1xf32>
    %181 = arith.addf %177, %180 : vector<1x1xf32>
    %182 = math.rsqrt %181 : vector<1x1xf32>
    %183 = vector.broadcast %182 : vector<1x1xf32> to vector<8x256xf32>
    %184 = arith.mulf %179, %183 : vector<8x256xf32>
    %185 = arith.mulf %184, %0 : vector<8x256xf32>
    %186 = arith.addf %185, %1 : vector<8x256xf32>
    %c1_55 = arith.constant 1 : index
    %c8_56 = arith.constant 8 : index
    %c0_57 = arith.constant 0 : index
    %187 = vector.load %arg5[%c1_55, %c8_56, %c0_57] : memref<8x32x256xf32, #tpu.memory_space<vmem>>, vector<1x8x256xf32>
    %188 = vector.shape_cast %187 : vector<1x8x256xf32> to vector<8x256xf32>
    %189 = vector.shape_cast %186 : vector<8x256xf32> to vector<1x8x256xf32>
    tpu.vector_store %arg5[%c1_55, %c8_56, %c0_57], %189 {strides = array<i32>} : memref<8x32x256xf32, #tpu.memory_space<vmem>>, vector<1x8x256xf32>,
    %190 = vector.extract_strided_slice %129 {offsets = [16, 0], sizes = [8, 256], strides = [1, 1]} : vector<32x256xf32> to vector<8x256xf32>
    %191 = vector.shape_cast %190 : vector<8x256xf32> to vector<1x8x256xf32>
    %cst_58 = arith.constant dense<0.000000e+00> : vector<1xf32>
    %192 = vector.multi_reduction <add>, %191, %cst_58 [1, 2] : vector<1x8x256xf32> to vector<1xf32>
    %193 = vector.shape_cast %192 : vector<1xf32> to vector<1x1x1xf32>
    %194 = vector.extract %193[0, 0, 0] : f32 from vector<1x1x1xf32>
    %195 = vector.broadcast %194 : f32 to vector<1x1xf32>
    %cst_59 = arith.constant 2.048000e+03 : f32
    %196 = vector.broadcast %cst_59 : f32 to vector<1x1xf32>
    %197 = arith.divf %195, %196 : vector<1x1xf32>
    %198 = vector.broadcast %197 : vector<1x1xf32> to vector<8x256xf32>
    %199 = arith.subf %190, %198 : vector<8x256xf32>
    %200 = arith.mulf %199, %199 : vector<8x256xf32>
    %201 = vector.shape_cast %200 : vector<8x256xf32> to vector<1x8x256xf32>
    %cst_60 = arith.constant dense<0.000000e+00> : vector<1xf32>
    %202 = vector.multi_reduction <add>, %201, %cst_60 [1, 2] : vector<1x8x256xf32> to vector<1xf32>
    %203 = vector.shape_cast %202 : vector<1xf32> to vector<1x1x1xf32>
    %204 = vector.extract %203[0, 0, 0] : f32 from vector<1x1x1xf32>
    %205 = vector.broadcast %204 : f32 to vector<1x1xf32>
    %cst_61 = arith.constant 2.048000e+03 : f32
    %206 = vector.broadcast %cst_61 : f32 to vector<1x1xf32>
    %207 = arith.divf %205, %206 : vector<1x1xf32>
    %208 = vector.broadcast %197 : vector<1x1xf32> to vector<8x256xf32>
    %209 = arith.subf %190, %208 : vector<8x256xf32>
    %cst_62 = arith.constant 9.99999974E-6 : f32
    %210 = vector.broadcast %cst_62 : f32 to vector<1x1xf32>
    %211 = arith.addf %207, %210 : vector<1x1xf32>
    %212 = math.rsqrt %211 : vector<1x1xf32>
    %213 = vector.broadcast %212 : vector<1x1xf32> to vector<8x256xf32>
    %214 = arith.mulf %209, %213 : vector<8x256xf32>
    %215 = arith.mulf %214, %0 : vector<8x256xf32>
    %216 = arith.addf %215, %1 : vector<8x256xf32>
    %c1_63 = arith.constant 1 : index
    %c16_64 = arith.constant 16 : index
    %c0_65 = arith.constant 0 : index
    %217 = vector.load %arg5[%c1_63, %c16_64, %c0_65] : memref<8x32x256xf32, #tpu.memory_space<vmem>>, vector<1x8x256xf32>
    %218 = vector.shape_cast %217 : vector<1x8x256xf32> to vector<8x256xf32>
    %219 = vector.shape_cast %216 : vector<8x256xf32> to vector<1x8x256xf32>
    tpu.vector_store %arg5[%c1_63, %c16_64, %c0_65], %219 {strides = array<i32>} : memref<8x32x256xf32, #tpu.memory_space<vmem>>, vector<1x8x256xf32>,
    %220 = vector.extract_strided_slice %129 {offsets = [24, 0], sizes = [8, 256], strides = [1, 1]} : vector<32x256xf32> to vector<8x256xf32>
    %221 = vector.shape_cast %220 : vector<8x256xf32> to vector<1x8x256xf32>
    %cst_66 = arith.constant dense<0.000000e+00> : vector<1xf32>
    %222 = vector.multi_reduction <add>, %221, %cst_66 [1, 2] : vector<1x8x256xf32> to vector<1xf32>
    %223 = vector.shape_cast %222 : vector<1xf32> to vector<1x1x1xf32>
    %224 = vector.extract %223[0, 0, 0] : f32 from vector<1x1x1xf32>
    %225 = vector.broadcast %224 : f32 to vector<1x1xf32>
    %cst_67 = arith.constant 2.048000e+03 : f32
    %226 = vector.broadcast %cst_67 : f32 to vector<1x1xf32>
    %227 = arith.divf %225, %226 : vector<1x1xf32>
    %228 = vector.broadcast %227 : vector<1x1xf32> to vector<8x256xf32>
    %229 = arith.subf %220, %228 : vector<8x256xf32>
    %230 = arith.mulf %229, %229 : vector<8x256xf32>
    %231 = vector.shape_cast %230 : vector<8x256xf32> to vector<1x8x256xf32>
    %cst_68 = arith.constant dense<0.000000e+00> : vector<1xf32>
    %232 = vector.multi_reduction <add>, %231, %cst_68 [1, 2] : vector<1x8x256xf32> to vector<1xf32>
    %233 = vector.shape_cast %232 : vector<1xf32> to vector<1x1x1xf32>
    %234 = vector.extract %233[0, 0, 0] : f32 from vector<1x1x1xf32>
    %235 = vector.broadcast %234 : f32 to vector<1x1xf32>
    %cst_69 = arith.constant 2.048000e+03 : f32
    %236 = vector.broadcast %cst_69 : f32 to vector<1x1xf32>
    %237 = arith.divf %235, %236 : vector<1x1xf32>
    %238 = vector.broadcast %227 : vector<1x1xf32> to vector<8x256xf32>
    %239 = arith.subf %220, %238 : vector<8x256xf32>
    %cst_70 = arith.constant 9.99999974E-6 : f32
    %240 = vector.broadcast %cst_70 : f32 to vector<1x1xf32>
    %241 = arith.addf %237, %240 : vector<1x1xf32>
    %242 = math.rsqrt %241 : vector<1x1xf32>
    %243 = vector.broadcast %242 : vector<1x1xf32> to vector<8x256xf32>
    %244 = arith.mulf %239, %243 : vector<8x256xf32>
    %245 = arith.mulf %244, %0 : vector<8x256xf32>
    %246 = arith.addf %245, %1 : vector<8x256xf32>
    %c1_71 = arith.constant 1 : index
    %c24_72 = arith.constant 24 : index
    %c0_73 = arith.constant 0 : index
    %247 = vector.load %arg5[%c1_71, %c24_72, %c0_73] : memref<8x32x256xf32, #tpu.memory_space<vmem>>, vector<1x8x256xf32>
    %248 = vector.shape_cast %247 : vector<1x8x256xf32> to vector<8x256xf32>
    %249 = vector.shape_cast %246 : vector<8x256xf32> to vector<1x8x256xf32>
    tpu.vector_store %arg5[%c1_71, %c24_72, %c0_73], %249 {strides = array<i32>} : memref<8x32x256xf32, #tpu.memory_space<vmem>>, vector<1x8x256xf32>,
    %c0_74 = arith.constant 0 : index
    %c0_75 = arith.constant 0 : index
    %250 = vector.load %arg2[%c0_74, %c0_75] : memref<32x32xf32, #tpu.memory_space<vmem>>, vector<32x32xf32>
    %c2 = arith.constant 2 : index
    %c0_76 = arith.constant 0 : index
    %c0_77 = arith.constant 0 : index
    %251 = vector.load %arg1[%c2, %c0_76, %c0_77] : memref<8x32x256xf32, #tpu.memory_space<vmem>>, vector<1x32x256xf32>
    %252 = vector.shape_cast %251 : vector<1x32x256xf32> to vector<32x256xf32>
    %cst_78 = arith.constant dense<0.000000e+00> : vector<32x256xf32>
    %253 = tpu.matmul %250, %252, %cst_78 {dimension_numbers = #tpu.dot_dimension_numbers<[1], [0], [0], [1], [0, 0, 1, 1], [], []>} : vector<32x32xf32>, vector<32x256xf32>, vector<32x256xf32> -> vector<32x256xf32>
    %254 = vector.extract_strided_slice %253 {offsets = [0, 0], sizes = [8, 256], strides = [1, 1]} : vector<32x256xf32> to vector<8x256xf32>
    %255 = vector.shape_cast %254 : vector<8x256xf32> to vector<1x8x256xf32>
    %cst_79 = arith.constant dense<0.000000e+00> : vector<1xf32>
    %256 = vector.multi_reduction <add>, %255, %cst_79 [1, 2] : vector<1x8x256xf32> to vector<1xf32>
    %257 = vector.shape_cast %256 : vector<1xf32> to vector<1x1x1xf32>
    %258 = vector.extract %257[0, 0, 0] : f32 from vector<1x1x1xf32>
    %259 = vector.broadcast %258 : f32 to vector<1x1xf32>
    %cst_80 = arith.constant 2.048000e+03 : f32
    %260 = vector.broadcast %cst_80 : f32 to vector<1x1xf32>
    %261 = arith.divf %259, %260 : vector<1x1xf32>
    %262 = vector.broadcast %261 : vector<1x1xf32> to vector<8x256xf32>
    %263 = arith.subf %254, %262 : vector<8x256xf32>
    %264 = arith.mulf %263, %263 : vector<8x256xf32>
    %265 = vector.shape_cast %264 : vector<8x256xf32> to vector<1x8x256xf32>
    %cst_81 = arith.constant dense<0.000000e+00> : vector<1xf32>
    %266 = vector.multi_reduction <add>, %265, %cst_81 [1, 2] : vector<1x8x256xf32> to vector<1xf32>
    %267 = vector.shape_cast %266 : vector<1xf32> to vector<1x1x1xf32>
    %268 = vector.extract %267[0, 0, 0] : f32 from vector<1x1x1xf32>
    %269 = vector.broadcast %268 : f32 to vector<1x1xf32>
    %cst_82 = arith.constant 2.048000e+03 : f32
    %270 = vector.broadcast %cst_82 : f32 to vector<1x1xf32>
    %271 = arith.divf %269, %270 : vector<1x1xf32>
    %272 = vector.broadcast %261 : vector<1x1xf32> to vector<8x256xf32>
    %273 = arith.subf %254, %272 : vector<8x256xf32>
    %cst_83 = arith.constant 9.99999974E-6 : f32
    %274 = vector.broadcast %cst_83 : f32 to vector<1x1xf32>
    %275 = arith.addf %271, %274 : vector<1x1xf32>
    %276 = math.rsqrt %275 : vector<1x1xf32>
    %277 = vector.broadcast %276 : vector<1x1xf32> to vector<8x256xf32>
    %278 = arith.mulf %273, %277 : vector<8x256xf32>
    %279 = arith.mulf %278, %0 : vector<8x256xf32>
    %280 = arith.addf %279, %1 : vector<8x256xf32>
    %c2_84 = arith.constant 2 : index
    %c0_85 = arith.constant 0 : index
    %c0_86 = arith.constant 0 : index
    %281 = vector.load %arg5[%c2_84, %c0_85, %c0_86] : memref<8x32x256xf32, #tpu.memory_space<vmem>>, vector<1x8x256xf32>
    %282 = vector.shape_cast %281 : vector<1x8x256xf32> to vector<8x256xf32>
    %283 = vector.shape_cast %280 : vector<8x256xf32> to vector<1x8x256xf32>
    tpu.vector_store %arg5[%c2_84, %c0_85, %c0_86], %283 {strides = array<i32>} : memref<8x32x256xf32, #tpu.memory_space<vmem>>, vector<1x8x256xf32>,
    %284 = vector.extract_strided_slice %253 {offsets = [8, 0], sizes = [8, 256], strides = [1, 1]} : vector<32x256xf32> to vector<8x256xf32>
    %285 = vector.shape_cast %284 : vector<8x256xf32> to vector<1x8x256xf32>
    %cst_87 = arith.constant dense<0.000000e+00> : vector<1xf32>
    %286 = vector.multi_reduction <add>, %285, %cst_87 [1, 2] : vector<1x8x256xf32> to vector<1xf32>
    %287 = vector.shape_cast %286 : vector<1xf32> to vector<1x1x1xf32>
    %288 = vector.extract %287[0, 0, 0] : f32 from vector<1x1x1xf32>
    %289 = vector.broadcast %288 : f32 to vector<1x1xf32>
    %cst_88 = arith.constant 2.048000e+03 : f32
    %290 = vector.broadcast %cst_88 : f32 to vector<1x1xf32>
    %291 = arith.divf %289, %290 : vector<1x1xf32>
    %292 = vector.broadcast %291 : vector<1x1xf32> to vector<8x256xf32>
    %293 = arith.subf %284, %292 : vector<8x256xf32>
    %294 = arith.mulf %293, %293 : vector<8x256xf32>
    %295 = vector.shape_cast %294 : vector<8x256xf32> to vector<1x8x256xf32>
    %cst_89 = arith.constant dense<0.000000e+00> : vector<1xf32>
    %296 = vector.multi_reduction <add>, %295, %cst_89 [1, 2] : vector<1x8x256xf32> to vector<1xf32>
    %297 = vector.shape_cast %296 : vector<1xf32> to vector<1x1x1xf32>
    %298 = vector.extract %297[0, 0, 0] : f32 from vector<1x1x1xf32>
    %299 = vector.broadcast %298 : f32 to vector<1x1xf32>
    %cst_90 = arith.constant 2.048000e+03 : f32
    %300 = vector.broadcast %cst_90 : f32 to vector<1x1xf32>
    %301 = arith.divf %299, %300 : vector<1x1xf32>
    %302 = vector.broadcast %291 : vector<1x1xf32> to vector<8x256xf32>
    %303 = arith.subf %284, %302 : vector<8x256xf32>
    %cst_91 = arith.constant 9.99999974E-6 : f32
    %304 = vector.broadcast %cst_91 : f32 to vector<1x1xf32>
    %305 = arith.addf %301, %304 : vector<1x1xf32>
    %306 = math.rsqrt %305 : vector<1x1xf32>
    %307 = vector.broadcast %306 : vector<1x1xf32> to vector<8x256xf32>
    %308 = arith.mulf %303, %307 : vector<8x256xf32>
    %309 = arith.mulf %308, %0 : vector<8x256xf32>
    %310 = arith.addf %309, %1 : vector<8x256xf32>
    %c2_92 = arith.constant 2 : index
    %c8_93 = arith.constant 8 : index
    %c0_94 = arith.constant 0 : index
    %311 = vector.load %arg5[%c2_92, %c8_93, %c0_94] : memref<8x32x256xf32, #tpu.memory_space<vmem>>, vector<1x8x256xf32>
    %312 = vector.shape_cast %311 : vector<1x8x256xf32> to vector<8x256xf32>
    %313 = vector.shape_cast %310 : vector<8x256xf32> to vector<1x8x256xf32>
    tpu.vector_store %arg5[%c2_92, %c8_93, %c0_94], %313 {strides = array<i32>} : memref<8x32x256xf32, #tpu.memory_space<vmem>>, vector<1x8x256xf32>,
    %314 = vector.extract_strided_slice %253 {offsets = [16, 0], sizes = [8, 256], strides = [1, 1]} : vector<32x256xf32> to vector<8x256xf32>
    %315 = vector.shape_cast %314 : vector<8x256xf32> to vector<1x8x256xf32>
    %cst_95 = arith.constant dense<0.000000e+00> : vector<1xf32>
    %316 = vector.multi_reduction <add>, %315, %cst_95 [1, 2] : vector<1x8x256xf32> to vector<1xf32>
    %317 = vector.shape_cast %316 : vector<1xf32> to vector<1x1x1xf32>
    %318 = vector.extract %317[0, 0, 0] : f32 from vector<1x1x1xf32>
    %319 = vector.broadcast %318 : f32 to vector<1x1xf32>
    %cst_96 = arith.constant 2.048000e+03 : f32
    %320 = vector.broadcast %cst_96 : f32 to vector<1x1xf32>
    %321 = arith.divf %319, %320 : vector<1x1xf32>
    %322 = vector.broadcast %321 : vector<1x1xf32> to vector<8x256xf32>
    %323 = arith.subf %314, %322 : vector<8x256xf32>
    %324 = arith.mulf %323, %323 : vector<8x256xf32>
    %325 = vector.shape_cast %324 : vector<8x256xf32> to vector<1x8x256xf32>
    %cst_97 = arith.constant dense<0.000000e+00> : vector<1xf32>
    %326 = vector.multi_reduction <add>, %325, %cst_97 [1, 2] : vector<1x8x256xf32> to vector<1xf32>
    %327 = vector.shape_cast %326 : vector<1xf32> to vector<1x1x1xf32>
    %328 = vector.extract %327[0, 0, 0] : f32 from vector<1x1x1xf32>
    %329 = vector.broadcast %328 : f32 to vector<1x1xf32>
    %cst_98 = arith.constant 2.048000e+03 : f32
    %330 = vector.broadcast %cst_98 : f32 to vector<1x1xf32>
    %331 = arith.divf %329, %330 : vector<1x1xf32>
    %332 = vector.broadcast %321 : vector<1x1xf32> to vector<8x256xf32>
    %333 = arith.subf %314, %332 : vector<8x256xf32>
    %cst_99 = arith.constant 9.99999974E-6 : f32
    %334 = vector.broadcast %cst_99 : f32 to vector<1x1xf32>
    %335 = arith.addf %331, %334 : vector<1x1xf32>
    %336 = math.rsqrt %335 : vector<1x1xf32>
    %337 = vector.broadcast %336 : vector<1x1xf32> to vector<8x256xf32>
    %338 = arith.mulf %333, %337 : vector<8x256xf32>
    %339 = arith.mulf %338, %0 : vector<8x256xf32>
    %340 = arith.addf %339, %1 : vector<8x256xf32>
    %c2_100 = arith.constant 2 : index
    %c16_101 = arith.constant 16 : index
    %c0_102 = arith.constant 0 : index
    %341 = vector.load %arg5[%c2_100, %c16_101, %c0_102] : memref<8x32x256xf32, #tpu.memory_space<vmem>>, vector<1x8x256xf32>
    %342 = vector.shape_cast %341 : vector<1x8x256xf32> to vector<8x256xf32>
    %343 = vector.shape_cast %340 : vector<8x256xf32> to vector<1x8x256xf32>
    tpu.vector_store %arg5[%c2_100, %c16_101, %c0_102], %343 {strides = array<i32>} : memref<8x32x256xf32, #tpu.memory_space<vmem>>, vector<1x8x256xf32>,
    %344 = vector.extract_strided_slice %253 {offsets = [24, 0], sizes = [8, 256], strides = [1, 1]} : vector<32x256xf32> to vector<8x256xf32>
    %345 = vector.shape_cast %344 : vector<8x256xf32> to vector<1x8x256xf32>
    %cst_103 = arith.constant dense<0.000000e+00> : vector<1xf32>
    %346 = vector.multi_reduction <add>, %345, %cst_103 [1, 2] : vector<1x8x256xf32> to vector<1xf32>
    %347 = vector.shape_cast %346 : vector<1xf32> to vector<1x1x1xf32>
    %348 = vector.extract %347[0, 0, 0] : f32 from vector<1x1x1xf32>
    %349 = vector.broadcast %348 : f32 to vector<1x1xf32>
    %cst_104 = arith.constant 2.048000e+03 : f32
    %350 = vector.broadcast %cst_104 : f32 to vector<1x1xf32>
    %351 = arith.divf %349, %350 : vector<1x1xf32>
    %352 = vector.broadcast %351 : vector<1x1xf32> to vector<8x256xf32>
    %353 = arith.subf %344, %352 : vector<8x256xf32>
    %354 = arith.mulf %353, %353 : vector<8x256xf32>
    %355 = vector.shape_cast %354 : vector<8x256xf32> to vector<1x8x256xf32>
    %cst_105 = arith.constant dense<0.000000e+00> : vector<1xf32>
    %356 = vector.multi_reduction <add>, %355, %cst_105 [1, 2] : vector<1x8x256xf32> to vector<1xf32>
    %357 = vector.shape_cast %356 : vector<1xf32> to vector<1x1x1xf32>
    %358 = vector.extract %357[0, 0, 0] : f32 from vector<1x1x1xf32>
    %359 = vector.broadcast %358 : f32 to vector<1x1xf32>
    %cst_106 = arith.constant 2.048000e+03 : f32
    %360 = vector.broadcast %cst_106 : f32 to vector<1x1xf32>
    %361 = arith.divf %359, %360 : vector<1x1xf32>
    %362 = vector.broadcast %351 : vector<1x1xf32> to vector<8x256xf32>
    %363 = arith.subf %344, %362 : vector<8x256xf32>
    %cst_107 = arith.constant 9.99999974E-6 : f32
    %364 = vector.broadcast %cst_107 : f32 to vector<1x1xf32>
    %365 = arith.addf %361, %364 : vector<1x1xf32>
    %366 = math.rsqrt %365 : vector<1x1xf32>
    %367 = vector.broadcast %366 : vector<1x1xf32> to vector<8x256xf32>
    %368 = arith.mulf %363, %367 : vector<8x256xf32>
    %369 = arith.mulf %368, %0 : vector<8x256xf32>
    %370 = arith.addf %369, %1 : vector<8x256xf32>
    %c2_108 = arith.constant 2 : index
    %c24_109 = arith.constant 24 : index
    %c0_110 = arith.constant 0 : index
    %371 = vector.load %arg5[%c2_108, %c24_109, %c0_110] : memref<8x32x256xf32, #tpu.memory_space<vmem>>, vector<1x8x256xf32>
    %372 = vector.shape_cast %371 : vector<1x8x256xf32> to vector<8x256xf32>
    %373 = vector.shape_cast %370 : vector<8x256xf32> to vector<1x8x256xf32>
    tpu.vector_store %arg5[%c2_108, %c24_109, %c0_110], %373 {strides = array<i32>} : memref<8x32x256xf32, #tpu.memory_space<vmem>>, vector<1x8x256xf32>,
    %c0_111 = arith.constant 0 : index
    %c0_112 = arith.constant 0 : index
    %374 = vector.load %arg2[%c0_111, %c0_112] : memref<32x32xf32, #tpu.memory_space<vmem>>, vector<32x32xf32>
    %c3 = arith.constant 3 : index
    %c0_113 = arith.constant 0 : index
    %c0_114 = arith.constant 0 : index
    %375 = vector.load %arg1[%c3, %c0_113, %c0_114] : memref<8x32x256xf32, #tpu.memory_space<vmem>>, vector<1x32x256xf32>
    %376 = vector.shape_cast %375 : vector<1x32x256xf32> to vector<32x256xf32>
    %cst_115 = arith.constant dense<0.000000e+00> : vector<32x256xf32>
    %377 = tpu.matmul %374, %376, %cst_115 {dimension_numbers = #tpu.dot_dimension_numbers<[1], [0], [0], [1], [0, 0, 1, 1], [], []>} : vector<32x32xf32>, vector<32x256xf32>, vector<32x256xf32> -> vector<32x256xf32>
    %378 = vector.extract_strided_slice %377 {offsets = [0, 0], sizes = [8, 256], strides = [1, 1]} : vector<32x256xf32> to vector<8x256xf32>
    %379 = vector.shape_cast %378 : vector<8x256xf32> to vector<1x8x256xf32>
    %cst_116 = arith.constant dense<0.000000e+00> : vector<1xf32>
    %380 = vector.multi_reduction <add>, %379, %cst_116 [1, 2] : vector<1x8x256xf32> to vector<1xf32>
    %381 = vector.shape_cast %380 : vector<1xf32> to vector<1x1x1xf32>
    %382 = vector.extract %381[0, 0, 0] : f32 from vector<1x1x1xf32>
    %383 = vector.broadcast %382 : f32 to vector<1x1xf32>
    %cst_117 = arith.constant 2.048000e+03 : f32
    %384 = vector.broadcast %cst_117 : f32 to vector<1x1xf32>
    %385 = arith.divf %383, %384 : vector<1x1xf32>
    %386 = vector.broadcast %385 : vector<1x1xf32> to vector<8x256xf32>
    %387 = arith.subf %378, %386 : vector<8x256xf32>
    %388 = arith.mulf %387, %387 : vector<8x256xf32>
    %389 = vector.shape_cast %388 : vector<8x256xf32> to vector<1x8x256xf32>
    %cst_118 = arith.constant dense<0.000000e+00> : vector<1xf32>
    %390 = vector.multi_reduction <add>, %389, %cst_118 [1, 2] : vector<1x8x256xf32> to vector<1xf32>
    %391 = vector.shape_cast %390 : vector<1xf32> to vector<1x1x1xf32>
    %392 = vector.extract %391[0, 0, 0] : f32 from vector<1x1x1xf32>
    %393 = vector.broadcast %392 : f32 to vector<1x1xf32>
    %cst_119 = arith.constant 2.048000e+03 : f32
    %394 = vector.broadcast %cst_119 : f32 to vector<1x1xf32>
    %395 = arith.divf %393, %394 : vector<1x1xf32>
    %396 = vector.broadcast %385 : vector<1x1xf32> to vector<8x256xf32>
    %397 = arith.subf %378, %396 : vector<8x256xf32>
    %cst_120 = arith.constant 9.99999974E-6 : f32
    %398 = vector.broadcast %cst_120 : f32 to vector<1x1xf32>
    %399 = arith.addf %395, %398 : vector<1x1xf32>
    %400 = math.rsqrt %399 : vector<1x1xf32>
    %401 = vector.broadcast %400 : vector<1x1xf32> to vector<8x256xf32>
    %402 = arith.mulf %397, %401 : vector<8x256xf32>
    %403 = arith.mulf %402, %0 : vector<8x256xf32>
    %404 = arith.addf %403, %1 : vector<8x256xf32>
    %c3_121 = arith.constant 3 : index
    %c0_122 = arith.constant 0 : index
    %c0_123 = arith.constant 0 : index
    %405 = vector.load %arg5[%c3_121, %c0_122, %c0_123] : memref<8x32x256xf32, #tpu.memory_space<vmem>>, vector<1x8x256xf32>
    %406 = vector.shape_cast %405 : vector<1x8x256xf32> to vector<8x256xf32>
    %407 = vector.shape_cast %404 : vector<8x256xf32> to vector<1x8x256xf32>
    tpu.vector_store %arg5[%c3_121, %c0_122, %c0_123], %407 {strides = array<i32>} : memref<8x32x256xf32, #tpu.memory_space<vmem>>, vector<1x8x256xf32>,
    %408 = vector.extract_strided_slice %377 {offsets = [8, 0], sizes = [8, 256], strides = [1, 1]} : vector<32x256xf32> to vector<8x256xf32>
    %409 = vector.shape_cast %408 : vector<8x256xf32> to vector<1x8x256xf32>
    %cst_124 = arith.constant dense<0.000000e+00> : vector<1xf32>
    %410 = vector.multi_reduction <add>, %409, %cst_124 [1, 2] : vector<1x8x256xf32> to vector<1xf32>
    %411 = vector.shape_cast %410 : vector<1xf32> to vector<1x1x1xf32>
    %412 = vector.extract %411[0, 0, 0] : f32 from vector<1x1x1xf32>
    %413 = vector.broadcast %412 : f32 to vector<1x1xf32>
    %cst_125 = arith.constant 2.048000e+03 : f32
    %414 = vector.broadcast %cst_125 : f32 to vector<1x1xf32>
    %415 = arith.divf %413, %414 : vector<1x1xf32>
    %416 = vector.broadcast %415 : vector<1x1xf32> to vector<8x256xf32>
    %417 = arith.subf %408, %416 : vector<8x256xf32>
    %418 = arith.mulf %417, %417 : vector<8x256xf32>
    %419 = vector.shape_cast %418 : vector<8x256xf32> to vector<1x8x256xf32>
    %cst_126 = arith.constant dense<0.000000e+00> : vector<1xf32>
    %420 = vector.multi_reduction <add>, %419, %cst_126 [1, 2] : vector<1x8x256xf32> to vector<1xf32>
    %421 = vector.shape_cast %420 : vector<1xf32> to vector<1x1x1xf32>
    %422 = vector.extract %421[0, 0, 0] : f32 from vector<1x1x1xf32>
    %423 = vector.broadcast %422 : f32 to vector<1x1xf32>
    %cst_127 = arith.constant 2.048000e+03 : f32
    %424 = vector.broadcast %cst_127 : f32 to vector<1x1xf32>
    %425 = arith.divf %423, %424 : vector<1x1xf32>
    %426 = vector.broadcast %415 : vector<1x1xf32> to vector<8x256xf32>
    %427 = arith.subf %408, %426 : vector<8x256xf32>
    %cst_128 = arith.constant 9.99999974E-6 : f32
    %428 = vector.broadcast %cst_128 : f32 to vector<1x1xf32>
    %429 = arith.addf %425, %428 : vector<1x1xf32>
    %430 = math.rsqrt %429 : vector<1x1xf32>
    %431 = vector.broadcast %430 : vector<1x1xf32> to vector<8x256xf32>
    %432 = arith.mulf %427, %431 : vector<8x256xf32>
    %433 = arith.mulf %432, %0 : vector<8x256xf32>
    %434 = arith.addf %433, %1 : vector<8x256xf32>
    %c3_129 = arith.constant 3 : index
    %c8_130 = arith.constant 8 : index
    %c0_131 = arith.constant 0 : index
    %435 = vector.load %arg5[%c3_129, %c8_130, %c0_131] : memref<8x32x256xf32, #tpu.memory_space<vmem>>, vector<1x8x256xf32>
    %436 = vector.shape_cast %435 : vector<1x8x256xf32> to vector<8x256xf32>
    %437 = vector.shape_cast %434 : vector<8x256xf32> to vector<1x8x256xf32>
    tpu.vector_store %arg5[%c3_129, %c8_130, %c0_131], %437 {strides = array<i32>} : memref<8x32x256xf32, #tpu.memory_space<vmem>>, vector<1x8x256xf32>,
    %438 = vector.extract_strided_slice %377 {offsets = [16, 0], sizes = [8, 256], strides = [1, 1]} : vector<32x256xf32> to vector<8x256xf32>
    %439 = vector.shape_cast %438 : vector<8x256xf32> to vector<1x8x256xf32>
    %cst_132 = arith.constant dense<0.000000e+00> : vector<1xf32>
    %440 = vector.multi_reduction <add>, %439, %cst_132 [1, 2] : vector<1x8x256xf32> to vector<1xf32>
    %441 = vector.shape_cast %440 : vector<1xf32> to vector<1x1x1xf32>
    %442 = vector.extract %441[0, 0, 0] : f32 from vector<1x1x1xf32>
    %443 = vector.broadcast %442 : f32 to vector<1x1xf32>
    %cst_133 = arith.constant 2.048000e+03 : f32
    %444 = vector.broadcast %cst_133 : f32 to vector<1x1xf32>
    %445 = arith.divf %443, %444 : vector<1x1xf32>
    %446 = vector.broadcast %445 : vector<1x1xf32> to vector<8x256xf32>
    %447 = arith.subf %438, %446 : vector<8x256xf32>
    %448 = arith.mulf %447, %447 : vector<8x256xf32>
    %449 = vector.shape_cast %448 : vector<8x256xf32> to vector<1x8x256xf32>
    %cst_134 = arith.constant dense<0.000000e+00> : vector<1xf32>
    %450 = vector.multi_reduction <add>, %449, %cst_134 [1, 2] : vector<1x8x256xf32> to vector<1xf32>
    %451 = vector.shape_cast %450 : vector<1xf32> to vector<1x1x1xf32>
    %452 = vector.extract %451[0, 0, 0] : f32 from vector<1x1x1xf32>
    %453 = vector.broadcast %452 : f32 to vector<1x1xf32>
    %cst_135 = arith.constant 2.048000e+03 : f32
    %454 = vector.broadcast %cst_135 : f32 to vector<1x1xf32>
    %455 = arith.divf %453, %454 : vector<1x1xf32>
    %456 = vector.broadcast %445 : vector<1x1xf32> to vector<8x256xf32>
    %457 = arith.subf %438, %456 : vector<8x256xf32>
    %cst_136 = arith.constant 9.99999974E-6 : f32
    %458 = vector.broadcast %cst_136 : f32 to vector<1x1xf32>
    %459 = arith.addf %455, %458 : vector<1x1xf32>
    %460 = math.rsqrt %459 : vector<1x1xf32>
    %461 = vector.broadcast %460 : vector<1x1xf32> to vector<8x256xf32>
    %462 = arith.mulf %457, %461 : vector<8x256xf32>
    %463 = arith.mulf %462, %0 : vector<8x256xf32>
    %464 = arith.addf %463, %1 : vector<8x256xf32>
    %c3_137 = arith.constant 3 : index
    %c16_138 = arith.constant 16 : index
    %c0_139 = arith.constant 0 : index
    %465 = vector.load %arg5[%c3_137, %c16_138, %c0_139] : memref<8x32x256xf32, #tpu.memory_space<vmem>>, vector<1x8x256xf32>
    %466 = vector.shape_cast %465 : vector<1x8x256xf32> to vector<8x256xf32>
    %467 = vector.shape_cast %464 : vector<8x256xf32> to vector<1x8x256xf32>
    tpu.vector_store %arg5[%c3_137, %c16_138, %c0_139], %467 {strides = array<i32>} : memref<8x32x256xf32, #tpu.memory_space<vmem>>, vector<1x8x256xf32>,
    %468 = vector.extract_strided_slice %377 {offsets = [24, 0], sizes = [8, 256], strides = [1, 1]} : vector<32x256xf32> to vector<8x256xf32>
    %469 = vector.shape_cast %468 : vector<8x256xf32> to vector<1x8x256xf32>
    %cst_140 = arith.constant dense<0.000000e+00> : vector<1xf32>
    %470 = vector.multi_reduction <add>, %469, %cst_140 [1, 2] : vector<1x8x256xf32> to vector<1xf32>
    %471 = vector.shape_cast %470 : vector<1xf32> to vector<1x1x1xf32>
    %472 = vector.extract %471[0, 0, 0] : f32 from vector<1x1x1xf32>
    %473 = vector.broadcast %472 : f32 to vector<1x1xf32>
    %cst_141 = arith.constant 2.048000e+03 : f32
    %474 = vector.broadcast %cst_141 : f32 to vector<1x1xf32>
    %475 = arith.divf %473, %474 : vector<1x1xf32>
    %476 = vector.broadcast %475 : vector<1x1xf32> to vector<8x256xf32>
    %477 = arith.subf %468, %476 : vector<8x256xf32>
    %478 = arith.mulf %477, %477 : vector<8x256xf32>
    %479 = vector.shape_cast %478 : vector<8x256xf32> to vector<1x8x256xf32>
    %cst_142 = arith.constant dense<0.000000e+00> : vector<1xf32>
    %480 = vector.multi_reduction <add>, %479, %cst_142 [1, 2] : vector<1x8x256xf32> to vector<1xf32>
    %481 = vector.shape_cast %480 : vector<1xf32> to vector<1x1x1xf32>
    %482 = vector.extract %481[0, 0, 0] : f32 from vector<1x1x1xf32>
    %483 = vector.broadcast %482 : f32 to vector<1x1xf32>
    %cst_143 = arith.constant 2.048000e+03 : f32
    %484 = vector.broadcast %cst_143 : f32 to vector<1x1xf32>
    %485 = arith.divf %483, %484 : vector<1x1xf32>
    %486 = vector.broadcast %475 : vector<1x1xf32> to vector<8x256xf32>
    %487 = arith.subf %468, %486 : vector<8x256xf32>
    %cst_144 = arith.constant 9.99999974E-6 : f32
    %488 = vector.broadcast %cst_144 : f32 to vector<1x1xf32>
    %489 = arith.addf %485, %488 : vector<1x1xf32>
    %490 = math.rsqrt %489 : vector<1x1xf32>
    %491 = vector.broadcast %490 : vector<1x1xf32> to vector<8x256xf32>
    %492 = arith.mulf %487, %491 : vector<8x256xf32>
    %493 = arith.mulf %492, %0 : vector<8x256xf32>
    %494 = arith.addf %493, %1 : vector<8x256xf32>
    %c3_145 = arith.constant 3 : index
    %c24_146 = arith.constant 24 : index
    %c0_147 = arith.constant 0 : index
    %495 = vector.load %arg5[%c3_145, %c24_146, %c0_147] : memref<8x32x256xf32, #tpu.memory_space<vmem>>, vector<1x8x256xf32>
    %496 = vector.shape_cast %495 : vector<1x8x256xf32> to vector<8x256xf32>
    %497 = vector.shape_cast %494 : vector<8x256xf32> to vector<1x8x256xf32>
    tpu.vector_store %arg5[%c3_145, %c24_146, %c0_147], %497 {strides = array<i32>} : memref<8x32x256xf32, #tpu.memory_space<vmem>>, vector<1x8x256xf32>,
    %c0_148 = arith.constant 0 : index
    %c0_149 = arith.constant 0 : index
    %498 = vector.load %arg2[%c0_148, %c0_149] : memref<32x32xf32, #tpu.memory_space<vmem>>, vector<32x32xf32>
    %c4 = arith.constant 4 : index
    %c0_150 = arith.constant 0 : index
    %c0_151 = arith.constant 0 : index
    %499 = vector.load %arg1[%c4, %c0_150, %c0_151] : memref<8x32x256xf32, #tpu.memory_space<vmem>>, vector<1x32x256xf32>
    %500 = vector.shape_cast %499 : vector<1x32x256xf32> to vector<32x256xf32>
    %cst_152 = arith.constant dense<0.000000e+00> : vector<32x256xf32>
    %501 = tpu.matmul %498, %500, %cst_152 {dimension_numbers = #tpu.dot_dimension_numbers<[1], [0], [0], [1], [0, 0, 1, 1], [], []>} : vector<32x32xf32>, vector<32x256xf32>, vector<32x256xf32> -> vector<32x256xf32>
    %502 = vector.extract_strided_slice %501 {offsets = [0, 0], sizes = [8, 256], strides = [1, 1]} : vector<32x256xf32> to vector<8x256xf32>
    %503 = vector.shape_cast %502 : vector<8x256xf32> to vector<1x8x256xf32>
    %cst_153 = arith.constant dense<0.000000e+00> : vector<1xf32>
    %504 = vector.multi_reduction <add>, %503, %cst_153 [1, 2] : vector<1x8x256xf32> to vector<1xf32>
    %505 = vector.shape_cast %504 : vector<1xf32> to vector<1x1x1xf32>
    %506 = vector.extract %505[0, 0, 0] : f32 from vector<1x1x1xf32>
    %507 = vector.broadcast %506 : f32 to vector<1x1xf32>
    %cst_154 = arith.constant 2.048000e+03 : f32
    %508 = vector.broadcast %cst_154 : f32 to vector<1x1xf32>
    %509 = arith.divf %507, %508 : vector<1x1xf32>
    %510 = vector.broadcast %509 : vector<1x1xf32> to vector<8x256xf32>
    %511 = arith.subf %502, %510 : vector<8x256xf32>
    %512 = arith.mulf %511, %511 : vector<8x256xf32>
    %513 = vector.shape_cast %512 : vector<8x256xf32> to vector<1x8x256xf32>
    %cst_155 = arith.constant dense<0.000000e+00> : vector<1xf32>
    %514 = vector.multi_reduction <add>, %513, %cst_155 [1, 2] : vector<1x8x256xf32> to vector<1xf32>
    %515 = vector.shape_cast %514 : vector<1xf32> to vector<1x1x1xf32>
    %516 = vector.extract %515[0, 0, 0] : f32 from vector<1x1x1xf32>
    %517 = vector.broadcast %516 : f32 to vector<1x1xf32>
    %cst_156 = arith.constant 2.048000e+03 : f32
    %518 = vector.broadcast %cst_156 : f32 to vector<1x1xf32>
    %519 = arith.divf %517, %518 : vector<1x1xf32>
    %520 = vector.broadcast %509 : vector<1x1xf32> to vector<8x256xf32>
    %521 = arith.subf %502, %520 : vector<8x256xf32>
    %cst_157 = arith.constant 9.99999974E-6 : f32
    %522 = vector.broadcast %cst_157 : f32 to vector<1x1xf32>
    %523 = arith.addf %519, %522 : vector<1x1xf32>
    %524 = math.rsqrt %523 : vector<1x1xf32>
    %525 = vector.broadcast %524 : vector<1x1xf32> to vector<8x256xf32>
    %526 = arith.mulf %521, %525 : vector<8x256xf32>
    %527 = arith.mulf %526, %0 : vector<8x256xf32>
    %528 = arith.addf %527, %1 : vector<8x256xf32>
    %c4_158 = arith.constant 4 : index
    %c0_159 = arith.constant 0 : index
    %c0_160 = arith.constant 0 : index
    %529 = vector.load %arg5[%c4_158, %c0_159, %c0_160] : memref<8x32x256xf32, #tpu.memory_space<vmem>>, vector<1x8x256xf32>
    %530 = vector.shape_cast %529 : vector<1x8x256xf32> to vector<8x256xf32>
    %531 = vector.shape_cast %528 : vector<8x256xf32> to vector<1x8x256xf32>
    tpu.vector_store %arg5[%c4_158, %c0_159, %c0_160], %531 {strides = array<i32>} : memref<8x32x256xf32, #tpu.memory_space<vmem>>, vector<1x8x256xf32>,
    %532 = vector.extract_strided_slice %501 {offsets = [8, 0], sizes = [8, 256], strides = [1, 1]} : vector<32x256xf32> to vector<8x256xf32>
    %533 = vector.shape_cast %532 : vector<8x256xf32> to vector<1x8x256xf32>
    %cst_161 = arith.constant dense<0.000000e+00> : vector<1xf32>
    %534 = vector.multi_reduction <add>, %533, %cst_161 [1, 2] : vector<1x8x256xf32> to vector<1xf32>
    %535 = vector.shape_cast %534 : vector<1xf32> to vector<1x1x1xf32>
    %536 = vector.extract %535[0, 0, 0] : f32 from vector<1x1x1xf32>
    %537 = vector.broadcast %536 : f32 to vector<1x1xf32>
    %cst_162 = arith.constant 2.048000e+03 : f32
    %538 = vector.broadcast %cst_162 : f32 to vector<1x1xf32>
    %539 = arith.divf %537, %538 : vector<1x1xf32>
    %540 = vector.broadcast %539 : vector<1x1xf32> to vector<8x256xf32>
    %541 = arith.subf %532, %540 : vector<8x256xf32>
    %542 = arith.mulf %541, %541 : vector<8x256xf32>
    %543 = vector.shape_cast %542 : vector<8x256xf32> to vector<1x8x256xf32>
    %cst_163 = arith.constant dense<0.000000e+00> : vector<1xf32>
    %544 = vector.multi_reduction <add>, %543, %cst_163 [1, 2] : vector<1x8x256xf32> to vector<1xf32>
    %545 = vector.shape_cast %544 : vector<1xf32> to vector<1x1x1xf32>
    %546 = vector.extract %545[0, 0, 0] : f32 from vector<1x1x1xf32>
    %547 = vector.broadcast %546 : f32 to vector<1x1xf32>
    %cst_164 = arith.constant 2.048000e+03 : f32
    %548 = vector.broadcast %cst_164 : f32 to vector<1x1xf32>
    %549 = arith.divf %547, %548 : vector<1x1xf32>
    %550 = vector.broadcast %539 : vector<1x1xf32> to vector<8x256xf32>
    %551 = arith.subf %532, %550 : vector<8x256xf32>
    %cst_165 = arith.constant 9.99999974E-6 : f32
    %552 = vector.broadcast %cst_165 : f32 to vector<1x1xf32>
    %553 = arith.addf %549, %552 : vector<1x1xf32>
    %554 = math.rsqrt %553 : vector<1x1xf32>
    %555 = vector.broadcast %554 : vector<1x1xf32> to vector<8x256xf32>
    %556 = arith.mulf %551, %555 : vector<8x256xf32>
    %557 = arith.mulf %556, %0 : vector<8x256xf32>
    %558 = arith.addf %557, %1 : vector<8x256xf32>
    %c4_166 = arith.constant 4 : index
    %c8_167 = arith.constant 8 : index
    %c0_168 = arith.constant 0 : index
    %559 = vector.load %arg5[%c4_166, %c8_167, %c0_168] : memref<8x32x256xf32, #tpu.memory_space<vmem>>, vector<1x8x256xf32>
    %560 = vector.shape_cast %559 : vector<1x8x256xf32> to vector<8x256xf32>
    %561 = vector.shape_cast %558 : vector<8x256xf32> to vector<1x8x256xf32>
    tpu.vector_store %arg5[%c4_166, %c8_167, %c0_168], %561 {strides = array<i32>} : memref<8x32x256xf32, #tpu.memory_space<vmem>>, vector<1x8x256xf32>,
    %562 = vector.extract_strided_slice %501 {offsets = [16, 0], sizes = [8, 256], strides = [1, 1]} : vector<32x256xf32> to vector<8x256xf32>
    %563 = vector.shape_cast %562 : vector<8x256xf32> to vector<1x8x256xf32>
    %cst_169 = arith.constant dense<0.000000e+00> : vector<1xf32>
    %564 = vector.multi_reduction <add>, %563, %cst_169 [1, 2] : vector<1x8x256xf32> to vector<1xf32>
    %565 = vector.shape_cast %564 : vector<1xf32> to vector<1x1x1xf32>
    %566 = vector.extract %565[0, 0, 0] : f32 from vector<1x1x1xf32>
    %567 = vector.broadcast %566 : f32 to vector<1x1xf32>
    %cst_170 = arith.constant 2.048000e+03 : f32
    %568 = vector.broadcast %cst_170 : f32 to vector<1x1xf32>
    %569 = arith.divf %567, %568 : vector<1x1xf32>
    %570 = vector.broadcast %569 : vector<1x1xf32> to vector<8x256xf32>
    %571 = arith.subf %562, %570 : vector<8x256xf32>
    %572 = arith.mulf %571, %571 : vector<8x256xf32>
    %573 = vector.shape_cast %572 : vector<8x256xf32> to vector<1x8x256xf32>
    %cst_171 = arith.constant dense<0.000000e+00> : vector<1xf32>
    %574 = vector.multi_reduction <add>, %573, %cst_171 [1, 2] : vector<1x8x256xf32> to vector<1xf32>
    %575 = vector.shape_cast %574 : vector<1xf32> to vector<1x1x1xf32>
    %576 = vector.extract %575[0, 0, 0] : f32 from vector<1x1x1xf32>
    %577 = vector.broadcast %576 : f32 to vector<1x1xf32>
    %cst_172 = arith.constant 2.048000e+03 : f32
    %578 = vector.broadcast %cst_172 : f32 to vector<1x1xf32>
    %579 = arith.divf %577, %578 : vector<1x1xf32>
    %580 = vector.broadcast %569 : vector<1x1xf32> to vector<8x256xf32>
    %581 = arith.subf %562, %580 : vector<8x256xf32>
    %cst_173 = arith.constant 9.99999974E-6 : f32
    %582 = vector.broadcast %cst_173 : f32 to vector<1x1xf32>
    %583 = arith.addf %579, %582 : vector<1x1xf32>
    %584 = math.rsqrt %583 : vector<1x1xf32>
    %585 = vector.broadcast %584 : vector<1x1xf32> to vector<8x256xf32>
    %586 = arith.mulf %581, %585 : vector<8x256xf32>
    %587 = arith.mulf %586, %0 : vector<8x256xf32>
    %588 = arith.addf %587, %1 : vector<8x256xf32>
    %c4_174 = arith.constant 4 : index
    %c16_175 = arith.constant 16 : index
    %c0_176 = arith.constant 0 : index
    %589 = vector.load %arg5[%c4_174, %c16_175, %c0_176] : memref<8x32x256xf32, #tpu.memory_space<vmem>>, vector<1x8x256xf32>
    %590 = vector.shape_cast %589 : vector<1x8x256xf32> to vector<8x256xf32>
    %591 = vector.shape_cast %588 : vector<8x256xf32> to vector<1x8x256xf32>
    tpu.vector_store %arg5[%c4_174, %c16_175, %c0_176], %591 {strides = array<i32>} : memref<8x32x256xf32, #tpu.memory_space<vmem>>, vector<1x8x256xf32>,
    %592 = vector.extract_strided_slice %501 {offsets = [24, 0], sizes = [8, 256], strides = [1, 1]} : vector<32x256xf32> to vector<8x256xf32>
    %593 = vector.shape_cast %592 : vector<8x256xf32> to vector<1x8x256xf32>
    %cst_177 = arith.constant dense<0.000000e+00> : vector<1xf32>
    %594 = vector.multi_reduction <add>, %593, %cst_177 [1, 2] : vector<1x8x256xf32> to vector<1xf32>
    %595 = vector.shape_cast %594 : vector<1xf32> to vector<1x1x1xf32>
    %596 = vector.extract %595[0, 0, 0] : f32 from vector<1x1x1xf32>
    %597 = vector.broadcast %596 : f32 to vector<1x1xf32>
    %cst_178 = arith.constant 2.048000e+03 : f32
    %598 = vector.broadcast %cst_178 : f32 to vector<1x1xf32>
    %599 = arith.divf %597, %598 : vector<1x1xf32>
    %600 = vector.broadcast %599 : vector<1x1xf32> to vector<8x256xf32>
    %601 = arith.subf %592, %600 : vector<8x256xf32>
    %602 = arith.mulf %601, %601 : vector<8x256xf32>
    %603 = vector.shape_cast %602 : vector<8x256xf32> to vector<1x8x256xf32>
    %cst_179 = arith.constant dense<0.000000e+00> : vector<1xf32>
    %604 = vector.multi_reduction <add>, %603, %cst_179 [1, 2] : vector<1x8x256xf32> to vector<1xf32>
    %605 = vector.shape_cast %604 : vector<1xf32> to vector<1x1x1xf32>
    %606 = vector.extract %605[0, 0, 0] : f32 from vector<1x1x1xf32>
    %607 = vector.broadcast %606 : f32 to vector<1x1xf32>
    %cst_180 = arith.constant 2.048000e+03 : f32
    %608 = vector.broadcast %cst_180 : f32 to vector<1x1xf32>
    %609 = arith.divf %607, %608 : vector<1x1xf32>
    %610 = vector.broadcast %599 : vector<1x1xf32> to vector<8x256xf32>
    %611 = arith.subf %592, %610 : vector<8x256xf32>
    %cst_181 = arith.constant 9.99999974E-6 : f32
    %612 = vector.broadcast %cst_181 : f32 to vector<1x1xf32>
    %613 = arith.addf %609, %612 : vector<1x1xf32>
    %614 = math.rsqrt %613 : vector<1x1xf32>
    %615 = vector.broadcast %614 : vector<1x1xf32> to vector<8x256xf32>
    %616 = arith.mulf %611, %615 : vector<8x256xf32>
    %617 = arith.mulf %616, %0 : vector<8x256xf32>
    %618 = arith.addf %617, %1 : vector<8x256xf32>
    %c4_182 = arith.constant 4 : index
    %c24_183 = arith.constant 24 : index
    %c0_184 = arith.constant 0 : index
    %619 = vector.load %arg5[%c4_182, %c24_183, %c0_184] : memref<8x32x256xf32, #tpu.memory_space<vmem>>, vector<1x8x256xf32>
    %620 = vector.shape_cast %619 : vector<1x8x256xf32> to vector<8x256xf32>
    %621 = vector.shape_cast %618 : vector<8x256xf32> to vector<1x8x256xf32>
    tpu.vector_store %arg5[%c4_182, %c24_183, %c0_184], %621 {strides = array<i32>} : memref<8x32x256xf32, #tpu.memory_space<vmem>>, vector<1x8x256xf32>,
    %c0_185 = arith.constant 0 : index
    %c0_186 = arith.constant 0 : index
    %622 = vector.load %arg2[%c0_185, %c0_186] : memref<32x32xf32, #tpu.memory_space<vmem>>, vector<32x32xf32>
    %c5 = arith.constant 5 : index
    %c0_187 = arith.constant 0 : index
    %c0_188 = arith.constant 0 : index
    %623 = vector.load %arg1[%c5, %c0_187, %c0_188] : memref<8x32x256xf32, #tpu.memory_space<vmem>>, vector<1x32x256xf32>
    %624 = vector.shape_cast %623 : vector<1x32x256xf32> to vector<32x256xf32>
    %cst_189 = arith.constant dense<0.000000e+00> : vector<32x256xf32>
    %625 = tpu.matmul %622, %624, %cst_189 {dimension_numbers = #tpu.dot_dimension_numbers<[1], [0], [0], [1], [0, 0, 1, 1], [], []>} : vector<32x32xf32>, vector<32x256xf32>, vector<32x256xf32> -> vector<32x256xf32>
    %626 = vector.extract_strided_slice %625 {offsets = [0, 0], sizes = [8, 256], strides = [1, 1]} : vector<32x256xf32> to vector<8x256xf32>
    %627 = vector.shape_cast %626 : vector<8x256xf32> to vector<1x8x256xf32>
    %cst_190 = arith.constant dense<0.000000e+00> : vector<1xf32>
    %628 = vector.multi_reduction <add>, %627, %cst_190 [1, 2] : vector<1x8x256xf32> to vector<1xf32>
    %629 = vector.shape_cast %628 : vector<1xf32> to vector<1x1x1xf32>
    %630 = vector.extract %629[0, 0, 0] : f32 from vector<1x1x1xf32>
    %631 = vector.broadcast %630 : f32 to vector<1x1xf32>
    %cst_191 = arith.constant 2.048000e+03 : f32
    %632 = vector.broadcast %cst_191 : f32 to vector<1x1xf32>
    %633 = arith.divf %631, %632 : vector<1x1xf32>
    %634 = vector.broadcast %633 : vector<1x1xf32> to vector<8x256xf32>
    %635 = arith.subf %626, %634 : vector<8x256xf32>
    %636 = arith.mulf %635, %635 : vector<8x256xf32>
    %637 = vector.shape_cast %636 : vector<8x256xf32> to vector<1x8x256xf32>
    %cst_192 = arith.constant dense<0.000000e+00> : vector<1xf32>
    %638 = vector.multi_reduction <add>, %637, %cst_192 [1, 2] : vector<1x8x256xf32> to vector<1xf32>
    %639 = vector.shape_cast %638 : vector<1xf32> to vector<1x1x1xf32>
    %640 = vector.extract %639[0, 0, 0] : f32 from vector<1x1x1xf32>
    %641 = vector.broadcast %640 : f32 to vector<1x1xf32>
    %cst_193 = arith.constant 2.048000e+03 : f32
    %642 = vector.broadcast %cst_193 : f32 to vector<1x1xf32>
    %643 = arith.divf %641, %642 : vector<1x1xf32>
    %644 = vector.broadcast %633 : vector<1x1xf32> to vector<8x256xf32>
    %645 = arith.subf %626, %644 : vector<8x256xf32>
    %cst_194 = arith.constant 9.99999974E-6 : f32
    %646 = vector.broadcast %cst_194 : f32 to vector<1x1xf32>
    %647 = arith.addf %643, %646 : vector<1x1xf32>
    %648 = math.rsqrt %647 : vector<1x1xf32>
    %649 = vector.broadcast %648 : vector<1x1xf32> to vector<8x256xf32>
    %650 = arith.mulf %645, %649 : vector<8x256xf32>
    %651 = arith.mulf %650, %0 : vector<8x256xf32>
    %652 = arith.addf %651, %1 : vector<8x256xf32>
    %c5_195 = arith.constant 5 : index
    %c0_196 = arith.constant 0 : index
    %c0_197 = arith.constant 0 : index
    %653 = vector.load %arg5[%c5_195, %c0_196, %c0_197] : memref<8x32x256xf32, #tpu.memory_space<vmem>>, vector<1x8x256xf32>
    %654 = vector.shape_cast %653 : vector<1x8x256xf32> to vector<8x256xf32>
    %655 = vector.shape_cast %652 : vector<8x256xf32> to vector<1x8x256xf32>
    tpu.vector_store %arg5[%c5_195, %c0_196, %c0_197], %655 {strides = array<i32>} : memref<8x32x256xf32, #tpu.memory_space<vmem>>, vector<1x8x256xf32>,
    %656 = vector.extract_strided_slice %625 {offsets = [8, 0], sizes = [8, 256], strides = [1, 1]} : vector<32x256xf32> to vector<8x256xf32>
    %657 = vector.shape_cast %656 : vector<8x256xf32> to vector<1x8x256xf32>
    %cst_198 = arith.constant dense<0.000000e+00> : vector<1xf32>
    %658 = vector.multi_reduction <add>, %657, %cst_198 [1, 2] : vector<1x8x256xf32> to vector<1xf32>
    %659 = vector.shape_cast %658 : vector<1xf32> to vector<1x1x1xf32>
    %660 = vector.extract %659[0, 0, 0] : f32 from vector<1x1x1xf32>
    %661 = vector.broadcast %660 : f32 to vector<1x1xf32>
    %cst_199 = arith.constant 2.048000e+03 : f32
    %662 = vector.broadcast %cst_199 : f32 to vector<1x1xf32>
    %663 = arith.divf %661, %662 : vector<1x1xf32>
    %664 = vector.broadcast %663 : vector<1x1xf32> to vector<8x256xf32>
    %665 = arith.subf %656, %664 : vector<8x256xf32>
    %666 = arith.mulf %665, %665 : vector<8x256xf32>
    %667 = vector.shape_cast %666 : vector<8x256xf32> to vector<1x8x256xf32>
    %cst_200 = arith.constant dense<0.000000e+00> : vector<1xf32>
    %668 = vector.multi_reduction <add>, %667, %cst_200 [1, 2] : vector<1x8x256xf32> to vector<1xf32>
    %669 = vector.shape_cast %668 : vector<1xf32> to vector<1x1x1xf32>
    %670 = vector.extract %669[0, 0, 0] : f32 from vector<1x1x1xf32>
    %671 = vector.broadcast %670 : f32 to vector<1x1xf32>
    %cst_201 = arith.constant 2.048000e+03 : f32
    %672 = vector.broadcast %cst_201 : f32 to vector<1x1xf32>
    %673 = arith.divf %671, %672 : vector<1x1xf32>
    %674 = vector.broadcast %663 : vector<1x1xf32> to vector<8x256xf32>
    %675 = arith.subf %656, %674 : vector<8x256xf32>
    %cst_202 = arith.constant 9.99999974E-6 : f32
    %676 = vector.broadcast %cst_202 : f32 to vector<1x1xf32>
    %677 = arith.addf %673, %676 : vector<1x1xf32>
    %678 = math.rsqrt %677 : vector<1x1xf32>
    %679 = vector.broadcast %678 : vector<1x1xf32> to vector<8x256xf32>
    %680 = arith.mulf %675, %679 : vector<8x256xf32>
    %681 = arith.mulf %680, %0 : vector<8x256xf32>
    %682 = arith.addf %681, %1 : vector<8x256xf32>
    %c5_203 = arith.constant 5 : index
    %c8_204 = arith.constant 8 : index
    %c0_205 = arith.constant 0 : index
    %683 = vector.load %arg5[%c5_203, %c8_204, %c0_205] : memref<8x32x256xf32, #tpu.memory_space<vmem>>, vector<1x8x256xf32>
    %684 = vector.shape_cast %683 : vector<1x8x256xf32> to vector<8x256xf32>
    %685 = vector.shape_cast %682 : vector<8x256xf32> to vector<1x8x256xf32>
    tpu.vector_store %arg5[%c5_203, %c8_204, %c0_205], %685 {strides = array<i32>} : memref<8x32x256xf32, #tpu.memory_space<vmem>>, vector<1x8x256xf32>,
    %686 = vector.extract_strided_slice %625 {offsets = [16, 0], sizes = [8, 256], strides = [1, 1]} : vector<32x256xf32> to vector<8x256xf32>
    %687 = vector.shape_cast %686 : vector<8x256xf32> to vector<1x8x256xf32>
    %cst_206 = arith.constant dense<0.000000e+00> : vector<1xf32>
    %688 = vector.multi_reduction <add>, %687, %cst_206 [1, 2] : vector<1x8x256xf32> to vector<1xf32>
    %689 = vector.shape_cast %688 : vector<1xf32> to vector<1x1x1xf32>
    %690 = vector.extract %689[0, 0, 0] : f32 from vector<1x1x1xf32>
    %691 = vector.broadcast %690 : f32 to vector<1x1xf32>
    %cst_207 = arith.constant 2.048000e+03 : f32
    %692 = vector.broadcast %cst_207 : f32 to vector<1x1xf32>
    %693 = arith.divf %691, %692 : vector<1x1xf32>
    %694 = vector.broadcast %693 : vector<1x1xf32> to vector<8x256xf32>
    %695 = arith.subf %686, %694 : vector<8x256xf32>
    %696 = arith.mulf %695, %695 : vector<8x256xf32>
    %697 = vector.shape_cast %696 : vector<8x256xf32> to vector<1x8x256xf32>
    %cst_208 = arith.constant dense<0.000000e+00> : vector<1xf32>
    %698 = vector.multi_reduction <add>, %697, %cst_208 [1, 2] : vector<1x8x256xf32> to vector<1xf32>
    %699 = vector.shape_cast %698 : vector<1xf32> to vector<1x1x1xf32>
    %700 = vector.extract %699[0, 0, 0] : f32 from vector<1x1x1xf32>
    %701 = vector.broadcast %700 : f32 to vector<1x1xf32>
    %cst_209 = arith.constant 2.048000e+03 : f32
    %702 = vector.broadcast %cst_209 : f32 to vector<1x1xf32>
    %703 = arith.divf %701, %702 : vector<1x1xf32>
    %704 = vector.broadcast %693 : vector<1x1xf32> to vector<8x256xf32>
    %705 = arith.subf %686, %704 : vector<8x256xf32>
    %cst_210 = arith.constant 9.99999974E-6 : f32
    %706 = vector.broadcast %cst_210 : f32 to vector<1x1xf32>
    %707 = arith.addf %703, %706 : vector<1x1xf32>
    %708 = math.rsqrt %707 : vector<1x1xf32>
    %709 = vector.broadcast %708 : vector<1x1xf32> to vector<8x256xf32>
    %710 = arith.mulf %705, %709 : vector<8x256xf32>
    %711 = arith.mulf %710, %0 : vector<8x256xf32>
    %712 = arith.addf %711, %1 : vector<8x256xf32>
    %c5_211 = arith.constant 5 : index
    %c16_212 = arith.constant 16 : index
    %c0_213 = arith.constant 0 : index
    %713 = vector.load %arg5[%c5_211, %c16_212, %c0_213] : memref<8x32x256xf32, #tpu.memory_space<vmem>>, vector<1x8x256xf32>
    %714 = vector.shape_cast %713 : vector<1x8x256xf32> to vector<8x256xf32>
    %715 = vector.shape_cast %712 : vector<8x256xf32> to vector<1x8x256xf32>
    tpu.vector_store %arg5[%c5_211, %c16_212, %c0_213], %715 {strides = array<i32>} : memref<8x32x256xf32, #tpu.memory_space<vmem>>, vector<1x8x256xf32>,
    %716 = vector.extract_strided_slice %625 {offsets = [24, 0], sizes = [8, 256], strides = [1, 1]} : vector<32x256xf32> to vector<8x256xf32>
    %717 = vector.shape_cast %716 : vector<8x256xf32> to vector<1x8x256xf32>
    %cst_214 = arith.constant dense<0.000000e+00> : vector<1xf32>
    %718 = vector.multi_reduction <add>, %717, %cst_214 [1, 2] : vector<1x8x256xf32> to vector<1xf32>
    %719 = vector.shape_cast %718 : vector<1xf32> to vector<1x1x1xf32>
    %720 = vector.extract %719[0, 0, 0] : f32 from vector<1x1x1xf32>
    %721 = vector.broadcast %720 : f32 to vector<1x1xf32>
    %cst_215 = arith.constant 2.048000e+03 : f32
    %722 = vector.broadcast %cst_215 : f32 to vector<1x1xf32>
    %723 = arith.divf %721, %722 : vector<1x1xf32>
    %724 = vector.broadcast %723 : vector<1x1xf32> to vector<8x256xf32>
    %725 = arith.subf %716, %724 : vector<8x256xf32>
    %726 = arith.mulf %725, %725 : vector<8x256xf32>
    %727 = vector.shape_cast %726 : vector<8x256xf32> to vector<1x8x256xf32>
    %cst_216 = arith.constant dense<0.000000e+00> : vector<1xf32>
    %728 = vector.multi_reduction <add>, %727, %cst_216 [1, 2] : vector<1x8x256xf32> to vector<1xf32>
    %729 = vector.shape_cast %728 : vector<1xf32> to vector<1x1x1xf32>
    %730 = vector.extract %729[0, 0, 0] : f32 from vector<1x1x1xf32>
    %731 = vector.broadcast %730 : f32 to vector<1x1xf32>
    %cst_217 = arith.constant 2.048000e+03 : f32
    %732 = vector.broadcast %cst_217 : f32 to vector<1x1xf32>
    %733 = arith.divf %731, %732 : vector<1x1xf32>
    %734 = vector.broadcast %723 : vector<1x1xf32> to vector<8x256xf32>
    %735 = arith.subf %716, %734 : vector<8x256xf32>
    %cst_218 = arith.constant 9.99999974E-6 : f32
    %736 = vector.broadcast %cst_218 : f32 to vector<1x1xf32>
    %737 = arith.addf %733, %736 : vector<1x1xf32>
    %738 = math.rsqrt %737 : vector<1x1xf32>
    %739 = vector.broadcast %738 : vector<1x1xf32> to vector<8x256xf32>
    %740 = arith.mulf %735, %739 : vector<8x256xf32>
    %741 = arith.mulf %740, %0 : vector<8x256xf32>
    %742 = arith.addf %741, %1 : vector<8x256xf32>
    %c5_219 = arith.constant 5 : index
    %c24_220 = arith.constant 24 : index
    %c0_221 = arith.constant 0 : index
    %743 = vector.load %arg5[%c5_219, %c24_220, %c0_221] : memref<8x32x256xf32, #tpu.memory_space<vmem>>, vector<1x8x256xf32>
    %744 = vector.shape_cast %743 : vector<1x8x256xf32> to vector<8x256xf32>
    %745 = vector.shape_cast %742 : vector<8x256xf32> to vector<1x8x256xf32>
    tpu.vector_store %arg5[%c5_219, %c24_220, %c0_221], %745 {strides = array<i32>} : memref<8x32x256xf32, #tpu.memory_space<vmem>>, vector<1x8x256xf32>,
    %c0_222 = arith.constant 0 : index
    %c0_223 = arith.constant 0 : index
    %746 = vector.load %arg2[%c0_222, %c0_223] : memref<32x32xf32, #tpu.memory_space<vmem>>, vector<32x32xf32>
    %c6 = arith.constant 6 : index
    %c0_224 = arith.constant 0 : index
    %c0_225 = arith.constant 0 : index
    %747 = vector.load %arg1[%c6, %c0_224, %c0_225] : memref<8x32x256xf32, #tpu.memory_space<vmem>>, vector<1x32x256xf32>
    %748 = vector.shape_cast %747 : vector<1x32x256xf32> to vector<32x256xf32>
    %cst_226 = arith.constant dense<0.000000e+00> : vector<32x256xf32>
    %749 = tpu.matmul %746, %748, %cst_226 {dimension_numbers = #tpu.dot_dimension_numbers<[1], [0], [0], [1], [0, 0, 1, 1], [], []>} : vector<32x32xf32>, vector<32x256xf32>, vector<32x256xf32> -> vector<32x256xf32>
    %750 = vector.extract_strided_slice %749 {offsets = [0, 0], sizes = [8, 256], strides = [1, 1]} : vector<32x256xf32> to vector<8x256xf32>
    %751 = vector.shape_cast %750 : vector<8x256xf32> to vector<1x8x256xf32>
    %cst_227 = arith.constant dense<0.000000e+00> : vector<1xf32>
    %752 = vector.multi_reduction <add>, %751, %cst_227 [1, 2] : vector<1x8x256xf32> to vector<1xf32>
    %753 = vector.shape_cast %752 : vector<1xf32> to vector<1x1x1xf32>
    %754 = vector.extract %753[0, 0, 0] : f32 from vector<1x1x1xf32>
    %755 = vector.broadcast %754 : f32 to vector<1x1xf32>
    %cst_228 = arith.constant 2.048000e+03 : f32
    %756 = vector.broadcast %cst_228 : f32 to vector<1x1xf32>
    %757 = arith.divf %755, %756 : vector<1x1xf32>
    %758 = vector.broadcast %757 : vector<1x1xf32> to vector<8x256xf32>
    %759 = arith.subf %750, %758 : vector<8x256xf32>
    %760 = arith.mulf %759, %759 : vector<8x256xf32>
    %761 = vector.shape_cast %760 : vector<8x256xf32> to vector<1x8x256xf32>
    %cst_229 = arith.constant dense<0.000000e+00> : vector<1xf32>
    %762 = vector.multi_reduction <add>, %761, %cst_229 [1, 2] : vector<1x8x256xf32> to vector<1xf32>
    %763 = vector.shape_cast %762 : vector<1xf32> to vector<1x1x1xf32>
    %764 = vector.extract %763[0, 0, 0] : f32 from vector<1x1x1xf32>
    %765 = vector.broadcast %764 : f32 to vector<1x1xf32>
    %cst_230 = arith.constant 2.048000e+03 : f32
    %766 = vector.broadcast %cst_230 : f32 to vector<1x1xf32>
    %767 = arith.divf %765, %766 : vector<1x1xf32>
    %768 = vector.broadcast %757 : vector<1x1xf32> to vector<8x256xf32>
    %769 = arith.subf %750, %768 : vector<8x256xf32>
    %cst_231 = arith.constant 9.99999974E-6 : f32
    %770 = vector.broadcast %cst_231 : f32 to vector<1x1xf32>
    %771 = arith.addf %767, %770 : vector<1x1xf32>
    %772 = math.rsqrt %771 : vector<1x1xf32>
    %773 = vector.broadcast %772 : vector<1x1xf32> to vector<8x256xf32>
    %774 = arith.mulf %769, %773 : vector<8x256xf32>
    %775 = arith.mulf %774, %0 : vector<8x256xf32>
    %776 = arith.addf %775, %1 : vector<8x256xf32>
    %c6_232 = arith.constant 6 : index
    %c0_233 = arith.constant 0 : index
    %c0_234 = arith.constant 0 : index
    %777 = vector.load %arg5[%c6_232, %c0_233, %c0_234] : memref<8x32x256xf32, #tpu.memory_space<vmem>>, vector<1x8x256xf32>
    %778 = vector.shape_cast %777 : vector<1x8x256xf32> to vector<8x256xf32>
    %779 = vector.shape_cast %776 : vector<8x256xf32> to vector<1x8x256xf32>
    tpu.vector_store %arg5[%c6_232, %c0_233, %c0_234], %779 {strides = array<i32>} : memref<8x32x256xf32, #tpu.memory_space<vmem>>, vector<1x8x256xf32>,
    %780 = vector.extract_strided_slice %749 {offsets = [8, 0], sizes = [8, 256], strides = [1, 1]} : vector<32x256xf32> to vector<8x256xf32>
    %781 = vector.shape_cast %780 : vector<8x256xf32> to vector<1x8x256xf32>
    %cst_235 = arith.constant dense<0.000000e+00> : vector<1xf32>
    %782 = vector.multi_reduction <add>, %781, %cst_235 [1, 2] : vector<1x8x256xf32> to vector<1xf32>
    %783 = vector.shape_cast %782 : vector<1xf32> to vector<1x1x1xf32>
    %784 = vector.extract %783[0, 0, 0] : f32 from vector<1x1x1xf32>
    %785 = vector.broadcast %784 : f32 to vector<1x1xf32>
    %cst_236 = arith.constant 2.048000e+03 : f32
    %786 = vector.broadcast %cst_236 : f32 to vector<1x1xf32>
    %787 = arith.divf %785, %786 : vector<1x1xf32>
    %788 = vector.broadcast %787 : vector<1x1xf32> to vector<8x256xf32>
    %789 = arith.subf %780, %788 : vector<8x256xf32>
    %790 = arith.mulf %789, %789 : vector<8x256xf32>
    %791 = vector.shape_cast %790 : vector<8x256xf32> to vector<1x8x256xf32>
    %cst_237 = arith.constant dense<0.000000e+00> : vector<1xf32>
    %792 = vector.multi_reduction <add>, %791, %cst_237 [1, 2] : vector<1x8x256xf32> to vector<1xf32>
    %793 = vector.shape_cast %792 : vector<1xf32> to vector<1x1x1xf32>
    %794 = vector.extract %793[0, 0, 0] : f32 from vector<1x1x1xf32>
    %795 = vector.broadcast %794 : f32 to vector<1x1xf32>
    %cst_238 = arith.constant 2.048000e+03 : f32
    %796 = vector.broadcast %cst_238 : f32 to vector<1x1xf32>
    %797 = arith.divf %795, %796 : vector<1x1xf32>
    %798 = vector.broadcast %787 : vector<1x1xf32> to vector<8x256xf32>
    %799 = arith.subf %780, %798 : vector<8x256xf32>
    %cst_239 = arith.constant 9.99999974E-6 : f32
    %800 = vector.broadcast %cst_239 : f32 to vector<1x1xf32>
    %801 = arith.addf %797, %800 : vector<1x1xf32>
    %802 = math.rsqrt %801 : vector<1x1xf32>
    %803 = vector.broadcast %802 : vector<1x1xf32> to vector<8x256xf32>
    %804 = arith.mulf %799, %803 : vector<8x256xf32>
    %805 = arith.mulf %804, %0 : vector<8x256xf32>
    %806 = arith.addf %805, %1 : vector<8x256xf32>
    %c6_240 = arith.constant 6 : index
    %c8_241 = arith.constant 8 : index
    %c0_242 = arith.constant 0 : index
    %807 = vector.load %arg5[%c6_240, %c8_241, %c0_242] : memref<8x32x256xf32, #tpu.memory_space<vmem>>, vector<1x8x256xf32>
    %808 = vector.shape_cast %807 : vector<1x8x256xf32> to vector<8x256xf32>
    %809 = vector.shape_cast %806 : vector<8x256xf32> to vector<1x8x256xf32>
    tpu.vector_store %arg5[%c6_240, %c8_241, %c0_242], %809 {strides = array<i32>} : memref<8x32x256xf32, #tpu.memory_space<vmem>>, vector<1x8x256xf32>,
    %810 = vector.extract_strided_slice %749 {offsets = [16, 0], sizes = [8, 256], strides = [1, 1]} : vector<32x256xf32> to vector<8x256xf32>
    %811 = vector.shape_cast %810 : vector<8x256xf32> to vector<1x8x256xf32>
    %cst_243 = arith.constant dense<0.000000e+00> : vector<1xf32>
    %812 = vector.multi_reduction <add>, %811, %cst_243 [1, 2] : vector<1x8x256xf32> to vector<1xf32>
    %813 = vector.shape_cast %812 : vector<1xf32> to vector<1x1x1xf32>
    %814 = vector.extract %813[0, 0, 0] : f32 from vector<1x1x1xf32>
    %815 = vector.broadcast %814 : f32 to vector<1x1xf32>
    %cst_244 = arith.constant 2.048000e+03 : f32
    %816 = vector.broadcast %cst_244 : f32 to vector<1x1xf32>
    %817 = arith.divf %815, %816 : vector<1x1xf32>
    %818 = vector.broadcast %817 : vector<1x1xf32> to vector<8x256xf32>
    %819 = arith.subf %810, %818 : vector<8x256xf32>
    %820 = arith.mulf %819, %819 : vector<8x256xf32>
    %821 = vector.shape_cast %820 : vector<8x256xf32> to vector<1x8x256xf32>
    %cst_245 = arith.constant dense<0.000000e+00> : vector<1xf32>
    %822 = vector.multi_reduction <add>, %821, %cst_245 [1, 2] : vector<1x8x256xf32> to vector<1xf32>
    %823 = vector.shape_cast %822 : vector<1xf32> to vector<1x1x1xf32>
    %824 = vector.extract %823[0, 0, 0] : f32 from vector<1x1x1xf32>
    %825 = vector.broadcast %824 : f32 to vector<1x1xf32>
    %cst_246 = arith.constant 2.048000e+03 : f32
    %826 = vector.broadcast %cst_246 : f32 to vector<1x1xf32>
    %827 = arith.divf %825, %826 : vector<1x1xf32>
    %828 = vector.broadcast %817 : vector<1x1xf32> to vector<8x256xf32>
    %829 = arith.subf %810, %828 : vector<8x256xf32>
    %cst_247 = arith.constant 9.99999974E-6 : f32
    %830 = vector.broadcast %cst_247 : f32 to vector<1x1xf32>
    %831 = arith.addf %827, %830 : vector<1x1xf32>
    %832 = math.rsqrt %831 : vector<1x1xf32>
    %833 = vector.broadcast %832 : vector<1x1xf32> to vector<8x256xf32>
    %834 = arith.mulf %829, %833 : vector<8x256xf32>
    %835 = arith.mulf %834, %0 : vector<8x256xf32>
    %836 = arith.addf %835, %1 : vector<8x256xf32>
    %c6_248 = arith.constant 6 : index
    %c16_249 = arith.constant 16 : index
    %c0_250 = arith.constant 0 : index
    %837 = vector.load %arg5[%c6_248, %c16_249, %c0_250] : memref<8x32x256xf32, #tpu.memory_space<vmem>>, vector<1x8x256xf32>
    %838 = vector.shape_cast %837 : vector<1x8x256xf32> to vector<8x256xf32>
    %839 = vector.shape_cast %836 : vector<8x256xf32> to vector<1x8x256xf32>
    tpu.vector_store %arg5[%c6_248, %c16_249, %c0_250], %839 {strides = array<i32>} : memref<8x32x256xf32, #tpu.memory_space<vmem>>, vector<1x8x256xf32>,
    %840 = vector.extract_strided_slice %749 {offsets = [24, 0], sizes = [8, 256], strides = [1, 1]} : vector<32x256xf32> to vector<8x256xf32>
    %841 = vector.shape_cast %840 : vector<8x256xf32> to vector<1x8x256xf32>
    %cst_251 = arith.constant dense<0.000000e+00> : vector<1xf32>
    %842 = vector.multi_reduction <add>, %841, %cst_251 [1, 2] : vector<1x8x256xf32> to vector<1xf32>
    %843 = vector.shape_cast %842 : vector<1xf32> to vector<1x1x1xf32>
    %844 = vector.extract %843[0, 0, 0] : f32 from vector<1x1x1xf32>
    %845 = vector.broadcast %844 : f32 to vector<1x1xf32>
    %cst_252 = arith.constant 2.048000e+03 : f32
    %846 = vector.broadcast %cst_252 : f32 to vector<1x1xf32>
    %847 = arith.divf %845, %846 : vector<1x1xf32>
    %848 = vector.broadcast %847 : vector<1x1xf32> to vector<8x256xf32>
    %849 = arith.subf %840, %848 : vector<8x256xf32>
    %850 = arith.mulf %849, %849 : vector<8x256xf32>
    %851 = vector.shape_cast %850 : vector<8x256xf32> to vector<1x8x256xf32>
    %cst_253 = arith.constant dense<0.000000e+00> : vector<1xf32>
    %852 = vector.multi_reduction <add>, %851, %cst_253 [1, 2] : vector<1x8x256xf32> to vector<1xf32>
    %853 = vector.shape_cast %852 : vector<1xf32> to vector<1x1x1xf32>
    %854 = vector.extract %853[0, 0, 0] : f32 from vector<1x1x1xf32>
    %855 = vector.broadcast %854 : f32 to vector<1x1xf32>
    %cst_254 = arith.constant 2.048000e+03 : f32
    %856 = vector.broadcast %cst_254 : f32 to vector<1x1xf32>
    %857 = arith.divf %855, %856 : vector<1x1xf32>
    %858 = vector.broadcast %847 : vector<1x1xf32> to vector<8x256xf32>
    %859 = arith.subf %840, %858 : vector<8x256xf32>
    %cst_255 = arith.constant 9.99999974E-6 : f32
    %860 = vector.broadcast %cst_255 : f32 to vector<1x1xf32>
    %861 = arith.addf %857, %860 : vector<1x1xf32>
    %862 = math.rsqrt %861 : vector<1x1xf32>
    %863 = vector.broadcast %862 : vector<1x1xf32> to vector<8x256xf32>
    %864 = arith.mulf %859, %863 : vector<8x256xf32>
    %865 = arith.mulf %864, %0 : vector<8x256xf32>
    %866 = arith.addf %865, %1 : vector<8x256xf32>
    %c6_256 = arith.constant 6 : index
    %c24_257 = arith.constant 24 : index
    %c0_258 = arith.constant 0 : index
    %867 = vector.load %arg5[%c6_256, %c24_257, %c0_258] : memref<8x32x256xf32, #tpu.memory_space<vmem>>, vector<1x8x256xf32>
    %868 = vector.shape_cast %867 : vector<1x8x256xf32> to vector<8x256xf32>
    %869 = vector.shape_cast %866 : vector<8x256xf32> to vector<1x8x256xf32>
    tpu.vector_store %arg5[%c6_256, %c24_257, %c0_258], %869 {strides = array<i32>} : memref<8x32x256xf32, #tpu.memory_space<vmem>>, vector<1x8x256xf32>,
    %c0_259 = arith.constant 0 : index
    %c0_260 = arith.constant 0 : index
    %870 = vector.load %arg2[%c0_259, %c0_260] : memref<32x32xf32, #tpu.memory_space<vmem>>, vector<32x32xf32>
    %c7 = arith.constant 7 : index
    %c0_261 = arith.constant 0 : index
    %c0_262 = arith.constant 0 : index
    %871 = vector.load %arg1[%c7, %c0_261, %c0_262] : memref<8x32x256xf32, #tpu.memory_space<vmem>>, vector<1x32x256xf32>
    %872 = vector.shape_cast %871 : vector<1x32x256xf32> to vector<32x256xf32>
    %cst_263 = arith.constant dense<0.000000e+00> : vector<32x256xf32>
    %873 = tpu.matmul %870, %872, %cst_263 {dimension_numbers = #tpu.dot_dimension_numbers<[1], [0], [0], [1], [0, 0, 1, 1], [], []>} : vector<32x32xf32>, vector<32x256xf32>, vector<32x256xf32> -> vector<32x256xf32>
    %874 = vector.extract_strided_slice %873 {offsets = [0, 0], sizes = [8, 256], strides = [1, 1]} : vector<32x256xf32> to vector<8x256xf32>
    %875 = vector.shape_cast %874 : vector<8x256xf32> to vector<1x8x256xf32>
    %cst_264 = arith.constant dense<0.000000e+00> : vector<1xf32>
    %876 = vector.multi_reduction <add>, %875, %cst_264 [1, 2] : vector<1x8x256xf32> to vector<1xf32>
    %877 = vector.shape_cast %876 : vector<1xf32> to vector<1x1x1xf32>
    %878 = vector.extract %877[0, 0, 0] : f32 from vector<1x1x1xf32>
    %879 = vector.broadcast %878 : f32 to vector<1x1xf32>
    %cst_265 = arith.constant 2.048000e+03 : f32
    %880 = vector.broadcast %cst_265 : f32 to vector<1x1xf32>
    %881 = arith.divf %879, %880 : vector<1x1xf32>
    %882 = vector.broadcast %881 : vector<1x1xf32> to vector<8x256xf32>
    %883 = arith.subf %874, %882 : vector<8x256xf32>
    %884 = arith.mulf %883, %883 : vector<8x256xf32>
    %885 = vector.shape_cast %884 : vector<8x256xf32> to vector<1x8x256xf32>
    %cst_266 = arith.constant dense<0.000000e+00> : vector<1xf32>
    %886 = vector.multi_reduction <add>, %885, %cst_266 [1, 2] : vector<1x8x256xf32> to vector<1xf32>
    %887 = vector.shape_cast %886 : vector<1xf32> to vector<1x1x1xf32>
    %888 = vector.extract %887[0, 0, 0] : f32 from vector<1x1x1xf32>
    %889 = vector.broadcast %888 : f32 to vector<1x1xf32>
    %cst_267 = arith.constant 2.048000e+03 : f32
    %890 = vector.broadcast %cst_267 : f32 to vector<1x1xf32>
    %891 = arith.divf %889, %890 : vector<1x1xf32>
    %892 = vector.broadcast %881 : vector<1x1xf32> to vector<8x256xf32>
    %893 = arith.subf %874, %892 : vector<8x256xf32>
    %cst_268 = arith.constant 9.99999974E-6 : f32
    %894 = vector.broadcast %cst_268 : f32 to vector<1x1xf32>
    %895 = arith.addf %891, %894 : vector<1x1xf32>
    %896 = math.rsqrt %895 : vector<1x1xf32>
    %897 = vector.broadcast %896 : vector<1x1xf32> to vector<8x256xf32>
    %898 = arith.mulf %893, %897 : vector<8x256xf32>
    %899 = arith.mulf %898, %0 : vector<8x256xf32>
    %900 = arith.addf %899, %1 : vector<8x256xf32>
    %c7_269 = arith.constant 7 : index
    %c0_270 = arith.constant 0 : index
    %c0_271 = arith.constant 0 : index
    %901 = vector.load %arg5[%c7_269, %c0_270, %c0_271] : memref<8x32x256xf32, #tpu.memory_space<vmem>>, vector<1x8x256xf32>
    %902 = vector.shape_cast %901 : vector<1x8x256xf32> to vector<8x256xf32>
    %903 = vector.shape_cast %900 : vector<8x256xf32> to vector<1x8x256xf32>
    tpu.vector_store %arg5[%c7_269, %c0_270, %c0_271], %903 {strides = array<i32>} : memref<8x32x256xf32, #tpu.memory_space<vmem>>, vector<1x8x256xf32>,
    %904 = vector.extract_strided_slice %873 {offsets = [8, 0], sizes = [8, 256], strides = [1, 1]} : vector<32x256xf32> to vector<8x256xf32>
    %905 = vector.shape_cast %904 : vector<8x256xf32> to vector<1x8x256xf32>
    %cst_272 = arith.constant dense<0.000000e+00> : vector<1xf32>
    %906 = vector.multi_reduction <add>, %905, %cst_272 [1, 2] : vector<1x8x256xf32> to vector<1xf32>
    %907 = vector.shape_cast %906 : vector<1xf32> to vector<1x1x1xf32>
    %908 = vector.extract %907[0, 0, 0] : f32 from vector<1x1x1xf32>
    %909 = vector.broadcast %908 : f32 to vector<1x1xf32>
    %cst_273 = arith.constant 2.048000e+03 : f32
    %910 = vector.broadcast %cst_273 : f32 to vector<1x1xf32>
    %911 = arith.divf %909, %910 : vector<1x1xf32>
    %912 = vector.broadcast %911 : vector<1x1xf32> to vector<8x256xf32>
    %913 = arith.subf %904, %912 : vector<8x256xf32>
    %914 = arith.mulf %913, %913 : vector<8x256xf32>
    %915 = vector.shape_cast %914 : vector<8x256xf32> to vector<1x8x256xf32>
    %cst_274 = arith.constant dense<0.000000e+00> : vector<1xf32>
    %916 = vector.multi_reduction <add>, %915, %cst_274 [1, 2] : vector<1x8x256xf32> to vector<1xf32>
    %917 = vector.shape_cast %916 : vector<1xf32> to vector<1x1x1xf32>
    %918 = vector.extract %917[0, 0, 0] : f32 from vector<1x1x1xf32>
    %919 = vector.broadcast %918 : f32 to vector<1x1xf32>
    %cst_275 = arith.constant 2.048000e+03 : f32
    %920 = vector.broadcast %cst_275 : f32 to vector<1x1xf32>
    %921 = arith.divf %919, %920 : vector<1x1xf32>
    %922 = vector.broadcast %911 : vector<1x1xf32> to vector<8x256xf32>
    %923 = arith.subf %904, %922 : vector<8x256xf32>
    %cst_276 = arith.constant 9.99999974E-6 : f32
    %924 = vector.broadcast %cst_276 : f32 to vector<1x1xf32>
    %925 = arith.addf %921, %924 : vector<1x1xf32>
    %926 = math.rsqrt %925 : vector<1x1xf32>
    %927 = vector.broadcast %926 : vector<1x1xf32> to vector<8x256xf32>
    %928 = arith.mulf %923, %927 : vector<8x256xf32>
    %929 = arith.mulf %928, %0 : vector<8x256xf32>
    %930 = arith.addf %929, %1 : vector<8x256xf32>
    %c7_277 = arith.constant 7 : index
    %c8_278 = arith.constant 8 : index
    %c0_279 = arith.constant 0 : index
    %931 = vector.load %arg5[%c7_277, %c8_278, %c0_279] : memref<8x32x256xf32, #tpu.memory_space<vmem>>, vector<1x8x256xf32>
    %932 = vector.shape_cast %931 : vector<1x8x256xf32> to vector<8x256xf32>
    %933 = vector.shape_cast %930 : vector<8x256xf32> to vector<1x8x256xf32>
    tpu.vector_store %arg5[%c7_277, %c8_278, %c0_279], %933 {strides = array<i32>} : memref<8x32x256xf32, #tpu.memory_space<vmem>>, vector<1x8x256xf32>,
    %934 = vector.extract_strided_slice %873 {offsets = [16, 0], sizes = [8, 256], strides = [1, 1]} : vector<32x256xf32> to vector<8x256xf32>
    %935 = vector.shape_cast %934 : vector<8x256xf32> to vector<1x8x256xf32>
    %cst_280 = arith.constant dense<0.000000e+00> : vector<1xf32>
    %936 = vector.multi_reduction <add>, %935, %cst_280 [1, 2] : vector<1x8x256xf32> to vector<1xf32>
    %937 = vector.shape_cast %936 : vector<1xf32> to vector<1x1x1xf32>
    %938 = vector.extract %937[0, 0, 0] : f32 from vector<1x1x1xf32>
    %939 = vector.broadcast %938 : f32 to vector<1x1xf32>
    %cst_281 = arith.constant 2.048000e+03 : f32
    %940 = vector.broadcast %cst_281 : f32 to vector<1x1xf32>
    %941 = arith.divf %939, %940 : vector<1x1xf32>
    %942 = vector.broadcast %941 : vector<1x1xf32> to vector<8x256xf32>
    %943 = arith.subf %934, %942 : vector<8x256xf32>
    %944 = arith.mulf %943, %943 : vector<8x256xf32>
    %945 = vector.shape_cast %944 : vector<8x256xf32> to vector<1x8x256xf32>
    %cst_282 = arith.constant dense<0.000000e+00> : vector<1xf32>
    %946 = vector.multi_reduction <add>, %945, %cst_282 [1, 2] : vector<1x8x256xf32> to vector<1xf32>
    %947 = vector.shape_cast %946 : vector<1xf32> to vector<1x1x1xf32>
    %948 = vector.extract %947[0, 0, 0] : f32 from vector<1x1x1xf32>
    %949 = vector.broadcast %948 : f32 to vector<1x1xf32>
    %cst_283 = arith.constant 2.048000e+03 : f32
    %950 = vector.broadcast %cst_283 : f32 to vector<1x1xf32>
    %951 = arith.divf %949, %950 : vector<1x1xf32>
    %952 = vector.broadcast %941 : vector<1x1xf32> to vector<8x256xf32>
    %953 = arith.subf %934, %952 : vector<8x256xf32>
    %cst_284 = arith.constant 9.99999974E-6 : f32
    %954 = vector.broadcast %cst_284 : f32 to vector<1x1xf32>
    %955 = arith.addf %951, %954 : vector<1x1xf32>
    %956 = math.rsqrt %955 : vector<1x1xf32>
    %957 = vector.broadcast %956 : vector<1x1xf32> to vector<8x256xf32>
    %958 = arith.mulf %953, %957 : vector<8x256xf32>
    %959 = arith.mulf %958, %0 : vector<8x256xf32>
    %960 = arith.addf %959, %1 : vector<8x256xf32>
    %c7_285 = arith.constant 7 : index
    %c16_286 = arith.constant 16 : index
    %c0_287 = arith.constant 0 : index
    %961 = vector.load %arg5[%c7_285, %c16_286, %c0_287] : memref<8x32x256xf32, #tpu.memory_space<vmem>>, vector<1x8x256xf32>
    %962 = vector.shape_cast %961 : vector<1x8x256xf32> to vector<8x256xf32>
    %963 = vector.shape_cast %960 : vector<8x256xf32> to vector<1x8x256xf32>
    tpu.vector_store %arg5[%c7_285, %c16_286, %c0_287], %963 {strides = array<i32>} : memref<8x32x256xf32, #tpu.memory_space<vmem>>, vector<1x8x256xf32>,
    %964 = vector.extract_strided_slice %873 {offsets = [24, 0], sizes = [8, 256], strides = [1, 1]} : vector<32x256xf32> to vector<8x256xf32>
    %965 = vector.shape_cast %964 : vector<8x256xf32> to vector<1x8x256xf32>
    %cst_288 = arith.constant dense<0.000000e+00> : vector<1xf32>
    %966 = vector.multi_reduction <add>, %965, %cst_288 [1, 2] : vector<1x8x256xf32> to vector<1xf32>
    %967 = vector.shape_cast %966 : vector<1xf32> to vector<1x1x1xf32>
    %968 = vector.extract %967[0, 0, 0] : f32 from vector<1x1x1xf32>
    %969 = vector.broadcast %968 : f32 to vector<1x1xf32>
    %cst_289 = arith.constant 2.048000e+03 : f32
    %970 = vector.broadcast %cst_289 : f32 to vector<1x1xf32>
    %971 = arith.divf %969, %970 : vector<1x1xf32>
    %972 = vector.broadcast %971 : vector<1x1xf32> to vector<8x256xf32>
    %973 = arith.subf %964, %972 : vector<8x256xf32>
    %974 = arith.mulf %973, %973 : vector<8x256xf32>
    %975 = vector.shape_cast %974 : vector<8x256xf32> to vector<1x8x256xf32>
    %cst_290 = arith.constant dense<0.000000e+00> : vector<1xf32>
    %976 = vector.multi_reduction <add>, %975, %cst_290 [1, 2] : vector<1x8x256xf32> to vector<1xf32>
    %977 = vector.shape_cast %976 : vector<1xf32> to vector<1x1x1xf32>
    %978 = vector.extract %977[0, 0, 0] : f32 from vector<1x1x1xf32>
    %979 = vector.broadcast %978 : f32 to vector<1x1xf32>
    %cst_291 = arith.constant 2.048000e+03 : f32
    %980 = vector.broadcast %cst_291 : f32 to vector<1x1xf32>
    %981 = arith.divf %979, %980 : vector<1x1xf32>
    %982 = vector.broadcast %971 : vector<1x1xf32> to vector<8x256xf32>
    %983 = arith.subf %964, %982 : vector<8x256xf32>
    %cst_292 = arith.constant 9.99999974E-6 : f32
    %984 = vector.broadcast %cst_292 : f32 to vector<1x1xf32>
    %985 = arith.addf %981, %984 : vector<1x1xf32>
    %986 = math.rsqrt %985 : vector<1x1xf32>
    %987 = vector.broadcast %986 : vector<1x1xf32> to vector<8x256xf32>
    %988 = arith.mulf %983, %987 : vector<8x256xf32>
    %989 = arith.mulf %988, %0 : vector<8x256xf32>
    %990 = arith.addf %989, %1 : vector<8x256xf32>
    %c7_293 = arith.constant 7 : index
    %c24_294 = arith.constant 24 : index
    %c0_295 = arith.constant 0 : index
    %991 = vector.load %arg5[%c7_293, %c24_294, %c0_295] : memref<8x32x256xf32, #tpu.memory_space<vmem>>, vector<1x8x256xf32>
    %992 = vector.shape_cast %991 : vector<1x8x256xf32> to vector<8x256xf32>
    %993 = vector.shape_cast %990 : vector<8x256xf32> to vector<1x8x256xf32>
    tpu.vector_store %arg5[%c7_293, %c24_294, %c0_295], %993 {strides = array<i32>} : memref<8x32x256xf32, #tpu.memory_space<vmem>>, vector<1x8x256xf32>,
    return
  }
  func.func @transform_0(%arg0: i32) -> (i32, i32, i32) {
    %c0_i32 = arith.constant 0 : i32
    %c0_i32_0 = arith.constant 0 : i32
    %c0_i32_1 = arith.constant 0 : i32
    return %arg0, %c0_i32, %c0_i32_0 : i32, i32, i32
  }
  func.func @transform_1(%arg0: i32) -> (i32, i32) {
    %c0_i32 = arith.constant 0 : i32
    %c0_i32_0 = arith.constant 0 : i32
    %c0_i32_1 = arith.constant 0 : i32
    return %c0_i32, %c0_i32_0 : i32, i32
  }
  func.func @transform_2(%arg0: i32) -> (i32, i32) {
    %c0_i32 = arith.constant 0 : i32
    %c0_i32_0 = arith.constant 0 : i32
    %c0_i32_1 = arith.constant 0 : i32
    return %c0_i32, %c0_i32_0 : i32, i32
  }
  func.func @transform_3(%arg0: i32) -> (i32, i32) {
    %c0_i32 = arith.constant 0 : i32
    %c0_i32_0 = arith.constant 0 : i32
    %c0_i32_1 = arith.constant 0 : i32
    return %c0_i32, %c0_i32_0 : i32, i32
  }
  func.func @transform_4(%arg0: i32) -> (i32, i32, i32) {
    %c0_i32 = arith.constant 0 : i32
    %c0_i32_0 = arith.constant 0 : i32
    %c0_i32_1 = arith.constant 0 : i32
    return %arg0, %c0_i32, %c0_i32_0 : i32, i32, i32
  }
}

</mosaic_0001>

<llo_original>
// kernel: tpu_custom_call.1
$region0: #{tpu_custom_call.1}
  #allocation0 [shape = 'u32[]', space=smem, size = 0x4, offset = 0x4, fixed_abs, tag = 'smem constant byte address 0x4 - core index']
  #allocation1 [shape = 'u32[144,128]{1,0:T(1,128)}', space=vmem, size = 0x12000, scoped, tag = 'internal scratch']
  %s0 = inlined_call_operand.hbm [shape: f32[8,32,256], index: 0, kind: input, shape index: {}]
  %s1 = inlined_call_operand.hbm [shape: f32[32,32], index: 1, kind: input, shape index: {}]
  %s2 = inlined_call_operand.hbm [shape: f32[8,256], index: 2, kind: input, shape index: {}]
  %s3 = inlined_call_operand.hbm [shape: f32[8,256], index: 3, kind: input, shape index: {}]
  %s4 = inlined_call_operand.hbm [shape: f32[8,32,256], index: 4, kind: output, shape index: {}]
  %s5 = sld [smem:[#allocation0]]
  $region42: #{tpu_custom_call.1} parent=0
    _
  %s7 = ssub.s32 1, %s5
  %s8 = scalar_select 0, %s7, %s5
  $region1: #{tpu_custom_call.1} parent=0
    #allocation2 [shape = 'u8[262144]{0}', space=vmem, size = 0x40000, scoped, tag = 'input window, operand 0, single buffered']
    #allocation3 [shape = 's32[1]{0}', space=sflag, size = 0x4, scoped, tag = 'scoped memory for tpu_custom_call.1']
    #allocation4 [shape = 's32[1]{0}', space=sflag, size = 0x4, scoped, tag = 'scoped memory for tpu_custom_call.1']
    #allocation5 [shape = 'u8[16384]{0}', space=vmem, size = 0x4000, scoped, tag = 'input window, operand 1, single buffered']
    #allocation6 [shape = 's32[1]{0}', space=sflag, size = 0x4, scoped, tag = 'scoped memory for tpu_custom_call.1']
    #allocation7 [shape = 'u8[8192]{0}', space=vmem, size = 0x2000, scoped, tag = 'input window, operand 2, single buffered']
    #allocation8 [shape = 'u8[8192]{0}', space=vmem, size = 0x2000, scoped, tag = 'input window, operand 3, single buffered']
    #allocation9 [shape = 's32[1]{0}', space=sflag, size = 0x4, scoped, tag = 'scoped memory for tpu_custom_call.1']
    #allocation10 [shape = 'u8[262144]{0}', space=vmem, size = 0x40000, scoped, tag = 'output window, operand 0, single buffered']
    %9 = vsyncpa [#allocation3], 0
    %10 = vsyncpa [#allocation6], 0
    %11 = vsyncpa [#allocation9], 0
    %12 = vsyncpa [#allocation4], 0
    // Predicated region
    $region2: #{tpu_custom_call.1} parent=1 // pred_check
      _
    $region3: #{tpu_custom_call.1} parent=1 // pred_check_branch
      %14 = sbr.rel (0) target = $region5
    $region4: #{tpu_custom_call.1} parent=1 // pred_region
      %s16 = ssub.s32 8192, 8192
      %17 = vsyncadd [#allocation3], %s16
      %s18 = sshll.u32 [#allocation2], 4
      %s19 = int_to_ptr.vmem [resolvable:$true] %s18
      %24 = dma.hbm_to_vmem [thread:$0]  %s0, 8192, %s19, [#allocation3], 256, 256, 16
    $region5: #{tpu_custom_call.1} parent=1 // pred_fallthru
      _
    // Predicated region
    $region6: #{tpu_custom_call.1} parent=1 // pred_check
      _
    $region7: #{tpu_custom_call.1} parent=1 // pred_check_branch
      %26 = sbr.rel (0) target = $region9
    $region8: #{tpu_custom_call.1} parent=1 // pred_region
      %s28 = ssub.s32 512, 512
      %29 = vsyncadd [#allocation6], %s28
      %s30 = sshll.u32 [#allocation5], 4
      %s31 = int_to_ptr.vmem [resolvable:$true] %s30
      %36 = dma.hbm_to_vmem [thread:$0]  %s1, 512, %s31, [#allocation6], 128, 128, 8
    $region9: #{tpu_custom_call.1} parent=1 // pred_fallthru
      _
    // Predicated region
    $region10: #{tpu_custom_call.1} parent=1 // pred_check
      _
    $region11: #{tpu_custom_call.1} parent=1 // pred_check_branch
      %38 = sbr.rel (0) target = $region13
    $region12: #{tpu_custom_call.1} parent=1 // pred_region
      %s40 = ssub.s32 256, 256
      %41 = vsyncadd [#allocation6], %s40
      %s43 = sshll.u32 [#allocation7], 4
      %s44 = int_to_ptr.vmem [resolvable:$true] %s43
      %46 = dma.hbm_to_vmem [thread:$0]  %s2, 256, %s44, [#allocation6]
    $region13: #{tpu_custom_call.1} parent=1 // pred_fallthru
      _
    // Predicated region
    $region14: #{tpu_custom_call.1} parent=1 // pred_check
      _
    $region15: #{tpu_custom_call.1} parent=1 // pred_check_branch
      %48 = sbr.rel (0) target = $region17
    $region16: #{tpu_custom_call.1} parent=1 // pred_region
      %s50 = ssub.s32 256, 256
      %51 = vsyncadd [#allocation9], %s50
      %s53 = sshll.u32 [#allocation8], 4
      %s54 = int_to_ptr.vmem [resolvable:$true] %s53
      %56 = dma.hbm_to_vmem [thread:$0]  %s3, 256, %s54, [#allocation9]
    $region17: #{tpu_custom_call.1} parent=1 // pred_fallthru
      _
    // Predicated region
    $region18: #{tpu_custom_call.1} parent=1 // pred_check
      _
    $region19: #{tpu_custom_call.1} parent=1 // pred_check_branch
      %58 = sbr.rel (0) target = $region21
    $region20: #{tpu_custom_call.1} parent=1 // pred_region
      %59 = dma.done [#allocation3], 8192
    $region21: #{tpu_custom_call.1} parent=1 // pred_fallthru
      _
    // Predicated region
    $region22: #{tpu_custom_call.1} parent=1 // pred_check
      _
    $region23: #{tpu_custom_call.1} parent=1 // pred_check_branch
      %61 = sbr.rel (0) target = $region25
    $region24: #{tpu_custom_call.1} parent=1 // pred_region
      %62 = dma.done [#allocation6], 512
    $region25: #{tpu_custom_call.1} parent=1 // pred_fallthru
      _
    // Predicated region
    $region26: #{tpu_custom_call.1} parent=1 // pred_check
      _
    $region27: #{tpu_custom_call.1} parent=1 // pred_check_branch
      %64 = sbr.rel (0) target = $region29
    $region28: #{tpu_custom_call.1} parent=1 // pred_region
      %65 = dma.done [#allocation6], 256
    $region29: #{tpu_custom_call.1} parent=1 // pred_fallthru
      _
    // Predicated region
    $region30: #{tpu_custom_call.1} parent=1 // pred_check
      _
    $region31: #{tpu_custom_call.1} parent=1 // pred_check_branch
      %67 = sbr.rel (0) target = $region33
    $region32: #{tpu_custom_call.1} parent=1 // pred_region
      %68 = dma.done [#allocation9], 256
    $region33: #{tpu_custom_call.1} parent=1 // pred_fallthru
      _
    %v69 = vld [vmem:[#allocation7] sm:$0xff]
    %v70 = vld [vmem:[#allocation7 + $0x8] sm:$0xff]
    %v71 = vld [vmem:[#allocation8] sm:$0xff]
    %v72 = vld [vmem:[#allocation8 + $0x8] sm:$0xff]
    %v73 = vld [vmem:[#allocation5] sm:$0xff]
    %v74 = vld [vmem:[#allocation5 + $0x8] sm:$0xff]
    %v75 = vld [vmem:[#allocation5 + $0x10] sm:$0xff]
    %v76 = vld [vmem:[#allocation5 + $0x18] sm:$0xff]
    %v77 = vld [vmem:[#allocation2] sm:$0xff]
    %v78 = vld [vmem:[#allocation2 + $0x8] sm:$0xff]
    %v79 = vld [vmem:[#allocation2 + $0x10] sm:$0xff]
    %v80 = vld [vmem:[#allocation2 + $0x18] sm:$0xff]
    %v81 = vld [vmem:[#allocation2 + $0x20] sm:$0xff]
    %v82 = vld [vmem:[#allocation2 + $0x28] sm:$0xff]
    %v83 = vld [vmem:[#allocation2 + $0x30] sm:$0xff]
    %v84 = vld [vmem:[#allocation2 + $0x38] sm:$0xff]
    %vm85 = vcmask 261120
    %v87 = vsel %vm85, %v73, 0
    %v90 = vsel %vm85, %v74, 0
    %v93 = vsel %vm85, %v75, 0
    %v96 = vsel %vm85, %v76, 0
    %98 = vmatprep.subr.mxu0 0.0
    %99 = vmatpush1.msra.mxu0 0.0
    %100 = vmatprep.subr.mxu0 0.0
    %101 = vmatpush1.msra.mxu0 0.0
    %102 = vmatprep.subr.mxu0 0.0
    %103 = vmatpush1.msra.mxu0 0.0
    %104 = vmatprep.subr.mxu0 0.0
    %105 = vmatpush1.msra.mxu0 0.0
    %106 = vmatprep.subr.mxu0 0.0
    %107 = vmatpush1.msra.mxu0 0.0
    %108 = vmatprep.subr.mxu0 0.0
    %109 = vmatpush1.msra.mxu0 0.0
    %110 = vmatprep.subr.mxu0 0.0
    %111 = vmatpush1.msra.mxu0 0.0
    %112 = vmatprep.subr.mxu0 0.0
    %113 = vmatpush1.msra.mxu0 0.0
    %114 = vmatprep.subr.mxu0 0.0
    %115 = vmatpush1.msra.mxu0 0.0
    %116 = vmatprep.subr.mxu0 0.0
    %117 = vmatpush1.msra.mxu0 0.0
    %118 = vmatprep.subr.mxu0 0.0
    %119 = vmatpush1.msra.mxu0 0.0
    %120 = vmatprep.subr.mxu0 0.0
    %121 = vmatpush1.msra.mxu0 0.0
    %122 = vmatprep.subr.mxu0 %v84
    %123 = vmatpush1.msra.mxu0 %v83
    %124 = vmatprep.subr.mxu0 %v82
    %125 = vmatpush1.msra.mxu0 %v81
    %126 = vmatprep.subr.mxu0 %v80
    %127 = vmatpush1.msra.mxu0 %v79
    %128 = vmatprep.subr.mxu0 %v78
    %129 = vmatpush1.msra.mxu0 %v77
    %130 = vmatprep.subr.mxu0 0.0
    %131 = vmatpush2.msra.mxu0 0.0
    %132 = vmatprep.subr.mxu0 0.0
    %133 = vmatpush2.msra.mxu0 0.0
    %134 = vmatprep.subr.mxu0 0.0
    %135 = vmatpush2.msra.mxu0 0.0
    %136 = vmatprep.subr.mxu0 0.0
    %137 = vmatpush2.msra.mxu0 0.0
    %138 = vmatprep.subr.mxu0 0.0
    %139 = vmatpush2.msra.mxu0 0.0
    %140 = vmatprep.subr.mxu0 0.0
    %141 = vmatpush2.msra.mxu0 0.0
    %142 = vmatprep.subr.mxu0 0.0
    %143 = vmatpush2.msra.mxu0 0.0
    %144 = vmatprep.subr.mxu0 0.0
    %145 = vmatpush2.msra.mxu0 0.0
    %146 = vmatprep.subr.mxu0 0.0
    %147 = vmatpush2.msra.mxu0 0.0
    %148 = vmatprep.subr.mxu0 0.0
    %149 = vmatpush2.msra.mxu0 0.0
    %150 = vmatprep.subr.mxu0 0.0
    %151 = vmatpush2.msra.mxu0 0.0
    %152 = vmatprep.subr.mxu0 0.0
    %153 = vmatpush2.msra.mxu0 0.0
    %154 = vmatprep.subr.mxu0 0.0
    %155 = vmatpush2.msra.mxu0 0.0
    %156 = vmatprep.subr.mxu0 0.0
    %157 = vmatpush2.msra.mxu0 0.0
    %158 = vmatprep.subr.mxu0 0.0
    %159 = vmatpush2.msra.mxu0 0.0
    %160 = vmatprep.subr.mxu0 0.0
    %161 = vmatpush2.msra.mxu0 0.0
    %162 = vmatprep.mubr.f32.mxu0 0.0
    %163 = vmatmul.mubr.f32.gmra.mxu0 %v87
    %v164 = vpop.f32.mrf.mxu0
    %v165 = vadd.f32 0.0, %v164
    %v166 = vpop.f32.mrf.mxu0
    %v167 = vadd.f32 0.0, %v166
    %168 = vmatprep.mubr.f32.mxu0 0.0
    %169 = vmatmul.mubr.f32.gmra.mxu0 %v90
    %v170 = vpop.f32.mrf.mxu0
    %v171 = vadd.f32 0.0, %v170
    %v172 = vpop.f32.mrf.mxu0
    %v173 = vadd.f32 0.0, %v172
    %174 = vmatprep.mubr.f32.mxu0 0.0
    %175 = vmatmul.mubr.f32.gmra.mxu0 %v93
    %v176 = vpop.f32.mrf.mxu0
    %v177 = vadd.f32 0.0, %v176
    %v178 = vpop.f32.mrf.mxu0
    %v179 = vadd.f32 0.0, %v178
    %180 = vmatprep.mubr.f32.mxu0 0.0
    %181 = vmatmul.mubr.f32.gmra.mxu0 %v96
    %v182 = vpop.f32.mrf.mxu0
    %v183 = vadd.f32 0.0, %v182
    %v184 = vpop.f32.mrf.mxu0
    %v185 = vadd.f32 0.0, %v184
    %186 = vdwg.mxu0
    %v187 = vadd.f32 %v165, %v167
    %188 = vadd.xlane.f32.xlu0 %v187
    %v189 = vpop.xlane.xlu0 %188
    %v190 = vrot.slane %v189, 4
    %v191 = vadd.f32 %v189, %v190
    %v192 = vrot.slane %v191, 2
    %v193 = vadd.f32 %v191, %v192
    %v194 = vrot.slane %v193, 1
    %v195 = vadd.f32 %v193, %v194
    %s196 = vtos %v195
    %v197 = vstv %s196
    %v198 = vrcp.pop 2048.0
    %v199 = vmul.f32 %v197, %v198
    %v200 = vsub.f32 %v165, %v199
    %v201 = vsub.f32 %v167, %v199
    %v202 = vmul.f32 %v200, %v200
    %v203 = vmul.f32 %v201, %v201
    %v204 = vadd.f32 %v202, %v203
    %205 = vadd.xlane.f32.xlu0 %v204
    %v206 = vpop.xlane.xlu0 %205
    %v207 = vrot.slane %v206, 4
    %v208 = vadd.f32 %v206, %v207
    %v209 = vrot.slane %v208, 2
    %v210 = vadd.f32 %v208, %v209
    %v211 = vrot.slane %v210, 1
    %v212 = vadd.f32 %v210, %v211
    %s213 = vtos %v212
    %v214 = vstv %s213
    %v215 = vmul.f32 %v214, %v198
    %v216 = vadd.f32 %v215, 1e-05
    %v217 = vrsqrt.pop %v216
    %v218 = vmul.f32 %v200, %v217
    %v219 = vmul.f32 %v201, %v217
    %v220 = vmul.f32 %v218, %v69
    %v221 = vmul.f32 %v219, %v70
    %v222 = vadd.f32 %v220, %v71
    %v223 = vadd.f32 %v221, %v72
    %224 = vst [vmem:[#allocation10] sm:$0xff] %v222
    %225 = vst [vmem:[#allocation10 + $0x8] sm:$0xff] %v223
    %v226 = vadd.f32 %v171, %v173
    %227 = vadd.xlane.f32.xlu0 %v226
    %v228 = vpop.xlane.xlu0 %227
    %v229 = vrot.slane %v228, 4
    %v230 = vadd.f32 %v228, %v229
    %v231 = vrot.slane %v230, 2
    %v232 = vadd.f32 %v230, %v231
    %v233 = vrot.slane %v232, 1
    %v234 = vadd.f32 %v232, %v233
    %s235 = vtos %v234
    %v236 = vstv %s235
    %v237 = vmul.f32 %v236, %v198
    %v238 = vsub.f32 %v171, %v237
    %v239 = vsub.f32 %v173, %v237
    %v240 = vmul.f32 %v238, %v238
    %v241 = vmul.f32 %v239, %v239
    %v242 = vadd.f32 %v240, %v241
    %243 = vadd.xlane.f32.xlu0 %v242
    %v244 = vpop.xlane.xlu0 %243
    %v245 = vrot.slane %v244, 4
    %v246 = vadd.f32 %v244, %v245
    %v247 = vrot.slane %v246, 2
    %v248 = vadd.f32 %v246, %v247
    %v249 = vrot.slane %v248, 1
    %v250 = vadd.f32 %v248, %v249
    %s251 = vtos %v250
    %v252 = vstv %s251
    %v253 = vmul.f32 %v252, %v198
    %v254 = vadd.f32 %v253, 1e-05
    %v255 = vrsqrt.pop %v254
    %v256 = vmul.f32 %v238, %v255
    %v257 = vmul.f32 %v239, %v255
    %v258 = vmul.f32 %v256, %v69
    %v259 = vmul.f32 %v257, %v70
    %v260 = vadd.f32 %v258, %v71
    %v261 = vadd.f32 %v259, %v72
    %262 = vst [vmem:[#allocation10 + $0x10] sm:$0xff] %v260
    %263 = vst [vmem:[#allocation10 + $0x18] sm:$0xff] %v261
    %v264 = vadd.f32 %v177, %v179
    %265 = vadd.xlane.f32.xlu0 %v264
    %v266 = vpop.xlane.xlu0 %265
    %v267 = vrot.slane %v266, 4
    %v268 = vadd.f32 %v266, %v267
    %v269 = vrot.slane %v268, 2
    %v270 = vadd.f32 %v268, %v269
    %v271 = vrot.slane %v270, 1
    %v272 = vadd.f32 %v270, %v271
    %s273 = vtos %v272
    %v274 = vstv %s273
    %v275 = vmul.f32 %v274, %v198
    %v276 = vsub.f32 %v177, %v275
    %v277 = vsub.f32 %v179, %v275
    %v278 = vmul.f32 %v276, %v276
    %v279 = vmul.f32 %v277, %v277
    %v280 = vadd.f32 %v278, %v279
    %281 = vadd.xlane.f32.xlu0 %v280
    %v282 = vpop.xlane.xlu0 %281
    %v283 = vrot.slane %v282, 4
    %v284 = vadd.f32 %v282, %v283
    %v285 = vrot.slane %v284, 2
    %v286 = vadd.f32 %v284, %v285
    %v287 = vrot.slane %v286, 1
    %v288 = vadd.f32 %v286, %v287
    %s289 = vtos %v288
    %v290 = vstv %s289
    %v291 = vmul.f32 %v290, %v198
    %v292 = vadd.f32 %v291, 1e-05
    %v293 = vrsqrt.pop %v292
    %v294 = vmul.f32 %v276, %v293
    %v295 = vmul.f32 %v277, %v293
    %v296 = vmul.f32 %v294, %v69
    %v297 = vmul.f32 %v295, %v70
    %v298 = vadd.f32 %v296, %v71
    %v299 = vadd.f32 %v297, %v72
    %300 = vst [vmem:[#allocation10 + $0x20] sm:$0xff] %v298
    %301 = vst [vmem:[#allocation10 + $0x28] sm:$0xff] %v299
    %v302 = vadd.f32 %v183, %v185
    %303 = vadd.xlane.f32.xlu0 %v302
    %v304 = vpop.xlane.xlu0 %303
    %v305 = vrot.slane %v304, 4
    %v306 = vadd.f32 %v304, %v305
    %v307 = vrot.slane %v306, 2
    %v308 = vadd.f32 %v306, %v307
    %v309 = vrot.slane %v308, 1
    %v310 = vadd.f32 %v308, %v309
    %s311 = vtos %v310
    %v312 = vstv %s311
    %v313 = vmul.f32 %v312, %v198
    %v314 = vsub.f32 %v183, %v313
    %v315 = vsub.f32 %v185, %v313
    %v316 = vmul.f32 %v314, %v314
    %v317 = vmul.f32 %v315, %v315
    %v318 = vadd.f32 %v316, %v317
    %319 = vadd.xlane.f32.xlu0 %v318
    %v320 = vpop.xlane.xlu0 %319
    %v321 = vrot.slane %v320, 4
    %v322 = vadd.f32 %v320, %v321
    %v323 = vrot.slane %v322, 2
    %v324 = vadd.f32 %v322, %v323
    %v325 = vrot.slane %v324, 1
    %v326 = vadd.f32 %v324, %v325
    %s327 = vtos %v326
    %v328 = vstv %s327
    %v329 = vmul.f32 %v328, %v198
    %v330 = vadd.f32 %v329, 1e-05
    %v331 = vrsqrt.pop %v330
    %v332 = vmul.f32 %v314, %v331
    %v333 = vmul.f32 %v315, %v331
    %v334 = vmul.f32 %v332, %v69
    %v335 = vmul.f32 %v333, %v70
    %v336 = vadd.f32 %v334, %v71
    %v337 = vadd.f32 %v335, %v72
    %338 = vst [vmem:[#allocation10 + $0x30] sm:$0xff] %v336
    %339 = vst [vmem:[#allocation10 + $0x38] sm:$0xff] %v337
    %v340 = vld [vmem:[#allocation5] sm:$0xff]
    %v341 = vld [vmem:[#allocation5 + $0x8] sm:$0xff]
    %v342 = vld [vmem:[#allocation5 + $0x10] sm:$0xff]
    %v343 = vld [vmem:[#allocation5 + $0x18] sm:$0xff]
    %s344 = scalar_lea.vmem [#allocation2], 64
    %v345 = vld [vmem:[%s344] sm:$0xff]
    %v346 = vld [vmem:[%s344 + $0x8] sm:$0xff]
    %v347 = vld [vmem:[%s344 + $0x10] sm:$0xff]
    %v348 = vld [vmem:[%s344 + $0x18] sm:$0xff]
    %v349 = vld [vmem:[%s344 + $0x20] sm:$0xff]
    %v350 = vld [vmem:[%s344 + $0x28] sm:$0xff]
    %v351 = vld [vmem:[%s344 + $0x30] sm:$0xff]
    %v352 = vld [vmem:[%s344 + $0x38] sm:$0xff]
    %v354 = vsel %vm85, %v340, 0
    %v357 = vsel %vm85, %v341, 0
    %v360 = vsel %vm85, %v342, 0
    %v363 = vsel %vm85, %v343, 0
    %365 = vmatprep.subr.mxu0 0.0
    %366 = vmatpush1.msra.mxu0 0.0
    %367 = vmatprep.subr.mxu0 0.0
    %368 = vmatpush1.msra.mxu0 0.0
    %369 = vmatprep.subr.mxu0 0.0
    %370 = vmatpush1.msra.mxu0 0.0
    %371 = vmatprep.subr.mxu0 0.0
    %372 = vmatpush1.msra.mxu0 0.0
    %373 = vmatprep.subr.mxu0 0.0
    %374 = vmatpush1.msra.mxu0 0.0
    %375 = vmatprep.subr.mxu0 0.0
    %376 = vmatpush1.msra.mxu0 0.0
    %377 = vmatprep.subr.mxu0 0.0
    %378 = vmatpush1.msra.mxu0 0.0
    %379 = vmatprep.subr.mxu0 0.0
    %380 = vmatpush1.msra.mxu0 0.0
    %381 = vmatprep.subr.mxu0 0.0
    %382 = vmatpush1.msra.mxu0 0.0
    %383 = vmatprep.subr.mxu0 0.0
    %384 = vmatpush1.msra.mxu0 0.0
    %385 = vmatprep.subr.mxu0 0.0
    %386 = vmatpush1.msra.mxu0 0.0
    %387 = vmatprep.subr.mxu0 0.0
    %388 = vmatpush1.msra.mxu0 0.0
    %389 = vmatprep.subr.mxu0 %v352
    %390 = vmatpush1.msra.mxu0 %v351
    %391 = vmatprep.subr.mxu0 %v350
    %392 = vmatpush1.msra.mxu0 %v349
    %393 = vmatprep.subr.mxu0 %v348
    %394 = vmatpush1.msra.mxu0 %v347
    %395 = vmatprep.subr.mxu0 %v346
    %396 = vmatpush1.msra.mxu0 %v345
    %397 = vmatprep.subr.mxu0 0.0
    %398 = vmatpush2.msra.mxu0 0.0
    %399 = vmatprep.subr.mxu0 0.0
    %400 = vmatpush2.msra.mxu0 0.0
    %401 = vmatprep.subr.mxu0 0.0
    %402 = vmatpush2.msra.mxu0 0.0
    %403 = vmatprep.subr.mxu0 0.0
    %404 = vmatpush2.msra.mxu0 0.0
    %405 = vmatprep.subr.mxu0 0.0
    %406 = vmatpush2.msra.mxu0 0.0
    %407 = vmatprep.subr.mxu0 0.0
    %408 = vmatpush2.msra.mxu0 0.0
    %409 = vmatprep.subr.mxu0 0.0
    %410 = vmatpush2.msra.mxu0 0.0
    %411 = vmatprep.subr.mxu0 0.0
    %412 = vmatpush2.msra.mxu0 0.0
    %413 = vmatprep.subr.mxu0 0.0
    %414 = vmatpush2.msra.mxu0 0.0
    %415 = vmatprep.subr.mxu0 0.0
    %416 = vmatpush2.msra.mxu0 0.0
    %417 = vmatprep.subr.mxu0 0.0
    %418 = vmatpush2.msra.mxu0 0.0
    %419 = vmatprep.subr.mxu0 0.0
    %420 = vmatpush2.msra.mxu0 0.0
    %421 = vmatprep.subr.mxu0 0.0
    %422 = vmatpush2.msra.mxu0 0.0
    %423 = vmatprep.subr.mxu0 0.0
    %424 = vmatpush2.msra.mxu0 0.0
    %425 = vmatprep.subr.mxu0 0.0
    %426 = vmatpush2.msra.mxu0 0.0
    %427 = vmatprep.subr.mxu0 0.0
    %428 = vmatpush2.msra.mxu0 0.0
    %429 = vmatprep.mubr.f32.mxu0 0.0
    %430 = vmatmul.mubr.f32.gmra.mxu0 %v354
    %v431 = vpop.f32.mrf.mxu0
    %v432 = vadd.f32 0.0, %v431
    %v433 = vpop.f32.mrf.mxu0
    %v434 = vadd.f32 0.0, %v433
    %435 = vmatprep.mubr.f32.mxu0 0.0
    %436 = vmatmul.mubr.f32.gmra.mxu0 %v357
    %v437 = vpop.f32.mrf.mxu0
    %v438 = vadd.f32 0.0, %v437
    %v439 = vpop.f32.mrf.mxu0
    %v440 = vadd.f32 0.0, %v439
    %441 = vmatprep.mubr.f32.mxu0 0.0
    %442 = vmatmul.mubr.f32.gmra.mxu0 %v360
    %v443 = vpop.f32.mrf.mxu0
    %v444 = vadd.f32 0.0, %v443
    %v445 = vpop.f32.mrf.mxu0
    %v446 = vadd.f32 0.0, %v445
    %447 = vmatprep.mubr.f32.mxu0 0.0
    %448 = vmatmul.mubr.f32.gmra.mxu0 %v363
    %v449 = vpop.f32.mrf.mxu0
    %v450 = vadd.f32 0.0, %v449
    %v451 = vpop.f32.mrf.mxu0
    %v452 = vadd.f32 0.0, %v451
    %453 = vdwg.mxu0
    %v454 = vadd.f32 %v432, %v434
    %455 = vadd.xlane.f32.xlu0 %v454
    %v456 = vpop.xlane.xlu0 %455
    %v457 = vrot.slane %v456, 4
    %v458 = vadd.f32 %v456, %v457
    %v459 = vrot.slane %v458, 2
    %v460 = vadd.f32 %v458, %v459
    %v461 = vrot.slane %v460, 1
    %v462 = vadd.f32 %v460, %v461
    %s463 = vtos %v462
    %v464 = vstv %s463
    %v465 = vmul.f32 %v464, %v198
    %v466 = vsub.f32 %v432, %v465
    %v467 = vsub.f32 %v434, %v465
    %v468 = vmul.f32 %v466, %v466
    %v469 = vmul.f32 %v467, %v467
    %v470 = vadd.f32 %v468, %v469
    %471 = vadd.xlane.f32.xlu0 %v470
    %v472 = vpop.xlane.xlu0 %471
    %v473 = vrot.slane %v472, 4
    %v474 = vadd.f32 %v472, %v473
    %v475 = vrot.slane %v474, 2
    %v476 = vadd.f32 %v474, %v475
    %v477 = vrot.slane %v476, 1
    %v478 = vadd.f32 %v476, %v477
    %s479 = vtos %v478
    %v480 = vstv %s479
    %v481 = vmul.f32 %v480, %v198
    %v482 = vadd.f32 %v481, 1e-05
    %v483 = vrsqrt.pop %v482
    %v484 = vmul.f32 %v466, %v483
    %v485 = vmul.f32 %v467, %v483
    %v486 = vmul.f32 %v484, %v69
    %v487 = vmul.f32 %v485, %v70
    %v488 = vadd.f32 %v486, %v71
    %v489 = vadd.f32 %v487, %v72
    %s490 = scalar_lea.vmem [#allocation10], 64
    %491 = vst [vmem:[%s490] sm:$0xff] %v488
    %492 = vst [vmem:[%s490 + $0x8] sm:$0xff] %v489
    %v493 = vadd.f32 %v438, %v440
    %494 = vadd.xlane.f32.xlu0 %v493
    %v495 = vpop.xlane.xlu0 %494
    %v496 = vrot.slane %v495, 4
    %v497 = vadd.f32 %v495, %v496
    %v498 = vrot.slane %v497, 2
    %v499 = vadd.f32 %v497, %v498
    %v500 = vrot.slane %v499, 1
    %v501 = vadd.f32 %v499, %v500
    %s502 = vtos %v501
    %v503 = vstv %s502
    %v504 = vmul.f32 %v503, %v198
    %v505 = vsub.f32 %v438, %v504
    %v506 = vsub.f32 %v440, %v504
    %v507 = vmul.f32 %v505, %v505
    %v508 = vmul.f32 %v506, %v506
    %v509 = vadd.f32 %v507, %v508
    %510 = vadd.xlane.f32.xlu0 %v509
    %v511 = vpop.xlane.xlu0 %510
    %v512 = vrot.slane %v511, 4
    %v513 = vadd.f32 %v511, %v512
    %v514 = vrot.slane %v513, 2
    %v515 = vadd.f32 %v513, %v514
    %v516 = vrot.slane %v515, 1
    %v517 = vadd.f32 %v515, %v516
    %s518 = vtos %v517
    %v519 = vstv %s518
    %v520 = vmul.f32 %v519, %v198
    %v521 = vadd.f32 %v520, 1e-05
    %v522 = vrsqrt.pop %v521
    %v523 = vmul.f32 %v505, %v522
    %v524 = vmul.f32 %v506, %v522
    %v525 = vmul.f32 %v523, %v69
    %v526 = vmul.f32 %v524, %v70
    %v527 = vadd.f32 %v525, %v71
    %v528 = vadd.f32 %v526, %v72
    %529 = vst [vmem:[%s490 + $0x10] sm:$0xff] %v527
    %530 = vst [vmem:[%s490 + $0x18] sm:$0xff] %v528
    %v531 = vadd.f32 %v444, %v446
    %532 = vadd.xlane.f32.xlu0 %v531
    %v533 = vpop.xlane.xlu0 %532
    %v534 = vrot.slane %v533, 4
    %v535 = vadd.f32 %v533, %v534
    %v536 = vrot.slane %v535, 2
    %v537 = vadd.f32 %v535, %v536
    %v538 = vrot.slane %v537, 1
    %v539 = vadd.f32 %v537, %v538
    %s540 = vtos %v539
    %v541 = vstv %s540
    %v542 = vmul.f32 %v541, %v198
    %v543 = vsub.f32 %v444, %v542
    %v544 = vsub.f32 %v446, %v542
    %v545 = vmul.f32 %v543, %v543
    %v546 = vmul.f32 %v544, %v544
    %v547 = vadd.f32 %v545, %v546
    %548 = vadd.xlane.f32.xlu0 %v547
    %v549 = vpop.xlane.xlu0 %548
    %v550 = vrot.slane %v549, 4
    %v551 = vadd.f32 %v549, %v550
    %v552 = vrot.slane %v551, 2
    %v553 = vadd.f32 %v551, %v552
    %v554 = vrot.slane %v553, 1
    %v555 = vadd.f32 %v553, %v554
    %s556 = vtos %v555
    %v557 = vstv %s556
    %v558 = vmul.f32 %v557, %v198
    %v559 = vadd.f32 %v558, 1e-05
    %v560 = vrsqrt.pop %v559
    %v561 = vmul.f32 %v543, %v560
    %v562 = vmul.f32 %v544, %v560
    %v563 = vmul.f32 %v561, %v69
    %v564 = vmul.f32 %v562, %v70
    %v565 = vadd.f32 %v563, %v71
    %v566 = vadd.f32 %v564, %v72
    %567 = vst [vmem:[%s490 + $0x20] sm:$0xff] %v565
    %568 = vst [vmem:[%s490 + $0x28] sm:$0xff] %v566
    %v569 = vadd.f32 %v450, %v452
    %570 = vadd.xlane.f32.xlu0 %v569
    %v571 = vpop.xlane.xlu0 %570
    %v572 = vrot.slane %v571, 4
    %v573 = vadd.f32 %v571, %v572
    %v574 = vrot.slane %v573, 2
    %v575 = vadd.f32 %v573, %v574
    %v576 = vrot.slane %v575, 1
    %v577 = vadd.f32 %v575, %v576
    %s578 = vtos %v577
    %v579 = vstv %s578
    %v580 = vmul.f32 %v579, %v198
    %v581 = vsub.f32 %v450, %v580
    %v582 = vsub.f32 %v452, %v580
    %v583 = vmul.f32 %v581, %v581
    %v584 = vmul.f32 %v582, %v582
    %v585 = vadd.f32 %v583, %v584
    %586 = vadd.xlane.f32.xlu0 %v585
    %v587 = vpop.xlane.xlu0 %586
    %v588 = vrot.slane %v587, 4
    %v589 = vadd.f32 %v587, %v588
    %v590 = vrot.slane %v589, 2
    %v591 = vadd.f32 %v589, %v590
    %v592 = vrot.slane %v591, 1
    %v593 = vadd.f32 %v591, %v592
    %s594 = vtos %v593
    %v595 = vstv %s594
    %v596 = vmul.f32 %v595, %v198
    %v597 = vadd.f32 %v596, 1e-05
    %v598 = vrsqrt.pop %v597
    %v599 = vmul.f32 %v581, %v598
    %v600 = vmul.f32 %v582, %v598
    %v601 = vmul.f32 %v599, %v69
    %v602 = vmul.f32 %v600, %v70
    %v603 = vadd.f32 %v601, %v71
    %v604 = vadd.f32 %v602, %v72
    %605 = vst [vmem:[%s490 + $0x30] sm:$0xff] %v603
    %606 = vst [vmem:[%s490 + $0x38] sm:$0xff] %v604
    %v607 = vld [vmem:[#allocation5] sm:$0xff]
    %v608 = vld [vmem:[#allocation5 + $0x8] sm:$0xff]
    %v609 = vld [vmem:[#allocation5 + $0x10] sm:$0xff]
    %v610 = vld [vmem:[#allocation5 + $0x18] sm:$0xff]
    %s611 = scalar_lea.vmem [#allocation2], 128
    %v612 = vld [vmem:[%s611] sm:$0xff]
    %v613 = vld [vmem:[%s611 + $0x8] sm:$0xff]
    %v614 = vld [vmem:[%s611 + $0x10] sm:$0xff]
    %v615 = vld [vmem:[%s611 + $0x18] sm:$0xff]
    %v616 = vld [vmem:[%s611 + $0x20] sm:$0xff]
    %v617 = vld [vmem:[%s611 + $0x28] sm:$0xff]
    %v618 = vld [vmem:[%s611 + $0x30] sm:$0xff]
    %v619 = vld [vmem:[%s611 + $0x38] sm:$0xff]
    %v621 = vsel %vm85, %v607, 0
    %v624 = vsel %vm85, %v608, 0
    %v627 = vsel %vm85, %v609, 0
    %v630 = vsel %vm85, %v610, 0
    %632 = vmatprep.subr.mxu0 0.0
    %633 = vmatpush1.msra.mxu0 0.0
    %634 = vmatprep.subr.mxu0 0.0
    %635 = vmatpush1.msra.mxu0 0.0
    %636 = vmatprep.subr.mxu0 0.0
    %637 = vmatpush1.msra.mxu0 0.0
    %638 = vmatprep.subr.mxu0 0.0
    %639 = vmatpush1.msra.mxu0 0.0
    %640 = vmatprep.subr.mxu0 0.0
    %641 = vmatpush1.msra.mxu0 0.0
    %642 = vmatprep.subr.mxu0 0.0
    %643 = vmatpush1.msra.mxu0 0.0
    %644 = vmatprep.subr.mxu0 0.0
    %645 = vmatpush1.msra.mxu0 0.0
    %646 = vmatprep.subr.mxu0 0.0
    %647 = vmatpush1.msra.mxu0 0.0
    %648 = vmatprep.subr.mxu0 0.0
    %649 = vmatpush1.msra.mxu0 0.0
    %650 = vmatprep.subr.mxu0 0.0
    %651 = vmatpush1.msra.mxu0 0.0
    %652 = vmatprep.subr.mxu0 0.0
    %653 = vmatpush1.msra.mxu0 0.0
    %654 = vmatprep.subr.mxu0 0.0
    %655 = vmatpush1.msra.mxu0 0.0
    %656 = vmatprep.subr.mxu0 %v619
    %657 = vmatpush1.msra.mxu0 %v618
    %658 = vmatprep.subr.mxu0 %v617
    %659 = vmatpush1.msra.mxu0 %v616
    %660 = vmatprep.subr.mxu0 %v615
    %661 = vmatpush1.msra.mxu0 %v614
    %662 = vmatprep.subr.mxu0 %v613
    %663 = vmatpush1.msra.mxu0 %v612
    %664 = vmatprep.subr.mxu0 0.0
    %665 = vmatpush2.msra.mxu0 0.0
    %666 = vmatprep.subr.mxu0 0.0
    %667 = vmatpush2.msra.mxu0 0.0
    %668 = vmatprep.subr.mxu0 0.0
    %669 = vmatpush2.msra.mxu0 0.0
    %670 = vmatprep.subr.mxu0 0.0
    %671 = vmatpush2.msra.mxu0 0.0
    %672 = vmatprep.subr.mxu0 0.0
    %673 = vmatpush2.msra.mxu0 0.0
    %674 = vmatprep.subr.mxu0 0.0
    %675 = vmatpush2.msra.mxu0 0.0
    %676 = vmatprep.subr.mxu0 0.0
    %677 = vmatpush2.msra.mxu0 0.0
    %678 = vmatprep.subr.mxu0 0.0
    %679 = vmatpush2.msra.mxu0 0.0
    %680 = vmatprep.subr.mxu0 0.0
    %681 = vmatpush2.msra.mxu0 0.0
    %682 = vmatprep.subr.mxu0 0.0
    %683 = vmatpush2.msra.mxu0 0.0
    %684 = vmatprep.subr.mxu0 0.0
    %685 = vmatpush2.msra.mxu0 0.0
    %686 = vmatprep.subr.mxu0 0.0
    %687 = vmatpush2.msra.mxu0 0.0
    %688 = vmatprep.subr.mxu0 0.0
    %689 = vmatpush2.msra.mxu0 0.0
    %690 = vmatprep.subr.mxu0 0.0
    %691 = vmatpush2.msra.mxu0 0.0
    %692 = vmatprep.subr.mxu0 0.0
    %693 = vmatpush2.msra.mxu0 0.0
    %694 = vmatprep.subr.mxu0 0.0
    %695 = vmatpush2.msra.mxu0 0.0
    %696 = vmatprep.mubr.f32.mxu0 0.0
    %697 = vmatmul.mubr.f32.gmra.mxu0 %v621
    %v698 = vpop.f32.mrf.mxu0
    %v699 = vadd.f32 0.0, %v698
    %v700 = vpop.f32.mrf.mxu0
    %v701 = vadd.f32 0.0, %v700
    %702 = vmatprep.mubr.f32.mxu0 0.0
    %703 = vmatmul.mubr.f32.gmra.mxu0 %v624
    %v704 = vpop.f32.mrf.mxu0
    %v705 = vadd.f32 0.0, %v704
    %v706 = vpop.f32.mrf.mxu0
    %v707 = vadd.f32 0.0, %v706
    %708 = vmatprep.mubr.f32.mxu0 0.0
    %709 = vmatmul.mubr.f32.gmra.mxu0 %v627
    %v710 = vpop.f32.mrf.mxu0
    %v711 = vadd.f32 0.0, %v710
    %v712 = vpop.f32.mrf.mxu0
    %v713 = vadd.f32 0.0, %v712
    %714 = vmatprep.mubr.f32.mxu0 0.0
    %715 = vmatmul.mubr.f32.gmra.mxu0 %v630
    %v716 = vpop.f32.mrf.mxu0
    %v717 = vadd.f32 0.0, %v716
    %v718 = vpop.f32.mrf.mxu0
    %v719 = vadd.f32 0.0, %v718
    %720 = vdwg.mxu0
    %v721 = vadd.f32 %v699, %v701
    %722 = vadd.xlane.f32.xlu0 %v721
    %v723 = vpop.xlane.xlu0 %722
    %v724 = vrot.slane %v723, 4
    %v725 = vadd.f32 %v723, %v724
    %v726 = vrot.slane %v725, 2
    %v727 = vadd.f32 %v725, %v726
    %v728 = vrot.slane %v727, 1
    %v729 = vadd.f32 %v727, %v728
    %s730 = vtos %v729
    %v731 = vstv %s730
    %v732 = vmul.f32 %v731, %v198
    %v733 = vsub.f32 %v699, %v732
    %v734 = vsub.f32 %v701, %v732
    %v735 = vmul.f32 %v733, %v733
    %v736 = vmul.f32 %v734, %v734
    %v737 = vadd.f32 %v735, %v736
    %738 = vadd.xlane.f32.xlu0 %v737
    %v739 = vpop.xlane.xlu0 %738
    %v740 = vrot.slane %v739, 4
    %v741 = vadd.f32 %v739, %v740
    %v742 = vrot.slane %v741, 2
    %v743 = vadd.f32 %v741, %v742
    %v744 = vrot.slane %v743, 1
    %v745 = vadd.f32 %v743, %v744
    %s746 = vtos %v745
    %v747 = vstv %s746
    %v748 = vmul.f32 %v747, %v198
    %v749 = vadd.f32 %v748, 1e-05
    %v750 = vrsqrt.pop %v749
    %v751 = vmul.f32 %v733, %v750
    %v752 = vmul.f32 %v734, %v750
    %v753 = vmul.f32 %v751, %v69
    %v754 = vmul.f32 %v752, %v70
    %v755 = vadd.f32 %v753, %v71
    %v756 = vadd.f32 %v754, %v72
    %s757 = scalar_lea.vmem [#allocation10], 128
    %758 = vst [vmem:[%s757] sm:$0xff] %v755
    %759 = vst [vmem:[%s757 + $0x8] sm:$0xff] %v756
    %v760 = vadd.f32 %v705, %v707
    %761 = vadd.xlane.f32.xlu0 %v760
    %v762 = vpop.xlane.xlu0 %761
    %v763 = vrot.slane %v762, 4
    %v764 = vadd.f32 %v762, %v763
    %v765 = vrot.slane %v764, 2
    %v766 = vadd.f32 %v764, %v765
    %v767 = vrot.slane %v766, 1
    %v768 = vadd.f32 %v766, %v767
    %s769 = vtos %v768
    %v770 = vstv %s769
    %v771 = vmul.f32 %v770, %v198
    %v772 = vsub.f32 %v705, %v771
    %v773 = vsub.f32 %v707, %v771
    %v774 = vmul.f32 %v772, %v772
    %v775 = vmul.f32 %v773, %v773
    %v776 = vadd.f32 %v774, %v775
    %777 = vadd.xlane.f32.xlu0 %v776
    %v778 = vpop.xlane.xlu0 %777
    %v779 = vrot.slane %v778, 4
    %v780 = vadd.f32 %v778, %v779
    %v781 = vrot.slane %v780, 2
    %v782 = vadd.f32 %v780, %v781
    %v783 = vrot.slane %v782, 1
    %v784 = vadd.f32 %v782, %v783
    %s785 = vtos %v784
    %v786 = vstv %s785
    %v787 = vmul.f32 %v786, %v198
    %v788 = vadd.f32 %v787, 1e-05
    %v789 = vrsqrt.pop %v788
    %v790 = vmul.f32 %v772, %v789
    %v791 = vmul.f32 %v773, %v789
    %v792 = vmul.f32 %v790, %v69
    %v793 = vmul.f32 %v791, %v70
    %v794 = vadd.f32 %v792, %v71
    %v795 = vadd.f32 %v793, %v72
    %796 = vst [vmem:[%s757 + $0x10] sm:$0xff] %v794
    %797 = vst [vmem:[%s757 + $0x18] sm:$0xff] %v795
    %v798 = vadd.f32 %v711, %v713
    %799 = vadd.xlane.f32.xlu0 %v798
    %v800 = vpop.xlane.xlu0 %799
    %v801 = vrot.slane %v800, 4
    %v802 = vadd.f32 %v800, %v801
    %v803 = vrot.slane %v802, 2
    %v804 = vadd.f32 %v802, %v803
    %v805 = vrot.slane %v804, 1
    %v806 = vadd.f32 %v804, %v805
    %s807 = vtos %v806
    %v808 = vstv %s807
    %v809 = vmul.f32 %v808, %v198
    %v810 = vsub.f32 %v711, %v809
    %v811 = vsub.f32 %v713, %v809
    %v812 = vmul.f32 %v810, %v810
    %v813 = vmul.f32 %v811, %v811
    %v814 = vadd.f32 %v812, %v813
    %815 = vadd.xlane.f32.xlu0 %v814
    %v816 = vpop.xlane.xlu0 %815
    %v817 = vrot.slane %v816, 4
    %v818 = vadd.f32 %v816, %v817
    %v819 = vrot.slane %v818, 2
    %v820 = vadd.f32 %v818, %v819
    %v821 = vrot.slane %v820, 1
    %v822 = vadd.f32 %v820, %v821
    %s823 = vtos %v822
    %v824 = vstv %s823
    %v825 = vmul.f32 %v824, %v198
    %v826 = vadd.f32 %v825, 1e-05
    %v827 = vrsqrt.pop %v826
    %v828 = vmul.f32 %v810, %v827
    %v829 = vmul.f32 %v811, %v827
    %v830 = vmul.f32 %v828, %v69
    %v831 = vmul.f32 %v829, %v70
    %v832 = vadd.f32 %v830, %v71
    %v833 = vadd.f32 %v831, %v72
    %834 = vst [vmem:[%s757 + $0x20] sm:$0xff] %v832
    %835 = vst [vmem:[%s757 + $0x28] sm:$0xff] %v833
    %v836 = vadd.f32 %v717, %v719
    %837 = vadd.xlane.f32.xlu0 %v836
    %v838 = vpop.xlane.xlu0 %837
    %v839 = vrot.slane %v838, 4
    %v840 = vadd.f32 %v838, %v839
    %v841 = vrot.slane %v840, 2
    %v842 = vadd.f32 %v840, %v841
    %v843 = vrot.slane %v842, 1
    %v844 = vadd.f32 %v842, %v843
    %s845 = vtos %v844
    %v846 = vstv %s845
    %v847 = vmul.f32 %v846, %v198
    %v848 = vsub.f32 %v717, %v847
    %v849 = vsub.f32 %v719, %v847
    %v850 = vmul.f32 %v848, %v848
    %v851 = vmul.f32 %v849, %v849
    %v852 = vadd.f32 %v850, %v851
    %853 = vadd.xlane.f32.xlu0 %v852
    %v854 = vpop.xlane.xlu0 %853
    %v855 = vrot.slane %v854, 4
    %v856 = vadd.f32 %v854, %v855
    %v857 = vrot.slane %v856, 2
    %v858 = vadd.f32 %v856, %v857
    %v859 = vrot.slane %v858, 1
    %v860 = vadd.f32 %v858, %v859
    %s861 = vtos %v860
    %v862 = vstv %s861
    %v863 = vmul.f32 %v862, %v198
    %v864 = vadd.f32 %v863, 1e-05
    %v865 = vrsqrt.pop %v864
    %v866 = vmul.f32 %v848, %v865
    %v867 = vmul.f32 %v849, %v865
    %v868 = vmul.f32 %v866, %v69
    %v869 = vmul.f32 %v867, %v70
    %v870 = vadd.f32 %v868, %v71
    %v871 = vadd.f32 %v869, %v72
    %872 = vst [vmem:[%s757 + $0x30] sm:$0xff] %v870
    %873 = vst [vmem:[%s757 + $0x38] sm:$0xff] %v871
    %v874 = vld [vmem:[#allocation5] sm:$0xff]
    %v875 = vld [vmem:[#allocation5 + $0x8] sm:$0xff]
    %v876 = vld [vmem:[#allocation5 + $0x10] sm:$0xff]
    %v877 = vld [vmem:[#allocation5 + $0x18] sm:$0xff]
    %s878 = scalar_lea.vmem [#allocation2], 192
    %v879 = vld [vmem:[%s878] sm:$0xff]
    %v880 = vld [vmem:[%s878 + $0x8] sm:$0xff]
    %v881 = vld [vmem:[%s878 + $0x10] sm:$0xff]
    %v882 = vld [vmem:[%s878 + $0x18] sm:$0xff]
    %v883 = vld [vmem:[%s878 + $0x20] sm:$0xff]
    %v884 = vld [vmem:[%s878 + $0x28] sm:$0xff]
    %v885 = vld [vmem:[%s878 + $0x30] sm:$0xff]
    %v886 = vld [vmem:[%s878 + $0x38] sm:$0xff]
    %v888 = vsel %vm85, %v874, 0
    %v891 = vsel %vm85, %v875, 0
    %v894 = vsel %vm85, %v876, 0
    %v897 = vsel %vm85, %v877, 0
    %899 = vmatprep.subr.mxu0 0.0
    %900 = vmatpush1.msra.mxu0 0.0
    %901 = vmatprep.subr.mxu0 0.0
    %902 = vmatpush1.msra.mxu0 0.0
    %903 = vmatprep.subr.mxu0 0.0
    %904 = vmatpush1.msra.mxu0 0.0
    %905 = vmatprep.subr.mxu0 0.0
    %906 = vmatpush1.msra.mxu0 0.0
    %907 = vmatprep.subr.mxu0 0.0
    %908 = vmatpush1.msra.mxu0 0.0
    %909 = vmatprep.subr.mxu0 0.0
    %910 = vmatpush1.msra.mxu0 0.0
    %911 = vmatprep.subr.mxu0 0.0
    %912 = vmatpush1.msra.mxu0 0.0
    %913 = vmatprep.subr.mxu0 0.0
    %914 = vmatpush1.msra.mxu0 0.0
    %915 = vmatprep.subr.mxu0 0.0
    %916 = vmatpush1.msra.mxu0 0.0
    %917 = vmatprep.subr.mxu0 0.0
    %918 = vmatpush1.msra.mxu0 0.0
    %919 = vmatprep.subr.mxu0 0.0
    %920 = vmatpush1.msra.mxu0 0.0
    %921 = vmatprep.subr.mxu0 0.0
    %922 = vmatpush1.msra.mxu0 0.0
    %923 = vmatprep.subr.mxu0 %v886
    %924 = vmatpush1.msra.mxu0 %v885
    %925 = vmatprep.subr.mxu0 %v884
    %926 = vmatpush1.msra.mxu0 %v883
    %927 = vmatprep.subr.mxu0 %v882
    %928 = vmatpush1.msra.mxu0 %v881
    %929 = vmatprep.subr.mxu0 %v880
    %930 = vmatpush1.msra.mxu0 %v879
    %931 = vmatprep.subr.mxu0 0.0
    %932 = vmatpush2.msra.mxu0 0.0
    %933 = vmatprep.subr.mxu0 0.0
    %934 = vmatpush2.msra.mxu0 0.0
    %935 = vmatprep.subr.mxu0 0.0
    %936 = vmatpush2.msra.mxu0 0.0
    %937 = vmatprep.subr.mxu0 0.0
    %938 = vmatpush2.msra.mxu0 0.0
    %939 = vmatprep.subr.mxu0 0.0
    %940 = vmatpush2.msra.mxu0 0.0
    %941 = vmatprep.subr.mxu0 0.0
    %942 = vmatpush2.msra.mxu0 0.0
    %943 = vmatprep.subr.mxu0 0.0
    %944 = vmatpush2.msra.mxu0 0.0
    %945 = vmatprep.subr.mxu0 0.0
    %946 = vmatpush2.msra.mxu0 0.0
    %947 = vmatprep.subr.mxu0 0.0
    %948 = vmatpush2.msra.mxu0 0.0
    %949 = vmatprep.subr.mxu0 0.0
    %950 = vmatpush2.msra.mxu0 0.0
    %951 = vmatprep.subr.mxu0 0.0
    %952 = vmatpush2.msra.mxu0 0.0
    %953 = vmatprep.subr.mxu0 0.0
    %954 = vmatpush2.msra.mxu0 0.0
    %955 = vmatprep.subr.mxu0 0.0
    %956 = vmatpush2.msra.mxu0 0.0
    %957 = vmatprep.subr.mxu0 0.0
    %958 = vmatpush2.msra.mxu0 0.0
    %959 = vmatprep.subr.mxu0 0.0
    %960 = vmatpush2.msra.mxu0 0.0
    %961 = vmatprep.subr.mxu0 0.0
    %962 = vmatpush2.msra.mxu0 0.0
    %963 = vmatprep.mubr.f32.mxu0 0.0
    %964 = vmatmul.mubr.f32.gmra.mxu0 %v888
    %v965 = vpop.f32.mrf.mxu0
    %v966 = vadd.f32 0.0, %v965
    %v967 = vpop.f32.mrf.mxu0
    %v968 = vadd.f32 0.0, %v967
    %969 = vmatprep.mubr.f32.mxu0 0.0
    %970 = vmatmul.mubr.f32.gmra.mxu0 %v891
    %v971 = vpop.f32.mrf.mxu0
    %v972 = vadd.f32 0.0, %v971
    %v973 = vpop.f32.mrf.mxu0
    %v974 = vadd.f32 0.0, %v973
    %975 = vmatprep.mubr.f32.mxu0 0.0
    %976 = vmatmul.mubr.f32.gmra.mxu0 %v894
    %v977 = vpop.f32.mrf.mxu0
    %v978 = vadd.f32 0.0, %v977
    %v979 = vpop.f32.mrf.mxu0
    %v980 = vadd.f32 0.0, %v979
    %981 = vmatprep.mubr.f32.mxu0 0.0
    %982 = vmatmul.mubr.f32.gmra.mxu0 %v897
    %v983 = vpop.f32.mrf.mxu0
    %v984 = vadd.f32 0.0, %v983
    %v985 = vpop.f32.mrf.mxu0
    %v986 = vadd.f32 0.0, %v985
    %987 = vdwg.mxu0
    %v988 = vadd.f32 %v966, %v968
    %989 = vadd.xlane.f32.xlu0 %v988
    %v990 = vpop.xlane.xlu0 %989
    %v991 = vrot.slane %v990, 4
    %v992 = vadd.f32 %v990, %v991
    %v993 = vrot.slane %v992, 2
    %v994 = vadd.f32 %v992, %v993
    %v995 = vrot.slane %v994, 1
    %v996 = vadd.f32 %v994, %v995
    %s997 = vtos %v996
    %v998 = vstv %s997
    %v999 = vmul.f32 %v998, %v198
    %v1000 = vsub.f32 %v966, %v999
    %v1001 = vsub.f32 %v968, %v999
    %v1002 = vmul.f32 %v1000, %v1000
    %v1003 = vmul.f32 %v1001, %v1001
    %v1004 = vadd.f32 %v1002, %v1003
    %1005 = vadd.xlane.f32.xlu0 %v1004
    %v1006 = vpop.xlane.xlu0 %1005
    %v1007 = vrot.slane %v1006, 4
    %v1008 = vadd.f32 %v1006, %v1007
    %v1009 = vrot.slane %v1008, 2
    %v1010 = vadd.f32 %v1008, %v1009
    %v1011 = vrot.slane %v1010, 1
    %v1012 = vadd.f32 %v1010, %v1011
    %s1013 = vtos %v1012
    %v1014 = vstv %s1013
    %v1015 = vmul.f32 %v1014, %v198
    %v1016 = vadd.f32 %v1015, 1e-05
    %v1017 = vrsqrt.pop %v1016
    %v1018 = vmul.f32 %v1000, %v1017
    %v1019 = vmul.f32 %v1001, %v1017
    %v1020 = vmul.f32 %v1018, %v69
    %v1021 = vmul.f32 %v1019, %v70
    %v1022 = vadd.f32 %v1020, %v71
    %v1023 = vadd.f32 %v1021, %v72
    %s1024 = scalar_lea.vmem [#allocation10], 192
    %1025 = vst [vmem:[%s1024] sm:$0xff] %v1022
    %1026 = vst [vmem:[%s1024 + $0x8] sm:$0xff] %v1023
    %v1027 = vadd.f32 %v972, %v974
    %1028 = vadd.xlane.f32.xlu0 %v1027
    %v1029 = vpop.xlane.xlu0 %1028
    %v1030 = vrot.slane %v1029, 4
    %v1031 = vadd.f32 %v1029, %v1030
    %v1032 = vrot.slane %v1031, 2
    %v1033 = vadd.f32 %v1031, %v1032
    %v1034 = vrot.slane %v1033, 1
    %v1035 = vadd.f32 %v1033, %v1034
    %s1036 = vtos %v1035
    %v1037 = vstv %s1036
    %v1038 = vmul.f32 %v1037, %v198
    %v1039 = vsub.f32 %v972, %v1038
    %v1040 = vsub.f32 %v974, %v1038
    %v1041 = vmul.f32 %v1039, %v1039
    %v1042 = vmul.f32 %v1040, %v1040
    %v1043 = vadd.f32 %v1041, %v1042
    %1044 = vadd.xlane.f32.xlu0 %v1043
    %v1045 = vpop.xlane.xlu0 %1044
    %v1046 = vrot.slane %v1045, 4
    %v1047 = vadd.f32 %v1045, %v1046
    %v1048 = vrot.slane %v1047, 2
    %v1049 = vadd.f32 %v1047, %v1048
    %v1050 = vrot.slane %v1049, 1
    %v1051 = vadd.f32 %v1049, %v1050
    %s1052 = vtos %v1051
    %v1053 = vstv %s1052
    %v1054 = vmul.f32 %v1053, %v198
    %v1055 = vadd.f32 %v1054, 1e-05
    %v1056 = vrsqrt.pop %v1055
    %v1057 = vmul.f32 %v1039, %v1056
    %v1058 = vmul.f32 %v1040, %v1056
    %v1059 = vmul.f32 %v1057, %v69
    %v1060 = vmul.f32 %v1058, %v70
    %v1061 = vadd.f32 %v1059, %v71
    %v1062 = vadd.f32 %v1060, %v72
    %1063 = vst [vmem:[%s1024 + $0x10] sm:$0xff] %v1061
    %1064 = vst [vmem:[%s1024 + $0x18] sm:$0xff] %v1062
    %v1065 = vadd.f32 %v978, %v980
    %1066 = vadd.xlane.f32.xlu0 %v1065
    %v1067 = vpop.xlane.xlu0 %1066
    %v1068 = vrot.slane %v1067, 4
    %v1069 = vadd.f32 %v1067, %v1068
    %v1070 = vrot.slane %v1069, 2
    %v1071 = vadd.f32 %v1069, %v1070
    %v1072 = vrot.slane %v1071, 1
    %v1073 = vadd.f32 %v1071, %v1072
    %s1074 = vtos %v1073
    %v1075 = vstv %s1074
    %v1076 = vmul.f32 %v1075, %v198
    %v1077 = vsub.f32 %v978, %v1076
    %v1078 = vsub.f32 %v980, %v1076
    %v1079 = vmul.f32 %v1077, %v1077
    %v1080 = vmul.f32 %v1078, %v1078
    %v1081 = vadd.f32 %v1079, %v1080
    %1082 = vadd.xlane.f32.xlu0 %v1081
    %v1083 = vpop.xlane.xlu0 %1082
    %v1084 = vrot.slane %v1083, 4
    %v1085 = vadd.f32 %v1083, %v1084
    %v1086 = vrot.slane %v1085, 2
    %v1087 = vadd.f32 %v1085, %v1086
    %v1088 = vrot.slane %v1087, 1
    %v1089 = vadd.f32 %v1087, %v1088
    %s1090 = vtos %v1089
    %v1091 = vstv %s1090
    %v1092 = vmul.f32 %v1091, %v198
    %v1093 = vadd.f32 %v1092, 1e-05
    %v1094 = vrsqrt.pop %v1093
    %v1095 = vmul.f32 %v1077, %v1094
    %v1096 = vmul.f32 %v1078, %v1094
    %v1097 = vmul.f32 %v1095, %v69
    %v1098 = vmul.f32 %v1096, %v70
    %v1099 = vadd.f32 %v1097, %v71
    %v1100 = vadd.f32 %v1098, %v72
    %1101 = vst [vmem:[%s1024 + $0x20] sm:$0xff] %v1099
    %1102 = vst [vmem:[%s1024 + $0x28] sm:$0xff] %v1100
    %v1103 = vadd.f32 %v984, %v986
    %1104 = vadd.xlane.f32.xlu0 %v1103
    %v1105 = vpop.xlane.xlu0 %1104
    %v1106 = vrot.slane %v1105, 4
    %v1107 = vadd.f32 %v1105, %v1106
    %v1108 = vrot.slane %v1107, 2
    %v1109 = vadd.f32 %v1107, %v1108
    %v1110 = vrot.slane %v1109, 1
    %v1111 = vadd.f32 %v1109, %v1110
    %s1112 = vtos %v1111
    %v1113 = vstv %s1112
    %v1114 = vmul.f32 %v1113, %v198
    %v1115 = vsub.f32 %v984, %v1114
    %v1116 = vsub.f32 %v986, %v1114
    %v1117 = vmul.f32 %v1115, %v1115
    %v1118 = vmul.f32 %v1116, %v1116
    %v1119 = vadd.f32 %v1117, %v1118
    %1120 = vadd.xlane.f32.xlu0 %v1119
    %v1121 = vpop.xlane.xlu0 %1120
    %v1122 = vrot.slane %v1121, 4
    %v1123 = vadd.f32 %v1121, %v1122
    %v1124 = vrot.slane %v1123, 2
    %v1125 = vadd.f32 %v1123, %v1124
    %v1126 = vrot.slane %v1125, 1
    %v1127 = vadd.f32 %v1125, %v1126
    %s1128 = vtos %v1127
    %v1129 = vstv %s1128
    %v1130 = vmul.f32 %v1129, %v198
    %v1131 = vadd.f32 %v1130, 1e-05
    %v1132 = vrsqrt.pop %v1131
    %v1133 = vmul.f32 %v1115, %v1132
    %v1134 = vmul.f32 %v1116, %v1132
    %v1135 = vmul.f32 %v1133, %v69
    %v1136 = vmul.f32 %v1134, %v70
    %v1137 = vadd.f32 %v1135, %v71
    %v1138 = vadd.f32 %v1136, %v72
    %1139 = vst [vmem:[%s1024 + $0x30] sm:$0xff] %v1137
    %1140 = vst [vmem:[%s1024 + $0x38] sm:$0xff] %v1138
    %v1141 = vld [vmem:[#allocation5] sm:$0xff]
    %v1142 = vld [vmem:[#allocation5 + $0x8] sm:$0xff]
    %v1143 = vld [vmem:[#allocation5 + $0x10] sm:$0xff]
    %v1144 = vld [vmem:[#allocation5 + $0x18] sm:$0xff]
    %s1145 = scalar_lea.vmem [#allocation2], 256
    %v1146 = vld [vmem:[%s1145] sm:$0xff]
    %v1147 = vld [vmem:[%s1145 + $0x8] sm:$0xff]
    %v1148 = vld [vmem:[%s1145 + $0x10] sm:$0xff]
    %v1149 = vld [vmem:[%s1145 + $0x18] sm:$0xff]
    %v1150 = vld [vmem:[%s1145 + $0x20] sm:$0xff]
    %v1151 = vld [vmem:[%s1145 + $0x28] sm:$0xff]
    %v1152 = vld [vmem:[%s1145 + $0x30] sm:$0xff]
    %v1153 = vld [vmem:[%s1145 + $0x38] sm:$0xff]
    %v1155 = vsel %vm85, %v1141, 0
    %v1158 = vsel %vm85, %v1142, 0
    %v1161 = vsel %vm85, %v1143, 0
    %v1164 = vsel %vm85, %v1144, 0
    %1166 = vmatprep.subr.mxu0 0.0
    %1167 = vmatpush1.msra.mxu0 0.0
    %1168 = vmatprep.subr.mxu0 0.0
    %1169 = vmatpush1.msra.mxu0 0.0
    %1170 = vmatprep.subr.mxu0 0.0
    %1171 = vmatpush1.msra.mxu0 0.0
    %1172 = vmatprep.subr.mxu0 0.0
    %1173 = vmatpush1.msra.mxu0 0.0
    %1174 = vmatprep.subr.mxu0 0.0
    %1175 = vmatpush1.msra.mxu0 0.0
    %1176 = vmatprep.subr.mxu0 0.0
    %1177 = vmatpush1.msra.mxu0 0.0
    %1178 = vmatprep.subr.mxu0 0.0
    %1179 = vmatpush1.msra.mxu0 0.0
    %1180 = vmatprep.subr.mxu0 0.0
    %1181 = vmatpush1.msra.mxu0 0.0
    %1182 = vmatprep.subr.mxu0 0.0
    %1183 = vmatpush1.msra.mxu0 0.0
    %1184 = vmatprep.subr.mxu0 0.0
    %1185 = vmatpush1.msra.mxu0 0.0
    %1186 = vmatprep.subr.mxu0 0.0
    %1187 = vmatpush1.msra.mxu0 0.0
    %1188 = vmatprep.subr.mxu0 0.0
    %1189 = vmatpush1.msra.mxu0 0.0
    %1190 = vmatprep.subr.mxu0 %v1153
    %1191 = vmatpush1.msra.mxu0 %v1152
    %1192 = vmatprep.subr.mxu0 %v1151
    %1193 = vmatpush1.msra.mxu0 %v1150
    %1194 = vmatprep.subr.mxu0 %v1149
    %1195 = vmatpush1.msra.mxu0 %v1148
    %1196 = vmatprep.subr.mxu0 %v1147
    %1197 = vmatpush1.msra.mxu0 %v1146
    %1198 = vmatprep.subr.mxu0 0.0
    %1199 = vmatpush2.msra.mxu0 0.0
    %1200 = vmatprep.subr.mxu0 0.0
    %1201 = vmatpush2.msra.mxu0 0.0
    %1202 = vmatprep.subr.mxu0 0.0
    %1203 = vmatpush2.msra.mxu0 0.0
    %1204 = vmatprep.subr.mxu0 0.0
    %1205 = vmatpush2.msra.mxu0 0.0
    %1206 = vmatprep.subr.mxu0 0.0
    %1207 = vmatpush2.msra.mxu0 0.0
    %1208 = vmatprep.subr.mxu0 0.0
    %1209 = vmatpush2.msra.mxu0 0.0
    %1210 = vmatprep.subr.mxu0 0.0
    %1211 = vmatpush2.msra.mxu0 0.0
    %1212 = vmatprep.subr.mxu0 0.0
    %1213 = vmatpush2.msra.mxu0 0.0
    %1214 = vmatprep.subr.mxu0 0.0
    %1215 = vmatpush2.msra.mxu0 0.0
    %1216 = vmatprep.subr.mxu0 0.0
    %1217 = vmatpush2.msra.mxu0 0.0
    %1218 = vmatprep.subr.mxu0 0.0
    %1219 = vmatpush2.msra.mxu0 0.0
    %1220 = vmatprep.subr.mxu0 0.0
    %1221 = vmatpush2.msra.mxu0 0.0
    %1222 = vmatprep.subr.mxu0 0.0
    %1223 = vmatpush2.msra.mxu0 0.0
    %1224 = vmatprep.subr.mxu0 0.0
    %1225 = vmatpush2.msra.mxu0 0.0
    %1226 = vmatprep.subr.mxu0 0.0
    %1227 = vmatpush2.msra.mxu0 0.0
    %1228 = vmatprep.subr.mxu0 0.0
    %1229 = vmatpush2.msra.mxu0 0.0
    %1230 = vmatprep.mubr.f32.mxu0 0.0
    %1231 = vmatmul.mubr.f32.gmra.mxu0 %v1155
    %v1232 = vpop.f32.mrf.mxu0
    %v1233 = vadd.f32 0.0, %v1232
    %v1234 = vpop.f32.mrf.mxu0
    %v1235 = vadd.f32 0.0, %v1234
    %1236 = vmatprep.mubr.f32.mxu0 0.0
    %1237 = vmatmul.mubr.f32.gmra.mxu0 %v1158
    %v1238 = vpop.f32.mrf.mxu0
    %v1239 = vadd.f32 0.0, %v1238
    %v1240 = vpop.f32.mrf.mxu0
    %v1241 = vadd.f32 0.0, %v1240
    %1242 = vmatprep.mubr.f32.mxu0 0.0
    %1243 = vmatmul.mubr.f32.gmra.mxu0 %v1161
    %v1244 = vpop.f32.mrf.mxu0
    %v1245 = vadd.f32 0.0, %v1244
    %v1246 = vpop.f32.mrf.mxu0
    %v1247 = vadd.f32 0.0, %v1246
    %1248 = vmatprep.mubr.f32.mxu0 0.0
    %1249 = vmatmul.mubr.f32.gmra.mxu0 %v1164
    %v1250 = vpop.f32.mrf.mxu0
    %v1251 = vadd.f32 0.0, %v1250
    %v1252 = vpop.f32.mrf.mxu0
    %v1253 = vadd.f32 0.0, %v1252
    %1254 = vdwg.mxu0
    %v1255 = vadd.f32 %v1233, %v1235
    %1256 = vadd.xlane.f32.xlu0 %v1255
    %v1257 = vpop.xlane.xlu0 %1256
    %v1258 = vrot.slane %v1257, 4
    %v1259 = vadd.f32 %v1257, %v1258
    %v1260 = vrot.slane %v1259, 2
    %v1261 = vadd.f32 %v1259, %v1260
    %v1262 = vrot.slane %v1261, 1
    %v1263 = vadd.f32 %v1261, %v1262
    %s1264 = vtos %v1263
    %v1265 = vstv %s1264
    %v1266 = vmul.f32 %v1265, %v198
    %v1267 = vsub.f32 %v1233, %v1266
    %v1268 = vsub.f32 %v1235, %v1266
    %v1269 = vmul.f32 %v1267, %v1267
    %v1270 = vmul.f32 %v1268, %v1268
    %v1271 = vadd.f32 %v1269, %v1270
    %1272 = vadd.xlane.f32.xlu0 %v1271
    %v1273 = vpop.xlane.xlu0 %1272
    %v1274 = vrot.slane %v1273, 4
    %v1275 = vadd.f32 %v1273, %v1274
    %v1276 = vrot.slane %v1275, 2
    %v1277 = vadd.f32 %v1275, %v1276
    %v1278 = vrot.slane %v1277, 1
    %v1279 = vadd.f32 %v1277, %v1278
    %s1280 = vtos %v1279
    %v1281 = vstv %s1280
    %v1282 = vmul.f32 %v1281, %v198
    %v1283 = vadd.f32 %v1282, 1e-05
    %v1284 = vrsqrt.pop %v1283
    %v1285 = vmul.f32 %v1267, %v1284
    %v1286 = vmul.f32 %v1268, %v1284
    %v1287 = vmul.f32 %v1285, %v69
    %v1288 = vmul.f32 %v1286, %v70
    %v1289 = vadd.f32 %v1287, %v71
    %v1290 = vadd.f32 %v1288, %v72
    %s1291 = scalar_lea.vmem [#allocation10], 256
    %1292 = vst [vmem:[%s1291] sm:$0xff] %v1289
    %1293 = vst [vmem:[%s1291 + $0x8] sm:$0xff] %v1290
    %v1294 = vadd.f32 %v1239, %v1241
    %1295 = vadd.xlane.f32.xlu0 %v1294
    %v1296 = vpop.xlane.xlu0 %1295
    %v1297 = vrot.slane %v1296, 4
    %v1298 = vadd.f32 %v1296, %v1297
    %v1299 = vrot.slane %v1298, 2
    %v1300 = vadd.f32 %v1298, %v1299
    %v1301 = vrot.slane %v1300, 1
    %v1302 = vadd.f32 %v1300, %v1301
    %s1303 = vtos %v1302
    %v1304 = vstv %s1303
    %v1305 = vmul.f32 %v1304, %v198
    %v1306 = vsub.f32 %v1239, %v1305
    %v1307 = vsub.f32 %v1241, %v1305
    %v1308 = vmul.f32 %v1306, %v1306
    %v1309 = vmul.f32 %v1307, %v1307
    %v1310 = vadd.f32 %v1308, %v1309
    %1311 = vadd.xlane.f32.xlu0 %v1310
    %v1312 = vpop.xlane.xlu0 %1311
    %v1313 = vrot.slane %v1312, 4
    %v1314 = vadd.f32 %v1312, %v1313
    %v1315 = vrot.slane %v1314, 2
    %v1316 = vadd.f32 %v1314, %v1315
    %v1317 = vrot.slane %v1316, 1
    %v1318 = vadd.f32 %v1316, %v1317
    %s1319 = vtos %v1318
    %v1320 = vstv %s1319
    %v1321 = vmul.f32 %v1320, %v198
    %v1322 = vadd.f32 %v1321, 1e-05
    %v1323 = vrsqrt.pop %v1322
    %v1324 = vmul.f32 %v1306, %v1323
    %v1325 = vmul.f32 %v1307, %v1323
    %v1326 = vmul.f32 %v1324, %v69
    %v1327 = vmul.f32 %v1325, %v70
    %v1328 = vadd.f32 %v1326, %v71
    %v1329 = vadd.f32 %v1327, %v72
    %1330 = vst [vmem:[%s1291 + $0x10] sm:$0xff] %v1328
    %1331 = vst [vmem:[%s1291 + $0x18] sm:$0xff] %v1329
    %v1332 = vadd.f32 %v1245, %v1247
    %1333 = vadd.xlane.f32.xlu0 %v1332
    %v1334 = vpop.xlane.xlu0 %1333
    %v1335 = vrot.slane %v1334, 4
    %v1336 = vadd.f32 %v1334, %v1335
    %v1337 = vrot.slane %v1336, 2
    %v1338 = vadd.f32 %v1336, %v1337
    %v1339 = vrot.slane %v1338, 1
    %v1340 = vadd.f32 %v1338, %v1339
    %s1341 = vtos %v1340
    %v1342 = vstv %s1341
    %v1343 = vmul.f32 %v1342, %v198
    %v1344 = vsub.f32 %v1245, %v1343
    %v1345 = vsub.f32 %v1247, %v1343
    %v1346 = vmul.f32 %v1344, %v1344
    %v1347 = vmul.f32 %v1345, %v1345
    %v1348 = vadd.f32 %v1346, %v1347
    %1349 = vadd.xlane.f32.xlu0 %v1348
    %v1350 = vpop.xlane.xlu0 %1349
    %v1351 = vrot.slane %v1350, 4
    %v1352 = vadd.f32 %v1350, %v1351
    %v1353 = vrot.slane %v1352, 2
    %v1354 = vadd.f32 %v1352, %v1353
    %v1355 = vrot.slane %v1354, 1
    %v1356 = vadd.f32 %v1354, %v1355
    %s1357 = vtos %v1356
    %v1358 = vstv %s1357
    %v1359 = vmul.f32 %v1358, %v198
    %v1360 = vadd.f32 %v1359, 1e-05
    %v1361 = vrsqrt.pop %v1360
    %v1362 = vmul.f32 %v1344, %v1361
    %v1363 = vmul.f32 %v1345, %v1361
    %v1364 = vmul.f32 %v1362, %v69
    %v1365 = vmul.f32 %v1363, %v70
    %v1366 = vadd.f32 %v1364, %v71
    %v1367 = vadd.f32 %v1365, %v72
    %1368 = vst [vmem:[%s1291 + $0x20] sm:$0xff] %v1366
    %1369 = vst [vmem:[%s1291 + $0x28] sm:$0xff] %v1367
    %v1370 = vadd.f32 %v1251, %v1253
    %1371 = vadd.xlane.f32.xlu0 %v1370
    %v1372 = vpop.xlane.xlu0 %1371
    %v1373 = vrot.slane %v1372, 4
    %v1374 = vadd.f32 %v1372, %v1373
    %v1375 = vrot.slane %v1374, 2
    %v1376 = vadd.f32 %v1374, %v1375
    %v1377 = vrot.slane %v1376, 1
    %v1378 = vadd.f32 %v1376, %v1377
    %s1379 = vtos %v1378
    %v1380 = vstv %s1379
    %v1381 = vmul.f32 %v1380, %v198
    %v1382 = vsub.f32 %v1251, %v1381
    %v1383 = vsub.f32 %v1253, %v1381
    %v1384 = vmul.f32 %v1382, %v1382
    %v1385 = vmul.f32 %v1383, %v1383
    %v1386 = vadd.f32 %v1384, %v1385
    %1387 = vadd.xlane.f32.xlu0 %v1386
    %v1388 = vpop.xlane.xlu0 %1387
    %v1389 = vrot.slane %v1388, 4
    %v1390 = vadd.f32 %v1388, %v1389
    %v1391 = vrot.slane %v1390, 2
    %v1392 = vadd.f32 %v1390, %v1391
    %v1393 = vrot.slane %v1392, 1
    %v1394 = vadd.f32 %v1392, %v1393
    %s1395 = vtos %v1394
    %v1396 = vstv %s1395
    %v1397 = vmul.f32 %v1396, %v198
    %v1398 = vadd.f32 %v1397, 1e-05
    %v1399 = vrsqrt.pop %v1398
    %v1400 = vmul.f32 %v1382, %v1399
    %v1401 = vmul.f32 %v1383, %v1399
    %v1402 = vmul.f32 %v1400, %v69
    %v1403 = vmul.f32 %v1401, %v70
    %v1404 = vadd.f32 %v1402, %v71
    %v1405 = vadd.f32 %v1403, %v72
    %1406 = vst [vmem:[%s1291 + $0x30] sm:$0xff] %v1404
    %1407 = vst [vmem:[%s1291 + $0x38] sm:$0xff] %v1405
    %v1408 = vld [vmem:[#allocation5] sm:$0xff]
    %v1409 = vld [vmem:[#allocation5 + $0x8] sm:$0xff]
    %v1410 = vld [vmem:[#allocation5 + $0x10] sm:$0xff]
    %v1411 = vld [vmem:[#allocation5 + $0x18] sm:$0xff]
    %s1412 = scalar_lea.vmem [#allocation2], 320
    %v1413 = vld [vmem:[%s1412] sm:$0xff]
    %v1414 = vld [vmem:[%s1412 + $0x8] sm:$0xff]
    %v1415 = vld [vmem:[%s1412 + $0x10] sm:$0xff]
    %v1416 = vld [vmem:[%s1412 + $0x18] sm:$0xff]
    %v1417 = vld [vmem:[%s1412 + $0x20] sm:$0xff]
    %v1418 = vld [vmem:[%s1412 + $0x28] sm:$0xff]
    %v1419 = vld [vmem:[%s1412 + $0x30] sm:$0xff]
    %v1420 = vld [vmem:[%s1412 + $0x38] sm:$0xff]
    %v1422 = vsel %vm85, %v1408, 0
    %v1425 = vsel %vm85, %v1409, 0
    %v1428 = vsel %vm85, %v1410, 0
    %v1431 = vsel %vm85, %v1411, 0
    %1433 = vmatprep.subr.mxu0 0.0
    %1434 = vmatpush1.msra.mxu0 0.0
    %1435 = vmatprep.subr.mxu0 0.0
    %1436 = vmatpush1.msra.mxu0 0.0
    %1437 = vmatprep.subr.mxu0 0.0
    %1438 = vmatpush1.msra.mxu0 0.0
    %1439 = vmatprep.subr.mxu0 0.0
    %1440 = vmatpush1.msra.mxu0 0.0
    %1441 = vmatprep.subr.mxu0 0.0
    %1442 = vmatpush1.msra.mxu0 0.0
    %1443 = vmatprep.subr.mxu0 0.0
    %1444 = vmatpush1.msra.mxu0 0.0
    %1445 = vmatprep.subr.mxu0 0.0
    %1446 = vmatpush1.msra.mxu0 0.0
    %1447 = vmatprep.subr.mxu0 0.0
    %1448 = vmatpush1.msra.mxu0 0.0
    %1449 = vmatprep.subr.mxu0 0.0
    %1450 = vmatpush1.msra.mxu0 0.0
    %1451 = vmatprep.subr.mxu0 0.0
    %1452 = vmatpush1.msra.mxu0 0.0
    %1453 = vmatprep.subr.mxu0 0.0
    %1454 = vmatpush1.msra.mxu0 0.0
    %1455 = vmatprep.subr.mxu0 0.0
    %1456 = vmatpush1.msra.mxu0 0.0
    %1457 = vmatprep.subr.mxu0 %v1420
    %1458 = vmatpush1.msra.mxu0 %v1419
    %1459 = vmatprep.subr.mxu0 %v1418
    %1460 = vmatpush1.msra.mxu0 %v1417
    %1461 = vmatprep.subr.mxu0 %v1416
    %1462 = vmatpush1.msra.mxu0 %v1415
    %1463 = vmatprep.subr.mxu0 %v1414
    %1464 = vmatpush1.msra.mxu0 %v1413
    %1465 = vmatprep.subr.mxu0 0.0
    %1466 = vmatpush2.msra.mxu0 0.0
    %1467 = vmatprep.subr.mxu0 0.0
    %1468 = vmatpush2.msra.mxu0 0.0
    %1469 = vmatprep.subr.mxu0 0.0
    %1470 = vmatpush2.msra.mxu0 0.0
    %1471 = vmatprep.subr.mxu0 0.0
    %1472 = vmatpush2.msra.mxu0 0.0
    %1473 = vmatprep.subr.mxu0 0.0
    %1474 = vmatpush2.msra.mxu0 0.0
    %1475 = vmatprep.subr.mxu0 0.0
    %1476 = vmatpush2.msra.mxu0 0.0
    %1477 = vmatprep.subr.mxu0 0.0
    %1478 = vmatpush2.msra.mxu0 0.0
    %1479 = vmatprep.subr.mxu0 0.0
    %1480 = vmatpush2.msra.mxu0 0.0
    %1481 = vmatprep.subr.mxu0 0.0
    %1482 = vmatpush2.msra.mxu0 0.0
    %1483 = vmatprep.subr.mxu0 0.0
    %1484 = vmatpush2.msra.mxu0 0.0
    %1485 = vmatprep.subr.mxu0 0.0
    %1486 = vmatpush2.msra.mxu0 0.0
    %1487 = vmatprep.subr.mxu0 0.0
    %1488 = vmatpush2.msra.mxu0 0.0
    %1489 = vmatprep.subr.mxu0 0.0
    %1490 = vmatpush2.msra.mxu0 0.0
    %1491 = vmatprep.subr.mxu0 0.0
    %1492 = vmatpush2.msra.mxu0 0.0
    %1493 = vmatprep.subr.mxu0 0.0
    %1494 = vmatpush2.msra.mxu0 0.0
    %1495 = vmatprep.subr.mxu0 0.0
    %1496 = vmatpush2.msra.mxu0 0.0
    %1497 = vmatprep.mubr.f32.mxu0 0.0
    %1498 = vmatmul.mubr.f32.gmra.mxu0 %v1422
    %v1499 = vpop.f32.mrf.mxu0
    %v1500 = vadd.f32 0.0, %v1499
    %v1501 = vpop.f32.mrf.mxu0
    %v1502 = vadd.f32 0.0, %v1501
    %1503 = vmatprep.mubr.f32.mxu0 0.0
    %1504 = vmatmul.mubr.f32.gmra.mxu0 %v1425
    %v1505 = vpop.f32.mrf.mxu0
    %v1506 = vadd.f32 0.0, %v1505
    %v1507 = vpop.f32.mrf.mxu0
    %v1508 = vadd.f32 0.0, %v1507
    %1509 = vmatprep.mubr.f32.mxu0 0.0
    %1510 = vmatmul.mubr.f32.gmra.mxu0 %v1428
    %v1511 = vpop.f32.mrf.mxu0
    %v1512 = vadd.f32 0.0, %v1511
    %v1513 = vpop.f32.mrf.mxu0
    %v1514 = vadd.f32 0.0, %v1513
    %1515 = vmatprep.mubr.f32.mxu0 0.0
    %1516 = vmatmul.mubr.f32.gmra.mxu0 %v1431
    %v1517 = vpop.f32.mrf.mxu0
    %v1518 = vadd.f32 0.0, %v1517
    %v1519 = vpop.f32.mrf.mxu0
    %v1520 = vadd.f32 0.0, %v1519
    %1521 = vdwg.mxu0
    %v1522 = vadd.f32 %v1500, %v1502
    %1523 = vadd.xlane.f32.xlu0 %v1522
    %v1524 = vpop.xlane.xlu0 %1523
    %v1525 = vrot.slane %v1524, 4
    %v1526 = vadd.f32 %v1524, %v1525
    %v1527 = vrot.slane %v1526, 2
    %v1528 = vadd.f32 %v1526, %v1527
    %v1529 = vrot.slane %v1528, 1
    %v1530 = vadd.f32 %v1528, %v1529
    %s1531 = vtos %v1530
    %v1532 = vstv %s1531
    %v1533 = vmul.f32 %v1532, %v198
    %v1534 = vsub.f32 %v1500, %v1533
    %v1535 = vsub.f32 %v1502, %v1533
    %v1536 = vmul.f32 %v1534, %v1534
    %v1537 = vmul.f32 %v1535, %v1535
    %v1538 = vadd.f32 %v1536, %v1537
    %1539 = vadd.xlane.f32.xlu0 %v1538
    %v1540 = vpop.xlane.xlu0 %1539
    %v1541 = vrot.slane %v1540, 4
    %v1542 = vadd.f32 %v1540, %v1541
    %v1543 = vrot.slane %v1542, 2
    %v1544 = vadd.f32 %v1542, %v1543
    %v1545 = vrot.slane %v1544, 1
    %v1546 = vadd.f32 %v1544, %v1545
    %s1547 = vtos %v1546
    %v1548 = vstv %s1547
    %v1549 = vmul.f32 %v1548, %v198
    %v1550 = vadd.f32 %v1549, 1e-05
    %v1551 = vrsqrt.pop %v1550
    %v1552 = vmul.f32 %v1534, %v1551
    %v1553 = vmul.f32 %v1535, %v1551
    %v1554 = vmul.f32 %v1552, %v69
    %v1555 = vmul.f32 %v1553, %v70
    %v1556 = vadd.f32 %v1554, %v71
    %v1557 = vadd.f32 %v1555, %v72
    %s1558 = scalar_lea.vmem [#allocation10], 320
    %1559 = vst [vmem:[%s1558] sm:$0xff] %v1556
    %1560 = vst [vmem:[%s1558 + $0x8] sm:$0xff] %v1557
    %v1561 = vadd.f32 %v1506, %v1508
    %1562 = vadd.xlane.f32.xlu0 %v1561
    %v1563 = vpop.xlane.xlu0 %1562
    %v1564 = vrot.slane %v1563, 4
    %v1565 = vadd.f32 %v1563, %v1564
    %v1566 = vrot.slane %v1565, 2
    %v1567 = vadd.f32 %v1565, %v1566
    %v1568 = vrot.slane %v1567, 1
    %v1569 = vadd.f32 %v1567, %v1568
    %s1570 = vtos %v1569
    %v1571 = vstv %s1570
    %v1572 = vmul.f32 %v1571, %v198
    %v1573 = vsub.f32 %v1506, %v1572
    %v1574 = vsub.f32 %v1508, %v1572
    %v1575 = vmul.f32 %v1573, %v1573
    %v1576 = vmul.f32 %v1574, %v1574
    %v1577 = vadd.f32 %v1575, %v1576
    %1578 = vadd.xlane.f32.xlu0 %v1577
    %v1579 = vpop.xlane.xlu0 %1578
    %v1580 = vrot.slane %v1579, 4
    %v1581 = vadd.f32 %v1579, %v1580
    %v1582 = vrot.slane %v1581, 2
    %v1583 = vadd.f32 %v1581, %v1582
    %v1584 = vrot.slane %v1583, 1
    %v1585 = vadd.f32 %v1583, %v1584
    %s1586 = vtos %v1585
    %v1587 = vstv %s1586
    %v1588 = vmul.f32 %v1587, %v198
    %v1589 = vadd.f32 %v1588, 1e-05
    %v1590 = vrsqrt.pop %v1589
    %v1591 = vmul.f32 %v1573, %v1590
    %v1592 = vmul.f32 %v1574, %v1590
    %v1593 = vmul.f32 %v1591, %v69
    %v1594 = vmul.f32 %v1592, %v70
    %v1595 = vadd.f32 %v1593, %v71
    %v1596 = vadd.f32 %v1594, %v72
    %1597 = vst [vmem:[%s1558 + $0x10] sm:$0xff] %v1595
    %1598 = vst [vmem:[%s1558 + $0x18] sm:$0xff] %v1596
    %v1599 = vadd.f32 %v1512, %v1514
    %1600 = vadd.xlane.f32.xlu0 %v1599
    %v1601 = vpop.xlane.xlu0 %1600
    %v1602 = vrot.slane %v1601, 4
    %v1603 = vadd.f32 %v1601, %v1602
    %v1604 = vrot.slane %v1603, 2
    %v1605 = vadd.f32 %v1603, %v1604
    %v1606 = vrot.slane %v1605, 1
    %v1607 = vadd.f32 %v1605, %v1606
    %s1608 = vtos %v1607
    %v1609 = vstv %s1608
    %v1610 = vmul.f32 %v1609, %v198
    %v1611 = vsub.f32 %v1512, %v1610
    %v1612 = vsub.f32 %v1514, %v1610
    %v1613 = vmul.f32 %v1611, %v1611
    %v1614 = vmul.f32 %v1612, %v1612
    %v1615 = vadd.f32 %v1613, %v1614
    %1616 = vadd.xlane.f32.xlu0 %v1615
    %v1617 = vpop.xlane.xlu0 %1616
    %v1618 = vrot.slane %v1617, 4
    %v1619 = vadd.f32 %v1617, %v1618
    %v1620 = vrot.slane %v1619, 2
    %v1621 = vadd.f32 %v1619, %v1620
    %v1622 = vrot.slane %v1621, 1
    %v1623 = vadd.f32 %v1621, %v1622
    %s1624 = vtos %v1623
    %v1625 = vstv %s1624
    %v1626 = vmul.f32 %v1625, %v198
    %v1627 = vadd.f32 %v1626, 1e-05
    %v1628 = vrsqrt.pop %v1627
    %v1629 = vmul.f32 %v1611, %v1628
    %v1630 = vmul.f32 %v1612, %v1628
    %v1631 = vmul.f32 %v1629, %v69
    %v1632 = vmul.f32 %v1630, %v70
    %v1633 = vadd.f32 %v1631, %v71
    %v1634 = vadd.f32 %v1632, %v72
    %1635 = vst [vmem:[%s1558 + $0x20] sm:$0xff] %v1633
    %1636 = vst [vmem:[%s1558 + $0x28] sm:$0xff] %v1634
    %v1637 = vadd.f32 %v1518, %v1520
    %1638 = vadd.xlane.f32.xlu0 %v1637
    %v1639 = vpop.xlane.xlu0 %1638
    %v1640 = vrot.slane %v1639, 4
    %v1641 = vadd.f32 %v1639, %v1640
    %v1642 = vrot.slane %v1641, 2
    %v1643 = vadd.f32 %v1641, %v1642
    %v1644 = vrot.slane %v1643, 1
    %v1645 = vadd.f32 %v1643, %v1644
    %s1646 = vtos %v1645
    %v1647 = vstv %s1646
    %v1648 = vmul.f32 %v1647, %v198
    %v1649 = vsub.f32 %v1518, %v1648
    %v1650 = vsub.f32 %v1520, %v1648
    %v1651 = vmul.f32 %v1649, %v1649
    %v1652 = vmul.f32 %v1650, %v1650
    %v1653 = vadd.f32 %v1651, %v1652
    %1654 = vadd.xlane.f32.xlu0 %v1653
    %v1655 = vpop.xlane.xlu0 %1654
    %v1656 = vrot.slane %v1655, 4
    %v1657 = vadd.f32 %v1655, %v1656
    %v1658 = vrot.slane %v1657, 2
    %v1659 = vadd.f32 %v1657, %v1658
    %v1660 = vrot.slane %v1659, 1
    %v1661 = vadd.f32 %v1659, %v1660
    %s1662 = vtos %v1661
    %v1663 = vstv %s1662
    %v1664 = vmul.f32 %v1663, %v198
    %v1665 = vadd.f32 %v1664, 1e-05
    %v1666 = vrsqrt.pop %v1665
    %v1667 = vmul.f32 %v1649, %v1666
    %v1668 = vmul.f32 %v1650, %v1666
    %v1669 = vmul.f32 %v1667, %v69
    %v1670 = vmul.f32 %v1668, %v70
    %v1671 = vadd.f32 %v1669, %v71
    %v1672 = vadd.f32 %v1670, %v72
    %1673 = vst [vmem:[%s1558 + $0x30] sm:$0xff] %v1671
    %1674 = vst [vmem:[%s1558 + $0x38] sm:$0xff] %v1672
    %v1675 = vld [vmem:[#allocation5] sm:$0xff]
    %v1676 = vld [vmem:[#allocation5 + $0x8] sm:$0xff]
    %v1677 = vld [vmem:[#allocation5 + $0x10] sm:$0xff]
    %v1678 = vld [vmem:[#allocation5 + $0x18] sm:$0xff]
    %s1679 = scalar_lea.vmem [#allocation2], 384
    %v1680 = vld [vmem:[%s1679] sm:$0xff]
    %v1681 = vld [vmem:[%s1679 + $0x8] sm:$0xff]
    %v1682 = vld [vmem:[%s1679 + $0x10] sm:$0xff]
    %v1683 = vld [vmem:[%s1679 + $0x18] sm:$0xff]
    %v1684 = vld [vmem:[%s1679 + $0x20] sm:$0xff]
    %v1685 = vld [vmem:[%s1679 + $0x28] sm:$0xff]
    %v1686 = vld [vmem:[%s1679 + $0x30] sm:$0xff]
    %v1687 = vld [vmem:[%s1679 + $0x38] sm:$0xff]
    %v1689 = vsel %vm85, %v1675, 0
    %v1692 = vsel %vm85, %v1676, 0
    %v1695 = vsel %vm85, %v1677, 0
    %v1698 = vsel %vm85, %v1678, 0
    %1700 = vmatprep.subr.mxu0 0.0
    %1701 = vmatpush1.msra.mxu0 0.0
    %1702 = vmatprep.subr.mxu0 0.0
    %1703 = vmatpush1.msra.mxu0 0.0
    %1704 = vmatprep.subr.mxu0 0.0
    %1705 = vmatpush1.msra.mxu0 0.0
    %1706 = vmatprep.subr.mxu0 0.0
    %1707 = vmatpush1.msra.mxu0 0.0
    %1708 = vmatprep.subr.mxu0 0.0
    %1709 = vmatpush1.msra.mxu0 0.0
    %1710 = vmatprep.subr.mxu0 0.0
    %1711 = vmatpush1.msra.mxu0 0.0
    %1712 = vmatprep.subr.mxu0 0.0
    %1713 = vmatpush1.msra.mxu0 0.0
    %1714 = vmatprep.subr.mxu0 0.0
    %1715 = vmatpush1.msra.mxu0 0.0
    %1716 = vmatprep.subr.mxu0 0.0
    %1717 = vmatpush1.msra.mxu0 0.0
    %1718 = vmatprep.subr.mxu0 0.0
    %1719 = vmatpush1.msra.mxu0 0.0
    %1720 = vmatprep.subr.mxu0 0.0
    %1721 = vmatpush1.msra.mxu0 0.0
    %1722 = vmatprep.subr.mxu0 0.0
    %1723 = vmatpush1.msra.mxu0 0.0
    %1724 = vmatprep.subr.mxu0 %v1687
    %1725 = vmatpush1.msra.mxu0 %v1686
    %1726 = vmatprep.subr.mxu0 %v1685
    %1727 = vmatpush1.msra.mxu0 %v1684
    %1728 = vmatprep.subr.mxu0 %v1683
    %1729 = vmatpush1.msra.mxu0 %v1682
    %1730 = vmatprep.subr.mxu0 %v1681
    %1731 = vmatpush1.msra.mxu0 %v1680
    %1732 = vmatprep.subr.mxu0 0.0
    %1733 = vmatpush2.msra.mxu0 0.0
    %1734 = vmatprep.subr.mxu0 0.0
    %1735 = vmatpush2.msra.mxu0 0.0
    %1736 = vmatprep.subr.mxu0 0.0
    %1737 = vmatpush2.msra.mxu0 0.0
    %1738 = vmatprep.subr.mxu0 0.0
    %1739 = vmatpush2.msra.mxu0 0.0
    %1740 = vmatprep.subr.mxu0 0.0
    %1741 = vmatpush2.msra.mxu0 0.0
    %1742 = vmatprep.subr.mxu0 0.0
    %1743 = vmatpush2.msra.mxu0 0.0
    %1744 = vmatprep.subr.mxu0 0.0
    %1745 = vmatpush2.msra.mxu0 0.0
    %1746 = vmatprep.subr.mxu0 0.0
    %1747 = vmatpush2.msra.mxu0 0.0
    %1748 = vmatprep.subr.mxu0 0.0
    %1749 = vmatpush2.msra.mxu0 0.0
    %1750 = vmatprep.subr.mxu0 0.0
    %1751 = vmatpush2.msra.mxu0 0.0
    %1752 = vmatprep.subr.mxu0 0.0
    %1753 = vmatpush2.msra.mxu0 0.0
    %1754 = vmatprep.subr.mxu0 0.0
    %1755 = vmatpush2.msra.mxu0 0.0
    %1756 = vmatprep.subr.mxu0 0.0
    %1757 = vmatpush2.msra.mxu0 0.0
    %1758 = vmatprep.subr.mxu0 0.0
    %1759 = vmatpush2.msra.mxu0 0.0
    %1760 = vmatprep.subr.mxu0 0.0
    %1761 = vmatpush2.msra.mxu0 0.0
    %1762 = vmatprep.subr.mxu0 0.0
    %1763 = vmatpush2.msra.mxu0 0.0
    %1764 = vmatprep.mubr.f32.mxu0 0.0
    %1765 = vmatmul.mubr.f32.gmra.mxu0 %v1689
    %v1766 = vpop.f32.mrf.mxu0
    %v1767 = vadd.f32 0.0, %v1766
    %v1768 = vpop.f32.mrf.mxu0
    %v1769 = vadd.f32 0.0, %v1768
    %1770 = vmatprep.mubr.f32.mxu0 0.0
    %1771 = vmatmul.mubr.f32.gmra.mxu0 %v1692
    %v1772 = vpop.f32.mrf.mxu0
    %v1773 = vadd.f32 0.0, %v1772
    %v1774 = vpop.f32.mrf.mxu0
    %v1775 = vadd.f32 0.0, %v1774
    %1776 = vmatprep.mubr.f32.mxu0 0.0
    %1777 = vmatmul.mubr.f32.gmra.mxu0 %v1695
    %v1778 = vpop.f32.mrf.mxu0
    %v1779 = vadd.f32 0.0, %v1778
    %v1780 = vpop.f32.mrf.mxu0
    %v1781 = vadd.f32 0.0, %v1780
    %1782 = vmatprep.mubr.f32.mxu0 0.0
    %1783 = vmatmul.mubr.f32.gmra.mxu0 %v1698
    %v1784 = vpop.f32.mrf.mxu0
    %v1785 = vadd.f32 0.0, %v1784
    %v1786 = vpop.f32.mrf.mxu0
    %v1787 = vadd.f32 0.0, %v1786
    %1788 = vdwg.mxu0
    %v1789 = vadd.f32 %v1767, %v1769
    %1790 = vadd.xlane.f32.xlu0 %v1789
    %v1791 = vpop.xlane.xlu0 %1790
    %v1792 = vrot.slane %v1791, 4
    %v1793 = vadd.f32 %v1791, %v1792
    %v1794 = vrot.slane %v1793, 2
    %v1795 = vadd.f32 %v1793, %v1794
    %v1796 = vrot.slane %v1795, 1
    %v1797 = vadd.f32 %v1795, %v1796
    %s1798 = vtos %v1797
    %v1799 = vstv %s1798
    %v1800 = vmul.f32 %v1799, %v198
    %v1801 = vsub.f32 %v1767, %v1800
    %v1802 = vsub.f32 %v1769, %v1800
    %v1803 = vmul.f32 %v1801, %v1801
    %v1804 = vmul.f32 %v1802, %v1802
    %v1805 = vadd.f32 %v1803, %v1804
    %1806 = vadd.xlane.f32.xlu0 %v1805
    %v1807 = vpop.xlane.xlu0 %1806
    %v1808 = vrot.slane %v1807, 4
    %v1809 = vadd.f32 %v1807, %v1808
    %v1810 = vrot.slane %v1809, 2
    %v1811 = vadd.f32 %v1809, %v1810
    %v1812 = vrot.slane %v1811, 1
    %v1813 = vadd.f32 %v1811, %v1812
    %s1814 = vtos %v1813
    %v1815 = vstv %s1814
    %v1816 = vmul.f32 %v1815, %v198
    %v1817 = vadd.f32 %v1816, 1e-05
    %v1818 = vrsqrt.pop %v1817
    %v1819 = vmul.f32 %v1801, %v1818
    %v1820 = vmul.f32 %v1802, %v1818
    %v1821 = vmul.f32 %v1819, %v69
    %v1822 = vmul.f32 %v1820, %v70
    %v1823 = vadd.f32 %v1821, %v71
    %v1824 = vadd.f32 %v1822, %v72
    %s1825 = scalar_lea.vmem [#allocation10], 384
    %1826 = vst [vmem:[%s1825] sm:$0xff] %v1823
    %1827 = vst [vmem:[%s1825 + $0x8] sm:$0xff] %v1824
    %v1828 = vadd.f32 %v1773, %v1775
    %1829 = vadd.xlane.f32.xlu0 %v1828
    %v1830 = vpop.xlane.xlu0 %1829
    %v1831 = vrot.slane %v1830, 4
    %v1832 = vadd.f32 %v1830, %v1831
    %v1833 = vrot.slane %v1832, 2
    %v1834 = vadd.f32 %v1832, %v1833
    %v1835 = vrot.slane %v1834, 1
    %v1836 = vadd.f32 %v1834, %v1835
    %s1837 = vtos %v1836
    %v1838 = vstv %s1837
    %v1839 = vmul.f32 %v1838, %v198
    %v1840 = vsub.f32 %v1773, %v1839
    %v1841 = vsub.f32 %v1775, %v1839
    %v1842 = vmul.f32 %v1840, %v1840
    %v1843 = vmul.f32 %v1841, %v1841
    %v1844 = vadd.f32 %v1842, %v1843
    %1845 = vadd.xlane.f32.xlu0 %v1844
    %v1846 = vpop.xlane.xlu0 %1845
    %v1847 = vrot.slane %v1846, 4
    %v1848 = vadd.f32 %v1846, %v1847
    %v1849 = vrot.slane %v1848, 2
    %v1850 = vadd.f32 %v1848, %v1849
    %v1851 = vrot.slane %v1850, 1
    %v1852 = vadd.f32 %v1850, %v1851
    %s1853 = vtos %v1852
    %v1854 = vstv %s1853
    %v1855 = vmul.f32 %v1854, %v198
    %v1856 = vadd.f32 %v1855, 1e-05
    %v1857 = vrsqrt.pop %v1856
    %v1858 = vmul.f32 %v1840, %v1857
    %v1859 = vmul.f32 %v1841, %v1857
    %v1860 = vmul.f32 %v1858, %v69
    %v1861 = vmul.f32 %v1859, %v70
    %v1862 = vadd.f32 %v1860, %v71
    %v1863 = vadd.f32 %v1861, %v72
    %1864 = vst [vmem:[%s1825 + $0x10] sm:$0xff] %v1862
    %1865 = vst [vmem:[%s1825 + $0x18] sm:$0xff] %v1863
    %v1866 = vadd.f32 %v1779, %v1781
    %1867 = vadd.xlane.f32.xlu0 %v1866
    %v1868 = vpop.xlane.xlu0 %1867
    %v1869 = vrot.slane %v1868, 4
    %v1870 = vadd.f32 %v1868, %v1869
    %v1871 = vrot.slane %v1870, 2
    %v1872 = vadd.f32 %v1870, %v1871
    %v1873 = vrot.slane %v1872, 1
    %v1874 = vadd.f32 %v1872, %v1873
    %s1875 = vtos %v1874
    %v1876 = vstv %s1875
    %v1877 = vmul.f32 %v1876, %v198
    %v1878 = vsub.f32 %v1779, %v1877
    %v1879 = vsub.f32 %v1781, %v1877
    %v1880 = vmul.f32 %v1878, %v1878
    %v1881 = vmul.f32 %v1879, %v1879
    %v1882 = vadd.f32 %v1880, %v1881
    %1883 = vadd.xlane.f32.xlu0 %v1882
    %v1884 = vpop.xlane.xlu0 %1883
    %v1885 = vrot.slane %v1884, 4
    %v1886 = vadd.f32 %v1884, %v1885
    %v1887 = vrot.slane %v1886, 2
    %v1888 = vadd.f32 %v1886, %v1887
    %v1889 = vrot.slane %v1888, 1
    %v1890 = vadd.f32 %v1888, %v1889
    %s1891 = vtos %v1890
    %v1892 = vstv %s1891
    %v1893 = vmul.f32 %v1892, %v198
    %v1894 = vadd.f32 %v1893, 1e-05
    %v1895 = vrsqrt.pop %v1894
    %v1896 = vmul.f32 %v1878, %v1895
    %v1897 = vmul.f32 %v1879, %v1895
    %v1898 = vmul.f32 %v1896, %v69
    %v1899 = vmul.f32 %v1897, %v70
    %v1900 = vadd.f32 %v1898, %v71
    %v1901 = vadd.f32 %v1899, %v72
    %1902 = vst [vmem:[%s1825 + $0x20] sm:$0xff] %v1900
    %1903 = vst [vmem:[%s1825 + $0x28] sm:$0xff] %v1901
    %v1904 = vadd.f32 %v1785, %v1787
    %1905 = vadd.xlane.f32.xlu0 %v1904
    %v1906 = vpop.xlane.xlu0 %1905
    %v1907 = vrot.slane %v1906, 4
    %v1908 = vadd.f32 %v1906, %v1907
    %v1909 = vrot.slane %v1908, 2
    %v1910 = vadd.f32 %v1908, %v1909
    %v1911 = vrot.slane %v1910, 1
    %v1912 = vadd.f32 %v1910, %v1911
    %s1913 = vtos %v1912
    %v1914 = vstv %s1913
    %v1915 = vmul.f32 %v1914, %v198
    %v1916 = vsub.f32 %v1785, %v1915
    %v1917 = vsub.f32 %v1787, %v1915
    %v1918 = vmul.f32 %v1916, %v1916
    %v1919 = vmul.f32 %v1917, %v1917
    %v1920 = vadd.f32 %v1918, %v1919
    %1921 = vadd.xlane.f32.xlu0 %v1920
    %v1922 = vpop.xlane.xlu0 %1921
    %v1923 = vrot.slane %v1922, 4
    %v1924 = vadd.f32 %v1922, %v1923
    %v1925 = vrot.slane %v1924, 2
    %v1926 = vadd.f32 %v1924, %v1925
    %v1927 = vrot.slane %v1926, 1
    %v1928 = vadd.f32 %v1926, %v1927
    %s1929 = vtos %v1928
    %v1930 = vstv %s1929
    %v1931 = vmul.f32 %v1930, %v198
    %v1932 = vadd.f32 %v1931, 1e-05
    %v1933 = vrsqrt.pop %v1932
    %v1934 = vmul.f32 %v1916, %v1933
    %v1935 = vmul.f32 %v1917, %v1933
    %v1936 = vmul.f32 %v1934, %v69
    %v1937 = vmul.f32 %v1935, %v70
    %v1938 = vadd.f32 %v1936, %v71
    %v1939 = vadd.f32 %v1937, %v72
    %1940 = vst [vmem:[%s1825 + $0x30] sm:$0xff] %v1938
    %1941 = vst [vmem:[%s1825 + $0x38] sm:$0xff] %v1939
    %v1942 = vld [vmem:[#allocation5] sm:$0xff]
    %v1943 = vld [vmem:[#allocation5 + $0x8] sm:$0xff]
    %v1944 = vld [vmem:[#allocation5 + $0x10] sm:$0xff]
    %v1945 = vld [vmem:[#allocation5 + $0x18] sm:$0xff]
    %s1946 = scalar_lea.vmem [#allocation2], 448
    %v1947 = vld [vmem:[%s1946] sm:$0xff]
    %v1948 = vld [vmem:[%s1946 + $0x8] sm:$0xff]
    %v1949 = vld [vmem:[%s1946 + $0x10] sm:$0xff]
    %v1950 = vld [vmem:[%s1946 + $0x18] sm:$0xff]
    %v1951 = vld [vmem:[%s1946 + $0x20] sm:$0xff]
    %v1952 = vld [vmem:[%s1946 + $0x28] sm:$0xff]
    %v1953 = vld [vmem:[%s1946 + $0x30] sm:$0xff]
    %v1954 = vld [vmem:[%s1946 + $0x38] sm:$0xff]
    %v1956 = vsel %vm85, %v1942, 0
    %v1959 = vsel %vm85, %v1943, 0
    %v1962 = vsel %vm85, %v1944, 0
    %v1965 = vsel %vm85, %v1945, 0
    %1967 = vmatprep.subr.mxu0 0.0
    %1968 = vmatpush1.msra.mxu0 0.0
    %1969 = vmatprep.subr.mxu0 0.0
    %1970 = vmatpush1.msra.mxu0 0.0
    %1971 = vmatprep.subr.mxu0 0.0
    %1972 = vmatpush1.msra.mxu0 0.0
    %1973 = vmatprep.subr.mxu0 0.0
    %1974 = vmatpush1.msra.mxu0 0.0
    %1975 = vmatprep.subr.mxu0 0.0
    %1976 = vmatpush1.msra.mxu0 0.0
    %1977 = vmatprep.subr.mxu0 0.0
    %1978 = vmatpush1.msra.mxu0 0.0
    %1979 = vmatprep.subr.mxu0 0.0
    %1980 = vmatpush1.msra.mxu0 0.0
    %1981 = vmatprep.subr.mxu0 0.0
    %1982 = vmatpush1.msra.mxu0 0.0
    %1983 = vmatprep.subr.mxu0 0.0
    %1984 = vmatpush1.msra.mxu0 0.0
    %1985 = vmatprep.subr.mxu0 0.0
    %1986 = vmatpush1.msra.mxu0 0.0
    %1987 = vmatprep.subr.mxu0 0.0
    %1988 = vmatpush1.msra.mxu0 0.0
    %1989 = vmatprep.subr.mxu0 0.0
    %1990 = vmatpush1.msra.mxu0 0.0
    %1991 = vmatprep.subr.mxu0 %v1954
    %1992 = vmatpush1.msra.mxu0 %v1953
    %1993 = vmatprep.subr.mxu0 %v1952
    %1994 = vmatpush1.msra.mxu0 %v1951
    %1995 = vmatprep.subr.mxu0 %v1950
    %1996 = vmatpush1.msra.mxu0 %v1949
    %1997 = vmatprep.subr.mxu0 %v1948
    %1998 = vmatpush1.msra.mxu0 %v1947
    %1999 = vmatprep.subr.mxu0 0.0
    %2000 = vmatpush2.msra.mxu0 0.0
    %2001 = vmatprep.subr.mxu0 0.0
    %2002 = vmatpush2.msra.mxu0 0.0
    %2003 = vmatprep.subr.mxu0 0.0
    %2004 = vmatpush2.msra.mxu0 0.0
    %2005 = vmatprep.subr.mxu0 0.0
    %2006 = vmatpush2.msra.mxu0 0.0
    %2007 = vmatprep.subr.mxu0 0.0
    %2008 = vmatpush2.msra.mxu0 0.0
    %2009 = vmatprep.subr.mxu0 0.0
    %2010 = vmatpush2.msra.mxu0 0.0
    %2011 = vmatprep.subr.mxu0 0.0
    %2012 = vmatpush2.msra.mxu0 0.0
    %2013 = vmatprep.subr.mxu0 0.0
    %2014 = vmatpush2.msra.mxu0 0.0
    %2015 = vmatprep.subr.mxu0 0.0
    %2016 = vmatpush2.msra.mxu0 0.0
    %2017 = vmatprep.subr.mxu0 0.0
    %2018 = vmatpush2.msra.mxu0 0.0
    %2019 = vmatprep.subr.mxu0 0.0
    %2020 = vmatpush2.msra.mxu0 0.0
    %2021 = vmatprep.subr.mxu0 0.0
    %2022 = vmatpush2.msra.mxu0 0.0
    %2023 = vmatprep.subr.mxu0 0.0
    %2024 = vmatpush2.msra.mxu0 0.0
    %2025 = vmatprep.subr.mxu0 0.0
    %2026 = vmatpush2.msra.mxu0 0.0
    %2027 = vmatprep.subr.mxu0 0.0
    %2028 = vmatpush2.msra.mxu0 0.0
    %2029 = vmatprep.subr.mxu0 0.0
    %2030 = vmatpush2.msra.mxu0 0.0
    %2031 = vmatprep.mubr.f32.mxu0 0.0
    %2032 = vmatmul.mubr.f32.gmra.mxu0 %v1956
    %v2033 = vpop.f32.mrf.mxu0
    %v2034 = vadd.f32 0.0, %v2033
    %v2035 = vpop.f32.mrf.mxu0
    %v2036 = vadd.f32 0.0, %v2035
    %2037 = vmatprep.mubr.f32.mxu0 0.0
    %2038 = vmatmul.mubr.f32.gmra.mxu0 %v1959
    %v2039 = vpop.f32.mrf.mxu0
    %v2040 = vadd.f32 0.0, %v2039
    %v2041 = vpop.f32.mrf.mxu0
    %v2042 = vadd.f32 0.0, %v2041
    %2043 = vmatprep.mubr.f32.mxu0 0.0
    %2044 = vmatmul.mubr.f32.gmra.mxu0 %v1962
    %v2045 = vpop.f32.mrf.mxu0
    %v2046 = vadd.f32 0.0, %v2045
    %v2047 = vpop.f32.mrf.mxu0
    %v2048 = vadd.f32 0.0, %v2047
    %2049 = vmatprep.mubr.f32.mxu0 0.0
    %2050 = vmatmul.mubr.f32.gmra.mxu0 %v1965
    %v2051 = vpop.f32.mrf.mxu0
    %v2052 = vadd.f32 0.0, %v2051
    %v2053 = vpop.f32.mrf.mxu0
    %v2054 = vadd.f32 0.0, %v2053
    %2055 = vdwg.mxu0
    %v2056 = vadd.f32 %v2034, %v2036
    %2057 = vadd.xlane.f32.xlu0 %v2056
    %v2058 = vpop.xlane.xlu0 %2057
    %v2059 = vrot.slane %v2058, 4
    %v2060 = vadd.f32 %v2058, %v2059
    %v2061 = vrot.slane %v2060, 2
    %v2062 = vadd.f32 %v2060, %v2061
    %v2063 = vrot.slane %v2062, 1
    %v2064 = vadd.f32 %v2062, %v2063
    %s2065 = vtos %v2064
    %v2066 = vstv %s2065
    %v2067 = vmul.f32 %v2066, %v198
    %v2068 = vsub.f32 %v2034, %v2067
    %v2069 = vsub.f32 %v2036, %v2067
    %v2070 = vmul.f32 %v2068, %v2068
    %v2071 = vmul.f32 %v2069, %v2069
    %v2072 = vadd.f32 %v2070, %v2071
    %2073 = vadd.xlane.f32.xlu0 %v2072
    %v2074 = vpop.xlane.xlu0 %2073
    %v2075 = vrot.slane %v2074, 4
    %v2076 = vadd.f32 %v2074, %v2075
    %v2077 = vrot.slane %v2076, 2
    %v2078 = vadd.f32 %v2076, %v2077
    %v2079 = vrot.slane %v2078, 1
    %v2080 = vadd.f32 %v2078, %v2079
    %s2081 = vtos %v2080
    %v2082 = vstv %s2081
    %v2083 = vmul.f32 %v2082, %v198
    %v2084 = vadd.f32 %v2083, 1e-05
    %v2085 = vrsqrt.pop %v2084
    %v2086 = vmul.f32 %v2068, %v2085
    %v2087 = vmul.f32 %v2069, %v2085
    %v2088 = vmul.f32 %v2086, %v69
    %v2089 = vmul.f32 %v2087, %v70
    %v2090 = vadd.f32 %v2088, %v71
    %v2091 = vadd.f32 %v2089, %v72
    %s2092 = scalar_lea.vmem [#allocation10], 448
    %2093 = vst [vmem:[%s2092] sm:$0xff] %v2090
    %2094 = vst [vmem:[%s2092 + $0x8] sm:$0xff] %v2091
    %v2095 = vadd.f32 %v2040, %v2042
    %2096 = vadd.xlane.f32.xlu0 %v2095
    %v2097 = vpop.xlane.xlu0 %2096
    %v2098 = vrot.slane %v2097, 4
    %v2099 = vadd.f32 %v2097, %v2098
    %v2100 = vrot.slane %v2099, 2
    %v2101 = vadd.f32 %v2099, %v2100
    %v2102 = vrot.slane %v2101, 1
    %v2103 = vadd.f32 %v2101, %v2102
    %s2104 = vtos %v2103
    %v2105 = vstv %s2104
    %v2106 = vmul.f32 %v2105, %v198
    %v2107 = vsub.f32 %v2040, %v2106
    %v2108 = vsub.f32 %v2042, %v2106
    %v2109 = vmul.f32 %v2107, %v2107
    %v2110 = vmul.f32 %v2108, %v2108
    %v2111 = vadd.f32 %v2109, %v2110
    %2112 = vadd.xlane.f32.xlu0 %v2111
    %v2113 = vpop.xlane.xlu0 %2112
    %v2114 = vrot.slane %v2113, 4
    %v2115 = vadd.f32 %v2113, %v2114
    %v2116 = vrot.slane %v2115, 2
    %v2117 = vadd.f32 %v2115, %v2116
    %v2118 = vrot.slane %v2117, 1
    %v2119 = vadd.f32 %v2117, %v2118
    %s2120 = vtos %v2119
    %v2121 = vstv %s2120
    %v2122 = vmul.f32 %v2121, %v198
    %v2123 = vadd.f32 %v2122, 1e-05
    %v2124 = vrsqrt.pop %v2123
    %v2125 = vmul.f32 %v2107, %v2124
    %v2126 = vmul.f32 %v2108, %v2124
    %v2127 = vmul.f32 %v2125, %v69
    %v2128 = vmul.f32 %v2126, %v70
    %v2129 = vadd.f32 %v2127, %v71
    %v2130 = vadd.f32 %v2128, %v72
    %2131 = vst [vmem:[%s2092 + $0x10] sm:$0xff] %v2129
    %2132 = vst [vmem:[%s2092 + $0x18] sm:$0xff] %v2130
    %v2133 = vadd.f32 %v2046, %v2048
    %2134 = vadd.xlane.f32.xlu0 %v2133
    %v2135 = vpop.xlane.xlu0 %2134
    %v2136 = vrot.slane %v2135, 4
    %v2137 = vadd.f32 %v2135, %v2136
    %v2138 = vrot.slane %v2137, 2
    %v2139 = vadd.f32 %v2137, %v2138
    %v2140 = vrot.slane %v2139, 1
    %v2141 = vadd.f32 %v2139, %v2140
    %s2142 = vtos %v2141
    %v2143 = vstv %s2142
    %v2144 = vmul.f32 %v2143, %v198
    %v2145 = vsub.f32 %v2046, %v2144
    %v2146 = vsub.f32 %v2048, %v2144
    %v2147 = vmul.f32 %v2145, %v2145
    %v2148 = vmul.f32 %v2146, %v2146
    %v2149 = vadd.f32 %v2147, %v2148
    %2150 = vadd.xlane.f32.xlu0 %v2149
    %v2151 = vpop.xlane.xlu0 %2150
    %v2152 = vrot.slane %v2151, 4
    %v2153 = vadd.f32 %v2151, %v2152
    %v2154 = vrot.slane %v2153, 2
    %v2155 = vadd.f32 %v2153, %v2154
    %v2156 = vrot.slane %v2155, 1
    %v2157 = vadd.f32 %v2155, %v2156
    %s2158 = vtos %v2157
    %v2159 = vstv %s2158
    %v2160 = vmul.f32 %v2159, %v198
    %v2161 = vadd.f32 %v2160, 1e-05
    %v2162 = vrsqrt.pop %v2161
    %v2163 = vmul.f32 %v2145, %v2162
    %v2164 = vmul.f32 %v2146, %v2162
    %v2165 = vmul.f32 %v2163, %v69
    %v2166 = vmul.f32 %v2164, %v70
    %v2167 = vadd.f32 %v2165, %v71
    %v2168 = vadd.f32 %v2166, %v72
    %2169 = vst [vmem:[%s2092 + $0x20] sm:$0xff] %v2167
    %2170 = vst [vmem:[%s2092 + $0x28] sm:$0xff] %v2168
    %v2171 = vadd.f32 %v2052, %v2054
    %2172 = vadd.xlane.f32.xlu0 %v2171
    %v2173 = vpop.xlane.xlu0 %2172
    %v2174 = vrot.slane %v2173, 4
    %v2175 = vadd.f32 %v2173, %v2174
    %v2176 = vrot.slane %v2175, 2
    %v2177 = vadd.f32 %v2175, %v2176
    %v2178 = vrot.slane %v2177, 1
    %v2179 = vadd.f32 %v2177, %v2178
    %s2180 = vtos %v2179
    %v2181 = vstv %s2180
    %v2182 = vmul.f32 %v2181, %v198
    %v2183 = vsub.f32 %v2052, %v2182
    %v2184 = vsub.f32 %v2054, %v2182
    %v2185 = vmul.f32 %v2183, %v2183
    %v2186 = vmul.f32 %v2184, %v2184
    %v2187 = vadd.f32 %v2185, %v2186
    %2188 = vadd.xlane.f32.xlu0 %v2187
    %v2189 = vpop.xlane.xlu0 %2188
    %v2190 = vrot.slane %v2189, 4
    %v2191 = vadd.f32 %v2189, %v2190
    %v2192 = vrot.slane %v2191, 2
    %v2193 = vadd.f32 %v2191, %v2192
    %v2194 = vrot.slane %v2193, 1
    %v2195 = vadd.f32 %v2193, %v2194
    %s2196 = vtos %v2195
    %v2197 = vstv %s2196
    %v2198 = vmul.f32 %v2197, %v198
    %v2199 = vadd.f32 %v2198, 1e-05
    %v2200 = vrsqrt.pop %v2199
    %v2201 = vmul.f32 %v2183, %v2200
    %v2202 = vmul.f32 %v2184, %v2200
    %v2203 = vmul.f32 %v2201, %v69
    %v2204 = vmul.f32 %v2202, %v70
    %v2205 = vadd.f32 %v2203, %v71
    %v2206 = vadd.f32 %v2204, %v72
    %2207 = vst [vmem:[%s2092 + $0x30] sm:$0xff] %v2205
    %2208 = vst [vmem:[%s2092 + $0x38] sm:$0xff] %v2206
    // Predicated region
    $region34: #{tpu_custom_call.1} parent=1 // pred_check
      _
    $region35: #{tpu_custom_call.1} parent=1 // pred_check_branch
      %2210 = sbr.rel (0) target = $region37
    $region36: #{tpu_custom_call.1} parent=1 // pred_region
      %s2212 = ssub.s32 8192, 8192
      %2213 = vsyncadd [#allocation4], %s2212
      %s2214 = sshll.u32 [#allocation10], 4
      %s2215 = int_to_ptr.vmem [resolvable:$true] %s2214
      %2220 = dma.vmem_to_hbm [thread:$0]  %s2215, 8192, %s4, [#allocation4], 256, 256, 16
    $region37: #{tpu_custom_call.1} parent=1 // pred_fallthru
      _
    // Predicated region
    $region38: #{tpu_custom_call.1} parent=1 // pred_check
      _
    $region39: #{tpu_custom_call.1} parent=1 // pred_check_branch
      %2222 = sbr.rel (0) target = $region41
    $region40: #{tpu_custom_call.1} parent=1 // pred_region
      %2223 = dma.done [#allocation4], 8192
    $region41: #{tpu_custom_call.1} parent=1 // pred_fallthru
      _
    %2224 = vsyncpa [#allocation3], 1
    %2225 = vsyncpa [#allocation6], 1
    %2226 = vsyncpa [#allocation9], 1
    %2227 = vsyncpa [#allocation4], 1

</llo_original>
